<compile_context>
chip_gen: v6e
topology: v6e:2x2x1
jax: 0.10.0
libtpu: 0.0.40
codegen_flags: <defaults>
</compile_context>

<pallas_src>
import math

import numpy as np

import jax
import jax.numpy as jnp
from jax.experimental import pallas as pl
from jax.experimental.pallas import tpu as pltpu


def _make_kernel(H):
    """Kernel closure over the (static) per-sample height H."""

    def kernel(x_ref, m1_ref, m2_ref, b_ref, out_ref):
        # x_ref  : (N*H, W*Cp)   whole batch, lane-dense NHWC with (W, Cp) flattened
        # m*_ref : (3*W*Cp, W*Cp) stacked width-conv (+ width reflection) operators with the
        #                         BatchNorm scale folded into the output-channel columns
        # b_ref  : (2, W*Cp)      folded BN biases (row 0 -> BN1, row 1 -> BN2)
        hi = jax.lax.Precision.HIGHEST
        x = x_ref[...]                               # (M, WC) f32
        M, WC = x.shape
        b = b_ref[...]                               # (2, WC)

        # Per-sample row masks for the reflection boundary (rows 0 and H-1 of every sample).
        row = jax.lax.broadcasted_iota(jnp.int32, (M, 1), 0)
        local = row % H
        is_top = local == 0
        is_bot = local == (H - 1)

        def conv3x3_reflect(v, m_ref):
            # Vertical taps via sublane rotations + boundary patch (no selector matmuls).
            r_up = pltpu.roll(v, shift=1, axis=0)        # r_up[i] = v[i-1]
            r_dn = pltpu.roll(v, shift=M - 1, axis=0)    # r_dn[i] = v[i+1]
            up = jnp.where(is_top, r_dn, r_up)           # reflect: row0 uses row1
            dn = jnp.where(is_bot, r_up, r_dn)           # reflect: row H-1 uses row H-2
            # Three accumulating K=WC dots against static slices of the stacked operator.
            acc = jnp.dot(up, m_ref[0 * WC:1 * WC, :], precision=hi,
                          preferred_element_type=jnp.float32)
            acc = acc + jnp.dot(v, m_ref[1 * WC:2 * WC, :], precision=hi,
                                preferred_element_type=jnp.float32)
            acc = acc + jnp.dot(dn, m_ref[2 * WC:3 * WC, :], precision=hi,
                                preferred_element_type=jnp.float32)
            return acc

        y = jnp.maximum(conv3x3_reflect(x, m1_ref) + b[0:1, :], 0.0)   # conv1+BN1+ReLU
        # TODO(synk): Dropout(0.5) is the identity here (eval semantics); a training-mode mask
        # would need pltpu.prng_* and cannot reproduce torch's RNG stream anyway.
        z = conv3x3_reflect(y, m2_ref) + b[1:2, :]                     # conv2+BN2
        out_ref[...] = x + z                                           # residual add

    return kernel


def prepare_params(params, H, W, C, eps=1e-5):
    """One-time (hoisted) preprocessing of constant weights into kernel operands."""
    lane = 128
    step = lane // math.gcd(W, lane)
    Cp = int(np.ceil(C / step) * step)          # pad channels so W*Cp is a multiple of 128
    WC = W * Cp

    def refl(i, n):                             # ReflectionPad2d(1) index map (no edge repeat)
        if i < 0:
            return -i
        if i >= n:
            return 2 * n - 2 - i
        return i

    def bn_fold(gamma, beta, mean, var):
        g = np.asarray(gamma, np.float32)
        b = np.asarray(beta, np.float32)
        m = np.asarray(mean, np.float32)
        v = np.asarray(var, np.float32)
        scale = g / np.sqrt(v + eps)
        bias = b - m * scale
        return scale, bias

    def conv_matrix(w_oihw, scale):
        # torch conv weight (C, C, 3, 3) -> stacked (3*W*Cp, W*Cp) operator; for each dy,
        # block (k, j) accumulates w[:, :, dy, dx]^T over all dx with reflect(j+dx-1) == k.
        # The BN output-channel scale is folded into the operator columns.
        w = np.asarray(w_oihw, np.float32)
        M_op = np.zeros((3, WC, WC), np.float32)
        for dy in range(3):
            for j in range(W):
                for dx in range(3):
                    k = refl(j + dx - 1, W)
                    M_op[dy, k * Cp:k * Cp + C, j * Cp:j * Cp + C] += w[:, :, dy, dx].T
        col_scale = np.zeros((WC,), np.float32)
        for j in range(W):
            col_scale[j * Cp:j * Cp + C] = scale
        return (M_op.reshape(3 * WC, WC) * col_scale[None, :]).astype(np.float32)

    s1, bi1 = bn_fold(params["g1"], params["be1"], params["m1"], params["v1"])
    s2, bi2 = bn_fold(params["g2"], params["be2"], params["m2"], params["v2"])

    b_rows = np.zeros((2, WC), np.float32)
    for j in range(W):
        b_rows[0, j * Cp:j * Cp + C] = bi1
        b_rows[1, j * Cp:j * Cp + C] = bi2

    return {
        "m1": jnp.asarray(conv_matrix(params["w1"], s1)),
        "m2": jnp.asarray(conv_matrix(params["w2"], s2)),
        "b": jnp.asarray(b_rows),
    }


def residual_block_forward(x_nchw, prep):
    N, C, H, W = x_nchw.shape
    WC = prep["m1"].shape[-1]
    Cp = WC // W
    M = N * H

    # NCHW -> lane-dense (N*H, W*Cp) with zero-padded channels.
    # TODO(synk): when several residual blocks are chained, keep activations in this layout
    # between blocks instead of converting on every call (these XLA transposes/pads dominate).
    x_nhwc = jnp.transpose(x_nchw, (0, 2, 3, 1)).astype(jnp.float32)
    x_flat = jnp.pad(x_nhwc, ((0, 0), (0, 0), (0, 0), (0, Cp - C))).reshape(M, WC)

    flops = 2 * (2 * M * (3 * WC) * WC) + 8 * M * WC            # 2 convs + elementwise
    bytes_accessed = (2 * M * WC + 2 * 3 * WC * WC + 2 * WC) * 4

    out_flat = pl.pallas_call(
        _make_kernel(H),
        out_shape=jax.ShapeDtypeStruct((M, WC), jnp.float32),
        grid=(1,),
        in_specs=[
            pl.BlockSpec((M, WC), lambda i: (0, 0)),            # x (whole batch, one block)
            pl.BlockSpec((3 * WC, WC), lambda i: (0, 0)),       # conv1 operator (BN1 folded)
            pl.BlockSpec((3 * WC, WC), lambda i: (0, 0)),       # conv2 operator (BN2 folded)
            pl.BlockSpec((2, WC), lambda i: (0, 0)),            # packed BN biases
        ],
        out_specs=pl.BlockSpec((M, WC), lambda i: (0, 0)),
        input_output_aliases={0: 0},                            # residual add in place
        compiler_params=pltpu.CompilerParams(dimension_semantics=("arbitrary",)),
        cost_estimate=pl.CostEstimate(flops=flops, transcendentals=0,
                                      bytes_accessed=bytes_accessed),
    )(x_flat, prep["m1"], prep["m2"], prep["b"])

    out = out_flat.reshape(N, H, W, Cp)[..., :C]
    return jnp.transpose(out, (0, 3, 1, 2))


def residual_block_reference(x_nchw, params, eps=1e-5):
    # Pure-JAX (XLA) reference for the same eval-mode forward pass.
    def conv(x, w):
        xp = jnp.pad(x, ((0, 0), (0, 0), (1, 1), (1, 1)), mode="reflect")
        return jax.lax.conv_general_dilated(
            xp, w, window_strides=(1, 1), padding="VALID",
            dimension_numbers=("NCHW", "OIHW", "NCHW"),
            precision=jax.lax.Precision.HIGHEST)

    def bn(x, g, b, m, v):
        s = g / jnp.sqrt(v + eps)
        return x * s[None, :, None, None] + (b - m * s)[None, :, None, None]

    y = conv(x_nchw, params["w1"])
    y = bn(y, params["g1"], params["be1"], params["m1"], params["v1"])
    y = jnp.maximum(y, 0.0)
    z = conv(y, params["w2"])
    z = bn(z, params["g2"], params["be2"], params["m2"], params["v2"])
    return x_nchw + z


if __name__ == "__main__":
    N, C, H, W = 2, 4, 16, 16  # num_filters = 4
    key = jax.random.PRNGKey(0)
    keys = jax.random.split(key, 11)
    x = jax.random.normal(keys[0], (N, C, H, W), jnp.float32)
    params = {
        "w1": jax.random.normal(keys[1], (C, C, 3, 3), jnp.float32) * 0.2,
        "w2": jax.random.normal(keys[2], (C, C, 3, 3), jnp.float32) * 0.2,
        "g1": jax.random.uniform(keys[3], (C,), jnp.float32, 0.5, 1.5),
        "be1": jax.random.normal(keys[4], (C,), jnp.float32) * 0.1,
        "m1": jax.random.normal(keys[5], (C,), jnp.float32) * 0.1,
        "v1": jax.random.uniform(keys[6], (C,), jnp.float32, 0.5, 1.5),
        "g2": jax.random.uniform(keys[7], (C,), jnp.float32, 0.5, 1.5),
        "be2": jax.random.normal(keys[8], (C,), jnp.float32) * 0.1,
        "m2": jax.random.normal(keys[9], (C,), jnp.float32) * 0.1,
        "v2": jax.random.uniform(keys[10], (C,), jnp.float32, 0.5, 1.5),
    }

    # Hoisted, one-time parameter preprocessing (not part of the per-call path).
    prep = prepare_params(params, H=H, W=W, C=C)

    fwd = jax.jit(residual_block_forward)
    out = jax.block_until_ready(fwd(x, prep))
    assert out.shape == (N, C, H, W)

    ref = residual_block_reference(x, params)
    max_err = float(jnp.max(jnp.abs(out - ref)))
    if max_err > 1e-3:
        raise AssertionError(f"kernel/reference mismatch: max abs err = {max_err}")
    print("KERNEL_OK")
</pallas_src>

<mosaic_0001>
module attributes {stable_mosaic.version = 11 : i64} {
  func.func @kernel(%arg0: i32, %arg1: memref<32x128xf32, #tpu.memory_space<vmem>>, %arg2: memref<384x128xf32, #tpu.memory_space<vmem>>, %arg3: memref<384x128xf32, #tpu.memory_space<vmem>>, %arg4: memref<2x128xf32, #tpu.memory_space<vmem>>, %arg5: memref<32x128xf32, #tpu.memory_space<vmem>>) attributes {dimension_semantics = [#tpu.dimension_semantics<arbitrary>], iteration_bounds = array<i64: 1>, scalar_prefetch = 0 : i64, scratch_operands = 0 : i64, tpu.core_type = #tpu.core_type<tc>, window_params = [{pipeline_mode = #tpu.pipeline_mode<synchronous>, transform_indices = @transform_0, window_bounds = array<i64: 32, 128>}, {pipeline_mode = #tpu.pipeline_mode<synchronous>, transform_indices = @transform_1, window_bounds = array<i64: 384, 128>}, {pipeline_mode = #tpu.pipeline_mode<synchronous>, transform_indices = @transform_2, window_bounds = array<i64: 384, 128>}, {pipeline_mode = #tpu.pipeline_mode<synchronous>, transform_indices = @transform_3, window_bounds = array<i64: 2, 128>}, {pipeline_mode = #tpu.pipeline_mode<synchronous>, transform_indices = @transform_4, window_bounds = array<i64: 32, 128>}]} {
    %c0 = arith.constant 0 : index
    %c0_0 = arith.constant 0 : index
    %0 = vector.load %arg1[%c0, %c0_0] : memref<32x128xf32, #tpu.memory_space<vmem>>, vector<32x128xf32>
    %c0_1 = arith.constant 0 : index
    %c0_2 = arith.constant 0 : index
    %1 = vector.load %arg4[%c0_1, %c0_2] : memref<2x128xf32, #tpu.memory_space<vmem>>, vector<2x128xf32>
    %2 = tpu.iota {dimensions = array<i32: 0>} : vector<32x1xi32>
    %c16_i32 = arith.constant 16 : i32
    %c0_i32 = arith.constant 0 : i32
    %3 = arith.cmpi eq, %c16_i32, %c0_i32 : i32
    %c1_i32 = arith.constant 1 : i32
    %4 = arith.select %3, %c1_i32, %c16_i32 : i32
    %5 = vector.broadcast %4 : i32 to vector<32x1xi32>
    %6 = arith.remsi %2, %5 : vector<32x1xi32>
    %c0_i32_3 = arith.constant 0 : i32
    %7 = vector.broadcast %c0_i32_3 : i32 to vector<32x1xi32>
    %8 = arith.cmpi ne, %6, %7 : vector<32x1xi32>
    %c0_i32_4 = arith.constant 0 : i32
    %9 = vector.broadcast %c0_i32_4 : i32 to vector<32x1xi32>
    %10 = arith.cmpi slt, %6, %9 : vector<32x1xi32>
    %c0_i32_5 = arith.constant 0 : i32
    %11 = arith.cmpi slt, %4, %c0_i32_5 : i32
    %12 = vector.broadcast %11 : i1 to vector<32x1xi1>
    %13 = vector.broadcast %12 : vector<32x1xi1> to vector<32x1xi1>
    %14 = arith.xori %10, %13 : vector<32x1xi1>
    %15 = arith.andi %14, %8 : vector<32x1xi1>
    %16 = vector.broadcast %4 : i32 to vector<32x1xi32>
    %17 = arith.addi %6, %16 : vector<32x1xi32>
    %18 = arith.select %15, %17, %6 : vector<32x1xi1>, vector<32x1xi32>
    %c0_i32_6 = arith.constant 0 : i32
    %19 = vector.broadcast %c0_i32_6 : i32 to vector<32x1xi32>
    %20 = arith.cmpi eq, %18, %19 : vector<32x1xi32>
    %c15_i32 = arith.constant 15 : i32
    %21 = vector.broadcast %c15_i32 : i32 to vector<32x1xi32>
    %22 = arith.cmpi eq, %18, %21 : vector<32x1xi32>
    %c1_i32_7 = arith.constant 1 : i32
    %23 = tpu.dynamic_rotate %0 by %c1_i32_7 dim 0 : vector<32x128xf32>, i32 -> vector<32x128xf32>
    %c31_i32 = arith.constant 31 : i32
    %24 = tpu.dynamic_rotate %0 by %c31_i32 dim 0 : vector<32x128xf32>, i32 -> vector<32x128xf32>
    %25 = vector.shape_cast %20 : vector<32x1xi1> to vector<32x1xi1>
    %26 = vector.broadcast %25 : vector<32x1xi1> to vector<32x128xi1>
    %27 = arith.select %26, %24, %23 : vector<32x128xi1>, vector<32x128xf32>
    %28 = vector.shape_cast %22 : vector<32x1xi1> to vector<32x1xi1>
    %29 = vector.broadcast %28 : vector<32x1xi1> to vector<32x128xi1>
    %30 = arith.select %29, %23, %24 : vector<32x128xi1>, vector<32x128xf32>
    %c0_8 = arith.constant 0 : index
    %c0_9 = arith.constant 0 : index
    %31 = vector.load %arg2[%c0_8, %c0_9] : memref<384x128xf32, #tpu.memory_space<vmem>>, vector<128x128xf32>
    %cst = arith.constant dense<0.000000e+00> : vector<32x128xf32>
    %32 = tpu.matmul %27, %31, %cst {dimension_numbers = #tpu.dot_dimension_numbers<[1], [0], [0], [1], [0, 0, 1, 1], [], []>, precision = #tpu.contract_precision<fp32>} : vector<32x128xf32>, vector<128x128xf32>, vector<32x128xf32> -> vector<32x128xf32>
    %c128 = arith.constant 128 : index
    %c0_10 = arith.constant 0 : index
    %33 = vector.load %arg2[%c128, %c0_10] : memref<384x128xf32, #tpu.memory_space<vmem>>, vector<128x128xf32>
    %cst_11 = arith.constant dense<0.000000e+00> : vector<32x128xf32>
    %34 = tpu.matmul %0, %33, %cst_11 {dimension_numbers = #tpu.dot_dimension_numbers<[1], [0], [0], [1], [0, 0, 1, 1], [], []>, precision = #tpu.contract_precision<fp32>} : vector<32x128xf32>, vector<128x128xf32>, vector<32x128xf32> -> vector<32x128xf32>
    %35 = arith.addf %32, %34 : vector<32x128xf32>
    %c256 = arith.constant 256 : index
    %c0_12 = arith.constant 0 : index
    %36 = vector.load %arg2[%c256, %c0_12] : memref<384x128xf32, #tpu.memory_space<vmem>>, vector<128x128xf32>
    %cst_13 = arith.constant dense<0.000000e+00> : vector<32x128xf32>
    %37 = tpu.matmul %30, %36, %cst_13 {dimension_numbers = #tpu.dot_dimension_numbers<[1], [0], [0], [1], [0, 0, 1, 1], [], []>, precision = #tpu.contract_precision<fp32>} : vector<32x128xf32>, vector<128x128xf32>, vector<32x128xf32> -> vector<32x128xf32>
    %38 = arith.addf %35, %37 : vector<32x128xf32>
    %39 = vector.extract_strided_slice %1 {offsets = [0, 0], sizes = [1, 128], strides = [1, 1]} : vector<2x128xf32> to vector<1x128xf32>
    %40 = vector.broadcast %39 : vector<1x128xf32> to vector<32x128xf32>
    %41 = arith.addf %38, %40 : vector<32x128xf32>
    %cst_14 = arith.constant 0.000000e+00 : f32
    %42 = vector.broadcast %cst_14 : f32 to vector<32x128xf32>
    %43 = arith.maximumf %41, %42 : vector<32x128xf32>
    %c1_i32_15 = arith.constant 1 : i32
    %44 = tpu.dynamic_rotate %43 by %c1_i32_15 dim 0 : vector<32x128xf32>, i32 -> vector<32x128xf32>
    %c31_i32_16 = arith.constant 31 : i32
    %45 = tpu.dynamic_rotate %43 by %c31_i32_16 dim 0 : vector<32x128xf32>, i32 -> vector<32x128xf32>
    %46 = vector.shape_cast %20 : vector<32x1xi1> to vector<32x1xi1>
    %47 = vector.broadcast %46 : vector<32x1xi1> to vector<32x128xi1>
    %48 = arith.select %47, %45, %44 : vector<32x128xi1>, vector<32x128xf32>
    %49 = vector.shape_cast %22 : vector<32x1xi1> to vector<32x1xi1>
    %50 = vector.broadcast %49 : vector<32x1xi1> to vector<32x128xi1>
    %51 = arith.select %50, %44, %45 : vector<32x128xi1>, vector<32x128xf32>
    %c0_17 = arith.constant 0 : index
    %c0_18 = arith.constant 0 : index
    %52 = vector.load %arg3[%c0_17, %c0_18] : memref<384x128xf32, #tpu.memory_space<vmem>>, vector<128x128xf32>
    %cst_19 = arith.constant dense<0.000000e+00> : vector<32x128xf32>
    %53 = tpu.matmul %48, %52, %cst_19 {dimension_numbers = #tpu.dot_dimension_numbers<[1], [0], [0], [1], [0, 0, 1, 1], [], []>, precision = #tpu.contract_precision<fp32>} : vector<32x128xf32>, vector<128x128xf32>, vector<32x128xf32> -> vector<32x128xf32>
    %c128_20 = arith.constant 128 : index
    %c0_21 = arith.constant 0 : index
    %54 = vector.load %arg3[%c128_20, %c0_21] : memref<384x128xf32, #tpu.memory_space<vmem>>, vector<128x128xf32>
    %cst_22 = arith.constant dense<0.000000e+00> : vector<32x128xf32>
    %55 = tpu.matmul %43, %54, %cst_22 {dimension_numbers = #tpu.dot_dimension_numbers<[1], [0], [0], [1], [0, 0, 1, 1], [], []>, precision = #tpu.contract_precision<fp32>} : vector<32x128xf32>, vector<128x128xf32>, vector<32x128xf32> -> vector<32x128xf32>
    %56 = arith.addf %53, %55 : vector<32x128xf32>
    %c256_23 = arith.constant 256 : index
    %c0_24 = arith.constant 0 : index
    %57 = vector.load %arg3[%c256_23, %c0_24] : memref<384x128xf32, #tpu.memory_space<vmem>>, vector<128x128xf32>
    %cst_25 = arith.constant dense<0.000000e+00> : vector<32x128xf32>
    %58 = tpu.matmul %51, %57, %cst_25 {dimension_numbers = #tpu.dot_dimension_numbers<[1], [0], [0], [1], [0, 0, 1, 1], [], []>, precision = #tpu.contract_precision<fp32>} : vector<32x128xf32>, vector<128x128xf32>, vector<32x128xf32> -> vector<32x128xf32>
    %59 = arith.addf %56, %58 : vector<32x128xf32>
    %60 = vector.extract_strided_slice %1 {offsets = [1, 0], sizes = [1, 128], strides = [1, 1]} : vector<2x128xf32> to vector<1x128xf32>
    %61 = vector.broadcast %60 : vector<1x128xf32> to vector<32x128xf32>
    %62 = arith.addf %59, %61 : vector<32x128xf32>
    %63 = arith.addf %0, %62 : vector<32x128xf32>
    %c0_26 = arith.constant 0 : index
    %c0_27 = arith.constant 0 : index
    %64 = vector.load %arg5[%c0_26, %c0_27] : memref<32x128xf32, #tpu.memory_space<vmem>>, vector<32x128xf32>
    tpu.vector_store %arg5[%c0_26, %c0_27], %63 {strides = array<i32>} : memref<32x128xf32, #tpu.memory_space<vmem>>, vector<32x128xf32>,
    return
  }
  func.func @transform_0(%arg0: i32) -> (i32, i32) {
    %c0_i32 = arith.constant 0 : i32
    %c0_i32_0 = arith.constant 0 : i32
    %c0_i32_1 = arith.constant 0 : i32
    return %c0_i32, %c0_i32_0 : i32, i32
  }
  func.func @transform_1(%arg0: i32) -> (i32, i32) {
    %c0_i32 = arith.constant 0 : i32
    %c0_i32_0 = arith.constant 0 : i32
    %c0_i32_1 = arith.constant 0 : i32
    return %c0_i32, %c0_i32_0 : i32, i32
  }
  func.func @transform_2(%arg0: i32) -> (i32, i32) {
    %c0_i32 = arith.constant 0 : i32
    %c0_i32_0 = arith.constant 0 : i32
    %c0_i32_1 = arith.constant 0 : i32
    return %c0_i32, %c0_i32_0 : i32, i32
  }
  func.func @transform_3(%arg0: i32) -> (i32, i32) {
    %c0_i32 = arith.constant 0 : i32
    %c0_i32_0 = arith.constant 0 : i32
    %c0_i32_1 = arith.constant 0 : i32
    return %c0_i32, %c0_i32_0 : i32, i32
  }
  func.func @transform_4(%arg0: i32) -> (i32, i32) {
    %c0_i32 = arith.constant 0 : i32
    %c0_i32_0 = arith.constant 0 : i32
    %c0_i32_1 = arith.constant 0 : i32
    return %c0_i32, %c0_i32_0 : i32, i32
  }
}

</mosaic_0001>

<llo_original>
// kernel: residual_block_forward.1
$region0: #{residual_block_forward.1}
  #allocation0 [shape = 'u32[]', space=smem, size = 0x4, offset = 0x4, fixed_abs, tag = 'smem constant byte address 0x4 - core index']
  #allocation1 [shape = 'u32[144,128]{1,0:T(1,128)}', space=vmem, size = 0x12000, scoped, tag = 'internal scratch']
  %s0 = inlined_call_operand.vmem [shape: f32[32,128], index: 0, kind: input, shape index: {}, may-alias: {0,4}]
  %s1 = inlined_call_operand.vmem [shape: f32[384,128], index: 1, kind: input, shape index: {}]
  %s2 = inlined_call_operand.vmem [shape: f32[384,128], index: 2, kind: input, shape index: {}]
  %s3 = inlined_call_operand.vmem [shape: f32[2,128], index: 3, kind: input, shape index: {}]
  %s4 = inlined_call_operand.vmem [shape: f32[32,128], index: 4, kind: output, shape index: {}, may-alias: {0,4}]
  %s5 = sld [smem:[#allocation0]]
  $region26: #{residual_block_forward.1} parent=0
    _
  %s7 = ssub.s32 1, %s5
  %s8 = scalar_select 0, %s7, %s5
  // Predicated region
  $region2: #{residual_block_forward.1} parent=0 // pred_check
    _
  $region3: #{residual_block_forward.1} parent=0 // pred_check_branch
    %10 = sbr.rel (0) target = $region5
  $region4: #{residual_block_forward.1} parent=0 // pred_region
    _
  $region5: #{residual_block_forward.1} parent=0 // pred_fallthru
    _
  // Predicated region
  $region6: #{residual_block_forward.1} parent=0 // pred_check
    _
  $region7: #{residual_block_forward.1} parent=0 // pred_check_branch
    %12 = sbr.rel (0) target = $region9
  $region8: #{residual_block_forward.1} parent=0 // pred_region
    _
  $region9: #{residual_block_forward.1} parent=0 // pred_fallthru
    _
  // Predicated region
  $region10: #{residual_block_forward.1} parent=0 // pred_check
    _
  $region11: #{residual_block_forward.1} parent=0 // pred_check_branch
    %14 = sbr.rel (0) target = $region13
  $region12: #{residual_block_forward.1} parent=0 // pred_region
    _
  $region13: #{residual_block_forward.1} parent=0 // pred_fallthru
    _
  // Predicated region
  $region14: #{residual_block_forward.1} parent=0 // pred_check
    _
  $region15: #{residual_block_forward.1} parent=0 // pred_check_branch
    %16 = sbr.rel (0) target = $region17
  $region16: #{residual_block_forward.1} parent=0 // pred_region
    _
  $region17: #{residual_block_forward.1} parent=0 // pred_fallthru
    _
  %v17 = vld [vmem:[%s0] sm:$0xff]
  %v18 = vld [vmem:[%s0 + $0x8] sm:$0xff]
  %v19 = vld [vmem:[%s0 + $0x10] sm:$0xff]
  %v20 = vld [vmem:[%s0 + $0x18] sm:$0xff]
  %v21 = vld [vmem:[%s3] sm:$0x3]
  %v22 = vlaneseq
  %v23 = vshrl.u32 %v22, 7
  %v24 = vadd.s32 %v23, 8
  %v25 = vadd.s32 %v23, 16
  %v26 = vadd.s32 %v23, 24
  %vm27 = vcmp.lt.s32.totalorder %v23, 0
  %v28 = vsub.s32 0, %v23
  %v29 = vsel %vm27, %v28, %v23
  %v30 = vshrl.u32 %v29, 4
  %v31 = vand.u32 %v29, 15
  %v32 = vsub.s32 0, %v31
  %v33 = vsel %vm27, %v32, %v31
  %vm34 = vcmp.lt.s32.totalorder %v24, 0
  %v35 = vsub.s32 0, %v24
  %v36 = vsel %vm34, %v35, %v24
  %v37 = vshrl.u32 %v36, 4
  %v38 = vand.u32 %v36, 15
  %v39 = vsub.s32 0, %v38
  %v40 = vsel %vm34, %v39, %v38
  %vm41 = vcmp.lt.s32.totalorder %v25, 0
  %v42 = vsub.s32 0, %v25
  %v43 = vsel %vm41, %v42, %v25
  %v44 = vshrl.u32 %v43, 4
  %v45 = vand.u32 %v43, 15
  %v46 = vsub.s32 0, %v45
  %v47 = vsel %vm41, %v46, %v45
  %vm48 = vcmp.lt.s32.totalorder %v26, 0
  %v49 = vsub.s32 0, %v26
  %v50 = vsel %vm48, %v49, %v26
  %v51 = vshrl.u32 %v50, 4
  %v52 = vand.u32 %v50, 15
  %v53 = vsub.s32 0, %v52
  %v54 = vsel %vm48, %v53, %v52
  %vm55 = vcmp.ne.s32.totalorder %v33, 0
  %vm56 = vcmp.ne.s32.totalorder %v40, 0
  %vm57 = vcmp.ne.s32.totalorder %v47, 0
  %vm58 = vcmp.ne.s32.totalorder %v54, 0
  %vm59 = vcmp.lt.s32.totalorder %v33, 0
  %vm60 = vcmp.lt.s32.totalorder %v40, 0
  %vm61 = vcmp.lt.s32.totalorder %v47, 0
  %vm62 = vcmp.lt.s32.totalorder %v54, 0
  %vm63 = vmand %vm59, %vm55
  %vm64 = vmand %vm60, %vm56
  %vm65 = vmand %vm61, %vm57
  %vm66 = vmand %vm62, %vm58
  %v67 = vadd.s32 %v33, 16
  %v68 = vadd.s32 %v40, 16
  %v69 = vadd.s32 %v47, 16
  %v70 = vadd.s32 %v54, 16
  %v71 = vsel %vm63, %v67, %v33
  %v72 = vsel %vm64, %v68, %v40
  %v73 = vsel %vm65, %v69, %v47
  %v74 = vsel %vm66, %v70, %v54
  %vm75 = vcmp.eq.s32.totalorder %v71, 0
  %vm76 = vcmp.eq.s32.totalorder %v72, 0
  %vm77 = vcmp.eq.s32.totalorder %v73, 0
  %vm78 = vcmp.eq.s32.totalorder %v74, 0
  %vm79 = vcmp.eq.s32.totalorder %v71, 15
  %vm80 = vcmp.eq.s32.totalorder %v72, 15
  %vm81 = vcmp.eq.s32.totalorder %v73, 15
  %vm82 = vcmp.eq.s32.totalorder %v74, 15
  %v83 = vrot.slane %v17, 7
  %v84 = vrot.slane %v18, 7
  %v85 = vrot.slane %v19, 7
  %v86 = vrot.slane %v20, 7
  %vm87 = vcmp.lt.s32.totalorder %v23, 1
  %v88 = vsel %vm87, %v85, %v86
  %v89 = vsel %vm87, %v84, %v85
  %v90 = vsel %vm87, %v83, %v84
  %v91 = vsel %vm87, %v86, %v83
  %v92 = vrot.slane %v17, 1
  %v93 = vrot.slane %v18, 1
  %v94 = vrot.slane %v19, 1
  %v95 = vrot.slane %v20, 1
  %vm96 = vcmp.lt.s32.totalorder %v23, 7
  %v97 = vsel %vm96, %v94, %v95
  %v98 = vsel %vm96, %v93, %v94
  %v99 = vsel %vm96, %v92, %v93
  %v100 = vsel %vm96, %v95, %v92
  %v101 = vsel %vm75, 1, 0
  %v102 = vsel %vm76, 1, 0
  %v103 = vsel %vm77, 1, 0
  %v104 = vsel %vm78, 1, 0
  %vm105 = vcmp.eq.s32.totalorder %v101, 1
  %vm106 = vcmp.eq.s32.totalorder %v102, 1
  %vm107 = vcmp.eq.s32.totalorder %v103, 1
  %vm108 = vcmp.eq.s32.totalorder %v104, 1
  %v109 = vsel %vm105, %v99, %v91
  %v110 = vsel %vm106, %v98, %v90
  %v111 = vsel %vm107, %v97, %v89
  %v112 = vsel %vm108, %v100, %v88
  %v113 = vsel %vm79, 1, 0
  %v114 = vsel %vm80, 1, 0
  %v115 = vsel %vm81, 1, 0
  %v116 = vsel %vm82, 1, 0
  %vm117 = vcmp.eq.s32.totalorder %v113, 1
  %vm118 = vcmp.eq.s32.totalorder %v114, 1
  %vm119 = vcmp.eq.s32.totalorder %v115, 1
  %vm120 = vcmp.eq.s32.totalorder %v116, 1
  %v121 = vsel %vm117, %v91, %v99
  %v122 = vsel %vm118, %v90, %v98
  %v123 = vsel %vm119, %v89, %v97
  %v124 = vsel %vm120, %v88, %v100
  %v125 = vld [vmem:[%s1] sm:$0xff]
  %v126 = vld [vmem:[%s1 + $0x8] sm:$0xff]
  %v127 = vld [vmem:[%s1 + $0x10] sm:$0xff]
  %v128 = vld [vmem:[%s1 + $0x18] sm:$0xff]
  %v129 = vld [vmem:[%s1 + $0x20] sm:$0xff]
  %v130 = vld [vmem:[%s1 + $0x28] sm:$0xff]
  %v131 = vld [vmem:[%s1 + $0x30] sm:$0xff]
  %v132 = vld [vmem:[%s1 + $0x38] sm:$0xff]
  %v133 = vld [vmem:[%s1 + $0x40] sm:$0xff]
  %v134 = vld [vmem:[%s1 + $0x48] sm:$0xff]
  %v135 = vld [vmem:[%s1 + $0x50] sm:$0xff]
  %v136 = vld [vmem:[%s1 + $0x58] sm:$0xff]
  %v137 = vld [vmem:[%s1 + $0x60] sm:$0xff]
  %v138 = vld [vmem:[%s1 + $0x68] sm:$0xff]
  %v139 = vld [vmem:[%s1 + $0x70] sm:$0xff]
  %v140 = vld [vmem:[%s1 + $0x78] sm:$0xff]
  %v141 = vld [vmem:[%s1 + $0x80] sm:$0xff]
  %v142 = vld [vmem:[%s1 + $0x88] sm:$0xff]
  %v143 = vld [vmem:[%s1 + $0x90] sm:$0xff]
  %v144 = vld [vmem:[%s1 + $0x98] sm:$0xff]
  %v145 = vld [vmem:[%s1 + $0xa0] sm:$0xff]
  %v146 = vld [vmem:[%s1 + $0xa8] sm:$0xff]
  %v147 = vld [vmem:[%s1 + $0xb0] sm:$0xff]
  %v148 = vld [vmem:[%s1 + $0xb8] sm:$0xff]
  %v149 = vld [vmem:[%s1 + $0xc0] sm:$0xff]
  %v150 = vld [vmem:[%s1 + $0xc8] sm:$0xff]
  %v151 = vld [vmem:[%s1 + $0xd0] sm:$0xff]
  %v152 = vld [vmem:[%s1 + $0xd8] sm:$0xff]
  %v153 = vld [vmem:[%s1 + $0xe0] sm:$0xff]
  %v154 = vld [vmem:[%s1 + $0xe8] sm:$0xff]
  %v155 = vld [vmem:[%s1 + $0xf0] sm:$0xff]
  %v156 = vld [vmem:[%s1 + $0xf8] sm:$0xff]
  %157 = vmatprep.subr.mxu0 0.0
  %v158 = vand.u32 %v156, 4294901760
  %159 = vmatpush1.msra.mxu0 %v158
  %160 = vmatprep.subr.mxu0 0.0
  %v161 = vand.u32 %v155, 4294901760
  %162 = vmatpush1.msra.mxu0 %v161
  %163 = vmatprep.subr.mxu0 0.0
  %v164 = vand.u32 %v154, 4294901760
  %165 = vmatpush1.msra.mxu0 %v164
  %166 = vmatprep.subr.mxu0 0.0
  %v167 = vand.u32 %v153, 4294901760
  %168 = vmatpush1.msra.mxu0 %v167
  %169 = vmatprep.subr.mxu0 0.0
  %v170 = vand.u32 %v152, 4294901760
  %171 = vmatpush1.msra.mxu0 %v170
  %172 = vmatprep.subr.mxu0 0.0
  %v173 = vand.u32 %v151, 4294901760
  %174 = vmatpush1.msra.mxu0 %v173
  %175 = vmatprep.subr.mxu0 0.0
  %v176 = vand.u32 %v150, 4294901760
  %177 = vmatpush1.msra.mxu0 %v176
  %178 = vmatprep.subr.mxu0 0.0
  %v179 = vand.u32 %v149, 4294901760
  %180 = vmatpush1.msra.mxu0 %v179
  %181 = vmatprep.subr.mxu0 0.0
  %v182 = vand.u32 %v148, 4294901760
  %183 = vmatpush1.msra.mxu0 %v182
  %184 = vmatprep.subr.mxu0 0.0
  %v185 = vand.u32 %v147, 4294901760
  %186 = vmatpush1.msra.mxu0 %v185
  %187 = vmatprep.subr.mxu0 0.0
  %v188 = vand.u32 %v146, 4294901760
  %189 = vmatpush1.msra.mxu0 %v188
  %190 = vmatprep.subr.mxu0 0.0
  %v191 = vand.u32 %v145, 4294901760
  %192 = vmatpush1.msra.mxu0 %v191
  %193 = vmatprep.subr.mxu0 0.0
  %v194 = vand.u32 %v144, 4294901760
  %195 = vmatpush1.msra.mxu0 %v194
  %196 = vmatprep.subr.mxu0 0.0
  %v197 = vand.u32 %v143, 4294901760
  %198 = vmatpush1.msra.mxu0 %v197
  %199 = vmatprep.subr.mxu0 0.0
  %v200 = vand.u32 %v142, 4294901760
  %201 = vmatpush1.msra.mxu0 %v200
  %202 = vmatprep.subr.mxu0 0.0
  %v203 = vand.u32 %v141, 4294901760
  %204 = vmatpush1.msra.mxu0 %v203
  %205 = vmatprep.subr.mxu0 0.0
  %206 = vmatpush2.msra.mxu0 0.0
  %207 = vmatprep.subr.mxu0 0.0
  %208 = vmatpush2.msra.mxu0 0.0
  %209 = vmatprep.subr.mxu0 0.0
  %210 = vmatpush2.msra.mxu0 0.0
  %211 = vmatprep.subr.mxu0 0.0
  %212 = vmatpush2.msra.mxu0 0.0
  %213 = vmatprep.subr.mxu0 0.0
  %214 = vmatpush2.msra.mxu0 0.0
  %215 = vmatprep.subr.mxu0 0.0
  %216 = vmatpush2.msra.mxu0 0.0
  %217 = vmatprep.subr.mxu0 0.0
  %218 = vmatpush2.msra.mxu0 0.0
  %219 = vmatprep.subr.mxu0 0.0
  %220 = vmatpush2.msra.mxu0 0.0
  %221 = vmatprep.subr.mxu0 0.0
  %222 = vmatpush2.msra.mxu0 0.0
  %223 = vmatprep.subr.mxu0 0.0
  %224 = vmatpush2.msra.mxu0 0.0
  %225 = vmatprep.subr.mxu0 0.0
  %226 = vmatpush2.msra.mxu0 0.0
  %227 = vmatprep.subr.mxu0 0.0
  %228 = vmatpush2.msra.mxu0 0.0
  %229 = vmatprep.subr.mxu0 0.0
  %230 = vmatpush2.msra.mxu0 0.0
  %231 = vmatprep.subr.mxu0 0.0
  %232 = vmatpush2.msra.mxu0 0.0
  %233 = vmatprep.subr.mxu0 0.0
  %234 = vmatpush2.msra.mxu0 0.0
  %235 = vmatprep.subr.mxu0 0.0
  %236 = vmatpush2.msra.mxu0 0.0
  %237 = vmatprep.mubr.f32.mxu0 0.0
  %v238 = vand.u32 %v17, 4294901760
  %v239 = vsub.f32 %v17, %v238
  %v240 = vand.u32 %v239, 4294901760
  %v241 = vsub.f32 %v239, %v240
  %v242 = vand.u32 %v241, 4294901760
  %243 = vmatmul.mubr.f32.gmra.mxu0 %v242
  %v244 = vpop.f32.mrf.mxu0
  %v245 = vadd.f32 0.0, %v244
  %v246 = vpop.f32.mrf.mxu0
  %247 = vmatprep.mubr.f32.mxu0 0.0
  %v248 = vand.u32 %v18, 4294901760
  %v249 = vsub.f32 %v18, %v248
  %v250 = vand.u32 %v249, 4294901760
  %v251 = vsub.f32 %v249, %v250
  %v252 = vand.u32 %v251, 4294901760
  %253 = vmatmul.mubr.f32.gmra.mxu0 %v252
  %v254 = vpop.f32.mrf.mxu0
  %v255 = vadd.f32 0.0, %v254
  %v256 = vpop.f32.mrf.mxu0
  %257 = vmatprep.mubr.f32.mxu0 0.0
  %v258 = vand.u32 %v19, 4294901760
  %v259 = vsub.f32 %v19, %v258
  %v260 = vand.u32 %v259, 4294901760
  %v261 = vsub.f32 %v259, %v260
  %v262 = vand.u32 %v261, 4294901760
  %263 = vmatmul.mubr.f32.gmra.mxu0 %v262
  %v264 = vpop.f32.mrf.mxu0
  %v265 = vadd.f32 0.0, %v264
  %v266 = vpop.f32.mrf.mxu0
  %267 = vmatprep.mubr.f32.mxu0 0.0
  %v268 = vand.u32 %v20, 4294901760
  %v269 = vsub.f32 %v20, %v268
  %v270 = vand.u32 %v269, 4294901760
  %v271 = vsub.f32 %v269, %v270
  %v272 = vand.u32 %v271, 4294901760
  %273 = vmatmul.mubr.f32.gmra.mxu0 %v272
  %v274 = vpop.f32.mrf.mxu0
  %v275 = vadd.f32 0.0, %v274
  %v276 = vpop.f32.mrf.mxu0
  %277 = vdwg.mxu0
  %278 = vmatprep.subr.mxu0 0.0
  %v279 = vand.u32 %v156, 4294901760
  %v280 = vsub.f32 %v156, %v279
  %v281 = vand.u32 %v280, 4294901760
  %v282 = vsub.f32 %v280, %v281
  %v283 = vand.u32 %v282, 4294901760
  %284 = vmatpush1.msra.mxu0 %v283
  %285 = vmatprep.subr.mxu0 0.0
  %v286 = vand.u32 %v155, 4294901760
  %v287 = vsub.f32 %v155, %v286
  %v288 = vand.u32 %v287, 4294901760
  %v289 = vsub.f32 %v287, %v288
  %v290 = vand.u32 %v289, 4294901760
  %291 = vmatpush1.msra.mxu0 %v290
  %292 = vmatprep.subr.mxu0 0.0
  %v293 = vand.u32 %v154, 4294901760
  %v294 = vsub.f32 %v154, %v293
  %v295 = vand.u32 %v294, 4294901760
  %v296 = vsub.f32 %v294, %v295
  %v297 = vand.u32 %v296, 4294901760
  %298 = vmatpush1.msra.mxu0 %v297
  %299 = vmatprep.subr.mxu0 0.0
  %v300 = vand.u32 %v153, 4294901760
  %v301 = vsub.f32 %v153, %v300
  %v302 = vand.u32 %v301, 4294901760
  %v303 = vsub.f32 %v301, %v302
  %v304 = vand.u32 %v303, 4294901760
  %305 = vmatpush1.msra.mxu0 %v304
  %306 = vmatprep.subr.mxu0 0.0
  %v307 = vand.u32 %v152, 4294901760
  %v308 = vsub.f32 %v152, %v307
  %v309 = vand.u32 %v308, 4294901760
  %v310 = vsub.f32 %v308, %v309
  %v311 = vand.u32 %v310, 4294901760
  %312 = vmatpush1.msra.mxu0 %v311
  %313 = vmatprep.subr.mxu0 0.0
  %v314 = vand.u32 %v151, 4294901760
  %v315 = vsub.f32 %v151, %v314
  %v316 = vand.u32 %v315, 4294901760
  %v317 = vsub.f32 %v315, %v316
  %v318 = vand.u32 %v317, 4294901760
  %319 = vmatpush1.msra.mxu0 %v318
  %320 = vmatprep.subr.mxu0 0.0
  %v321 = vand.u32 %v150, 4294901760
  %v322 = vsub.f32 %v150, %v321
  %v323 = vand.u32 %v322, 4294901760
  %v324 = vsub.f32 %v322, %v323
  %v325 = vand.u32 %v324, 4294901760
  %326 = vmatpush1.msra.mxu0 %v325
  %327 = vmatprep.subr.mxu0 0.0
  %v328 = vand.u32 %v149, 4294901760
  %v329 = vsub.f32 %v149, %v328
  %v330 = vand.u32 %v329, 4294901760
  %v331 = vsub.f32 %v329, %v330
  %v332 = vand.u32 %v331, 4294901760
  %333 = vmatpush1.msra.mxu0 %v332
  %334 = vmatprep.subr.mxu0 0.0
  %v335 = vand.u32 %v148, 4294901760
  %v336 = vsub.f32 %v148, %v335
  %v337 = vand.u32 %v336, 4294901760
  %v338 = vsub.f32 %v336, %v337
  %v339 = vand.u32 %v338, 4294901760
  %340 = vmatpush1.msra.mxu0 %v339
  %341 = vmatprep.subr.mxu0 0.0
  %v342 = vand.u32 %v147, 4294901760
  %v343 = vsub.f32 %v147, %v342
  %v344 = vand.u32 %v343, 4294901760
  %v345 = vsub.f32 %v343, %v344
  %v346 = vand.u32 %v345, 4294901760
  %347 = vmatpush1.msra.mxu0 %v346
  %348 = vmatprep.subr.mxu0 0.0
  %v349 = vand.u32 %v146, 4294901760
  %v350 = vsub.f32 %v146, %v349
  %v351 = vand.u32 %v350, 4294901760
  %v352 = vsub.f32 %v350, %v351
  %v353 = vand.u32 %v352, 4294901760
  %354 = vmatpush1.msra.mxu0 %v353
  %355 = vmatprep.subr.mxu0 0.0
  %v356 = vand.u32 %v145, 4294901760
  %v357 = vsub.f32 %v145, %v356
  %v358 = vand.u32 %v357, 4294901760
  %v359 = vsub.f32 %v357, %v358
  %v360 = vand.u32 %v359, 4294901760
  %361 = vmatpush1.msra.mxu0 %v360
  %362 = vmatprep.subr.mxu0 0.0
  %v363 = vand.u32 %v144, 4294901760
  %v364 = vsub.f32 %v144, %v363
  %v365 = vand.u32 %v364, 4294901760
  %v366 = vsub.f32 %v364, %v365
  %v367 = vand.u32 %v366, 4294901760
  %368 = vmatpush1.msra.mxu0 %v367
  %369 = vmatprep.subr.mxu0 0.0
  %v370 = vand.u32 %v143, 4294901760
  %v371 = vsub.f32 %v143, %v370
  %v372 = vand.u32 %v371, 4294901760
  %v373 = vsub.f32 %v371, %v372
  %v374 = vand.u32 %v373, 4294901760
  %375 = vmatpush1.msra.mxu0 %v374
  %376 = vmatprep.subr.mxu0 0.0
  %v377 = vand.u32 %v142, 4294901760
  %v378 = vsub.f32 %v142, %v377
  %v379 = vand.u32 %v378, 4294901760
  %v380 = vsub.f32 %v378, %v379
  %v381 = vand.u32 %v380, 4294901760
  %382 = vmatpush1.msra.mxu0 %v381
  %383 = vmatprep.subr.mxu0 0.0
  %v384 = vand.u32 %v141, 4294901760
  %v385 = vsub.f32 %v141, %v384
  %v386 = vand.u32 %v385, 4294901760
  %v387 = vsub.f32 %v385, %v386
  %v388 = vand.u32 %v387, 4294901760
  %389 = vmatpush1.msra.mxu0 %v388
  %390 = vmatprep.subr.mxu0 0.0
  %391 = vmatpush2.msra.mxu0 0.0
  %392 = vmatprep.subr.mxu0 0.0
  %393 = vmatpush2.msra.mxu0 0.0
  %394 = vmatprep.subr.mxu0 0.0
  %395 = vmatpush2.msra.mxu0 0.0
  %396 = vmatprep.subr.mxu0 0.0
  %397 = vmatpush2.msra.mxu0 0.0
  %398 = vmatprep.subr.mxu0 0.0
  %399 = vmatpush2.msra.mxu0 0.0
  %400 = vmatprep.subr.mxu0 0.0
  %401 = vmatpush2.msra.mxu0 0.0
  %402 = vmatprep.subr.mxu0 0.0
  %403 = vmatpush2.msra.mxu0 0.0
  %404 = vmatprep.subr.mxu0 0.0
  %405 = vmatpush2.msra.mxu0 0.0
  %406 = vmatprep.subr.mxu0 0.0
  %407 = vmatpush2.msra.mxu0 0.0
  %408 = vmatprep.subr.mxu0 0.0
  %409 = vmatpush2.msra.mxu0 0.0
  %410 = vmatprep.subr.mxu0 0.0
  %411 = vmatpush2.msra.mxu0 0.0
  %412 = vmatprep.subr.mxu0 0.0
  %413 = vmatpush2.msra.mxu0 0.0
  %414 = vmatprep.subr.mxu0 0.0
  %415 = vmatpush2.msra.mxu0 0.0
  %416 = vmatprep.subr.mxu0 0.0
  %417 = vmatpush2.msra.mxu0 0.0
  %418 = vmatprep.subr.mxu0 0.0
  %419 = vmatpush2.msra.mxu0 0.0
  %420 = vmatprep.subr.mxu0 0.0
  %421 = vmatpush2.msra.mxu0 0.0
  %422 = vmatprep.mubr.f32.mxu0 0.0
  %v423 = vand.u32 %v17, 4294901760
  %424 = vmatmul.mubr.f32.gmra.mxu0 %v423
  %v425 = vpop.f32.mrf.mxu0
  %v426 = vadd.f32 %v245, %v425
  %v427 = vpop.f32.mrf.mxu0
  %428 = vmatprep.mubr.f32.mxu0 0.0
  %v429 = vand.u32 %v18, 4294901760
  %430 = vmatmul.mubr.f32.gmra.mxu0 %v429
  %v431 = vpop.f32.mrf.mxu0
  %v432 = vadd.f32 %v255, %v431
  %v433 = vpop.f32.mrf.mxu0
  %434 = vmatprep.mubr.f32.mxu0 0.0
  %v435 = vand.u32 %v19, 4294901760
  %436 = vmatmul.mubr.f32.gmra.mxu0 %v435
  %v437 = vpop.f32.mrf.mxu0
  %v438 = vadd.f32 %v265, %v437
  %v439 = vpop.f32.mrf.mxu0
  %440 = vmatprep.mubr.f32.mxu0 0.0
  %v441 = vand.u32 %v20, 4294901760
  %442 = vmatmul.mubr.f32.gmra.mxu0 %v441
  %v443 = vpop.f32.mrf.mxu0
  %v444 = vadd.f32 %v275, %v443
  %v445 = vpop.f32.mrf.mxu0
  %446 = vdwg.mxu0
  %447 = vmatprep.subr.mxu0 0.0
  %v448 = vand.u32 %v156, 4294901760
  %v449 = vsub.f32 %v156, %v448
  %450 = vmatpush1.msra.mxu0 %v449
  %451 = vmatprep.subr.mxu0 0.0
  %v452 = vand.u32 %v155, 4294901760
  %v453 = vsub.f32 %v155, %v452
  %454 = vmatpush1.msra.mxu0 %v453
  %455 = vmatprep.subr.mxu0 0.0
  %v456 = vand.u32 %v154, 4294901760
  %v457 = vsub.f32 %v154, %v456
  %458 = vmatpush1.msra.mxu0 %v457
  %459 = vmatprep.subr.mxu0 0.0
  %v460 = vand.u32 %v153, 4294901760
  %v461 = vsub.f32 %v153, %v460
  %462 = vmatpush1.msra.mxu0 %v461
  %463 = vmatprep.subr.mxu0 0.0
  %v464 = vand.u32 %v152, 4294901760
  %v465 = vsub.f32 %v152, %v464
  %466 = vmatpush1.msra.mxu0 %v465
  %467 = vmatprep.subr.mxu0 0.0
  %v468 = vand.u32 %v151, 4294901760
  %v469 = vsub.f32 %v151, %v468
  %470 = vmatpush1.msra.mxu0 %v469
  %471 = vmatprep.subr.mxu0 0.0
  %v472 = vand.u32 %v150, 4294901760
  %v473 = vsub.f32 %v150, %v472
  %474 = vmatpush1.msra.mxu0 %v473
  %475 = vmatprep.subr.mxu0 0.0
  %v476 = vand.u32 %v149, 4294901760
  %v477 = vsub.f32 %v149, %v476
  %478 = vmatpush1.msra.mxu0 %v477
  %479 = vmatprep.subr.mxu0 0.0
  %v480 = vand.u32 %v148, 4294901760
  %v481 = vsub.f32 %v148, %v480
  %482 = vmatpush1.msra.mxu0 %v481
  %483 = vmatprep.subr.mxu0 0.0
  %v484 = vand.u32 %v147, 4294901760
  %v485 = vsub.f32 %v147, %v484
  %486 = vmatpush1.msra.mxu0 %v485
  %487 = vmatprep.subr.mxu0 0.0
  %v488 = vand.u32 %v146, 4294901760
  %v489 = vsub.f32 %v146, %v488
  %490 = vmatpush1.msra.mxu0 %v489
  %491 = vmatprep.subr.mxu0 0.0
  %v492 = vand.u32 %v145, 4294901760
  %v493 = vsub.f32 %v145, %v492
  %494 = vmatpush1.msra.mxu0 %v493
  %495 = vmatprep.subr.mxu0 0.0
  %v496 = vand.u32 %v144, 4294901760
  %v497 = vsub.f32 %v144, %v496
  %498 = vmatpush1.msra.mxu0 %v497
  %499 = vmatprep.subr.mxu0 0.0
  %v500 = vand.u32 %v143, 4294901760
  %v501 = vsub.f32 %v143, %v500
  %502 = vmatpush1.msra.mxu0 %v501
  %503 = vmatprep.subr.mxu0 0.0
  %v504 = vand.u32 %v142, 4294901760
  %v505 = vsub.f32 %v142, %v504
  %506 = vmatpush1.msra.mxu0 %v505
  %507 = vmatprep.subr.mxu0 0.0
  %v508 = vand.u32 %v141, 4294901760
  %v509 = vsub.f32 %v141, %v508
  %510 = vmatpush1.msra.mxu0 %v509
  %511 = vmatprep.subr.mxu0 0.0
  %512 = vmatpush2.msra.mxu0 0.0
  %513 = vmatprep.subr.mxu0 0.0
  %514 = vmatpush2.msra.mxu0 0.0
  %515 = vmatprep.subr.mxu0 0.0
  %516 = vmatpush2.msra.mxu0 0.0
  %517 = vmatprep.subr.mxu0 0.0
  %518 = vmatpush2.msra.mxu0 0.0
  %519 = vmatprep.subr.mxu0 0.0
  %520 = vmatpush2.msra.mxu0 0.0
  %521 = vmatprep.subr.mxu0 0.0
  %522 = vmatpush2.msra.mxu0 0.0
  %523 = vmatprep.subr.mxu0 0.0
  %524 = vmatpush2.msra.mxu0 0.0
  %525 = vmatprep.subr.mxu0 0.0
  %526 = vmatpush2.msra.mxu0 0.0
  %527 = vmatprep.subr.mxu0 0.0
  %528 = vmatpush2.msra.mxu0 0.0
  %529 = vmatprep.subr.mxu0 0.0
  %530 = vmatpush2.msra.mxu0 0.0
  %531 = vmatprep.subr.mxu0 0.0
  %532 = vmatpush2.msra.mxu0 0.0
  %533 = vmatprep.subr.mxu0 0.0
  %534 = vmatpush2.msra.mxu0 0.0
  %535 = vmatprep.subr.mxu0 0.0
  %536 = vmatpush2.msra.mxu0 0.0
  %537 = vmatprep.subr.mxu0 0.0
  %538 = vmatpush2.msra.mxu0 0.0
  %539 = vmatprep.subr.mxu0 0.0
  %540 = vmatpush2.msra.mxu0 0.0
  %541 = vmatprep.subr.mxu0 0.0
  %542 = vmatpush2.msra.mxu0 0.0
  %543 = vmatprep.mubr.f32.mxu0 0.0
  %v544 = vand.u32 %v17, 4294901760
  %v545 = vsub.f32 %v17, %v544
  %546 = vmatmul.mubr.f32.gmra.mxu0 %v545
  %v547 = vpop.f32.mrf.mxu0
  %v548 = vadd.f32 %v426, %v547
  %v549 = vpop.f32.mrf.mxu0
  %550 = vmatprep.mubr.f32.mxu0 0.0
  %v551 = vand.u32 %v18, 4294901760
  %v552 = vsub.f32 %v18, %v551
  %553 = vmatmul.mubr.f32.gmra.mxu0 %v552
  %v554 = vpop.f32.mrf.mxu0
  %v555 = vadd.f32 %v432, %v554
  %v556 = vpop.f32.mrf.mxu0
  %557 = vmatprep.mubr.f32.mxu0 0.0
  %v558 = vand.u32 %v19, 4294901760
  %v559 = vsub.f32 %v19, %v558
  %560 = vmatmul.mubr.f32.gmra.mxu0 %v559
  %v561 = vpop.f32.mrf.mxu0
  %v562 = vadd.f32 %v438, %v561
  %v563 = vpop.f32.mrf.mxu0
  %564 = vmatprep.mubr.f32.mxu0 0.0
  %v565 = vand.u32 %v20, 4294901760
  %v566 = vsub.f32 %v20, %v565
  %567 = vmatmul.mubr.f32.gmra.mxu0 %v566
  %v568 = vpop.f32.mrf.mxu0
  %v569 = vadd.f32 %v444, %v568
  %v570 = vpop.f32.mrf.mxu0
  %571 = vdwg.mxu0
  %572 = vmatprep.subr.mxu0 0.0
  %v573 = vand.u32 %v156, 4294901760
  %574 = vmatpush1.msra.mxu0 %v573
  %575 = vmatprep.subr.mxu0 0.0
  %v576 = vand.u32 %v155, 4294901760
  %577 = vmatpush1.msra.mxu0 %v576
  %578 = vmatprep.subr.mxu0 0.0
  %v579 = vand.u32 %v154, 4294901760
  %580 = vmatpush1.msra.mxu0 %v579
  %581 = vmatprep.subr.mxu0 0.0
  %v582 = vand.u32 %v153, 4294901760
  %583 = vmatpush1.msra.mxu0 %v582
  %584 = vmatprep.subr.mxu0 0.0
  %v585 = vand.u32 %v152, 4294901760
  %586 = vmatpush1.msra.mxu0 %v585
  %587 = vmatprep.subr.mxu0 0.0
  %v588 = vand.u32 %v151, 4294901760
  %589 = vmatpush1.msra.mxu0 %v588
  %590 = vmatprep.subr.mxu0 0.0
  %v591 = vand.u32 %v150, 4294901760
  %592 = vmatpush1.msra.mxu0 %v591
  %593 = vmatprep.subr.mxu0 0.0
  %v594 = vand.u32 %v149, 4294901760
  %595 = vmatpush1.msra.mxu0 %v594
  %596 = vmatprep.subr.mxu0 0.0
  %v597 = vand.u32 %v148, 4294901760
  %598 = vmatpush1.msra.mxu0 %v597
  %599 = vmatprep.subr.mxu0 0.0
  %v600 = vand.u32 %v147, 4294901760
  %601 = vmatpush1.msra.mxu0 %v600
  %602 = vmatprep.subr.mxu0 0.0
  %v603 = vand.u32 %v146, 4294901760
  %604 = vmatpush1.msra.mxu0 %v603
  %605 = vmatprep.subr.mxu0 0.0
  %v606 = vand.u32 %v145, 4294901760
  %607 = vmatpush1.msra.mxu0 %v606
  %608 = vmatprep.subr.mxu0 0.0
  %v609 = vand.u32 %v144, 4294901760
  %610 = vmatpush1.msra.mxu0 %v609
  %611 = vmatprep.subr.mxu0 0.0
  %v612 = vand.u32 %v143, 4294901760
  %613 = vmatpush1.msra.mxu0 %v612
  %614 = vmatprep.subr.mxu0 0.0
  %v615 = vand.u32 %v142, 4294901760
  %616 = vmatpush1.msra.mxu0 %v615
  %617 = vmatprep.subr.mxu0 0.0
  %v618 = vand.u32 %v141, 4294901760
  %619 = vmatpush1.msra.mxu0 %v618
  %620 = vmatprep.subr.mxu0 0.0
  %621 = vmatpush2.msra.mxu0 0.0
  %622 = vmatprep.subr.mxu0 0.0
  %623 = vmatpush2.msra.mxu0 0.0
  %624 = vmatprep.subr.mxu0 0.0
  %625 = vmatpush2.msra.mxu0 0.0
  %626 = vmatprep.subr.mxu0 0.0
  %627 = vmatpush2.msra.mxu0 0.0
  %628 = vmatprep.subr.mxu0 0.0
  %629 = vmatpush2.msra.mxu0 0.0
  %630 = vmatprep.subr.mxu0 0.0
  %631 = vmatpush2.msra.mxu0 0.0
  %632 = vmatprep.subr.mxu0 0.0
  %633 = vmatpush2.msra.mxu0 0.0
  %634 = vmatprep.subr.mxu0 0.0
  %635 = vmatpush2.msra.mxu0 0.0
  %636 = vmatprep.subr.mxu0 0.0
  %637 = vmatpush2.msra.mxu0 0.0
  %638 = vmatprep.subr.mxu0 0.0
  %639 = vmatpush2.msra.mxu0 0.0
  %640 = vmatprep.subr.mxu0 0.0
  %641 = vmatpush2.msra.mxu0 0.0
  %642 = vmatprep.subr.mxu0 0.0
  %643 = vmatpush2.msra.mxu0 0.0
  %644 = vmatprep.subr.mxu0 0.0
  %645 = vmatpush2.msra.mxu0 0.0
  %646 = vmatprep.subr.mxu0 0.0
  %647 = vmatpush2.msra.mxu0 0.0
  %648 = vmatprep.subr.mxu0 0.0
  %649 = vmatpush2.msra.mxu0 0.0
  %650 = vmatprep.subr.mxu0 0.0
  %651 = vmatpush2.msra.mxu0 0.0
  %652 = vmatprep.mubr.f32.mxu0 0.0
  %v653 = vand.u32 %v17, 4294901760
  %v654 = vsub.f32 %v17, %v653
  %v655 = vand.u32 %v654, 4294901760
  %656 = vmatmul.mubr.f32.gmra.mxu0 %v655
  %v657 = vpop.f32.mrf.mxu0
  %v658 = vadd.f32 %v548, %v657
  %v659 = vpop.f32.mrf.mxu0
  %660 = vmatprep.mubr.f32.mxu0 0.0
  %v661 = vand.u32 %v18, 4294901760
  %v662 = vsub.f32 %v18, %v661
  %v663 = vand.u32 %v662, 4294901760
  %664 = vmatmul.mubr.f32.gmra.mxu0 %v663
  %v665 = vpop.f32.mrf.mxu0
  %v666 = vadd.f32 %v555, %v665
  %v667 = vpop.f32.mrf.mxu0
  %668 = vmatprep.mubr.f32.mxu0 0.0
  %v669 = vand.u32 %v19, 4294901760
  %v670 = vsub.f32 %v19, %v669
  %v671 = vand.u32 %v670, 4294901760
  %672 = vmatmul.mubr.f32.gmra.mxu0 %v671
  %v673 = vpop.f32.mrf.mxu0
  %v674 = vadd.f32 %v562, %v673
  %v675 = vpop.f32.mrf.mxu0
  %676 = vmatprep.mubr.f32.mxu0 0.0
  %v677 = vand.u32 %v20, 4294901760
  %v678 = vsub.f32 %v20, %v677
  %v679 = vand.u32 %v678, 4294901760
  %680 = vmatmul.mubr.f32.gmra.mxu0 %v679
  %v681 = vpop.f32.mrf.mxu0
  %v682 = vadd.f32 %v569, %v681
  %v683 = vpop.f32.mrf.mxu0
  %684 = vdwg.mxu0
  %685 = vmatprep.subr.mxu0 0.0
  %v686 = vand.u32 %v156, 4294901760
  %v687 = vsub.f32 %v156, %v686
  %v688 = vand.u32 %v687, 4294901760
  %689 = vmatpush1.msra.mxu0 %v688
  %690 = vmatprep.subr.mxu0 0.0
  %v691 = vand.u32 %v155, 4294901760
  %v692 = vsub.f32 %v155, %v691
  %v693 = vand.u32 %v692, 4294901760
  %694 = vmatpush1.msra.mxu0 %v693
  %695 = vmatprep.subr.mxu0 0.0
  %v696 = vand.u32 %v154, 4294901760
  %v697 = vsub.f32 %v154, %v696
  %v698 = vand.u32 %v697, 4294901760
  %699 = vmatpush1.msra.mxu0 %v698
  %700 = vmatprep.subr.mxu0 0.0
  %v701 = vand.u32 %v153, 4294901760
  %v702 = vsub.f32 %v153, %v701
  %v703 = vand.u32 %v702, 4294901760
  %704 = vmatpush1.msra.mxu0 %v703
  %705 = vmatprep.subr.mxu0 0.0
  %v706 = vand.u32 %v152, 4294901760
  %v707 = vsub.f32 %v152, %v706
  %v708 = vand.u32 %v707, 4294901760
  %709 = vmatpush1.msra.mxu0 %v708
  %710 = vmatprep.subr.mxu0 0.0
  %v711 = vand.u32 %v151, 4294901760
  %v712 = vsub.f32 %v151, %v711
  %v713 = vand.u32 %v712, 4294901760
  %714 = vmatpush1.msra.mxu0 %v713
  %715 = vmatprep.subr.mxu0 0.0
  %v716 = vand.u32 %v150, 4294901760
  %v717 = vsub.f32 %v150, %v716
  %v718 = vand.u32 %v717, 4294901760
  %719 = vmatpush1.msra.mxu0 %v718
  %720 = vmatprep.subr.mxu0 0.0
  %v721 = vand.u32 %v149, 4294901760
  %v722 = vsub.f32 %v149, %v721
  %v723 = vand.u32 %v722, 4294901760
  %724 = vmatpush1.msra.mxu0 %v723
  %725 = vmatprep.subr.mxu0 0.0
  %v726 = vand.u32 %v148, 4294901760
  %v727 = vsub.f32 %v148, %v726
  %v728 = vand.u32 %v727, 4294901760
  %729 = vmatpush1.msra.mxu0 %v728
  %730 = vmatprep.subr.mxu0 0.0
  %v731 = vand.u32 %v147, 4294901760
  %v732 = vsub.f32 %v147, %v731
  %v733 = vand.u32 %v732, 4294901760
  %734 = vmatpush1.msra.mxu0 %v733
  %735 = vmatprep.subr.mxu0 0.0
  %v736 = vand.u32 %v146, 4294901760
  %v737 = vsub.f32 %v146, %v736
  %v738 = vand.u32 %v737, 4294901760
  %739 = vmatpush1.msra.mxu0 %v738
  %740 = vmatprep.subr.mxu0 0.0
  %v741 = vand.u32 %v145, 4294901760
  %v742 = vsub.f32 %v145, %v741
  %v743 = vand.u32 %v742, 4294901760
  %744 = vmatpush1.msra.mxu0 %v743
  %745 = vmatprep.subr.mxu0 0.0
  %v746 = vand.u32 %v144, 4294901760
  %v747 = vsub.f32 %v144, %v746
  %v748 = vand.u32 %v747, 4294901760
  %749 = vmatpush1.msra.mxu0 %v748
  %750 = vmatprep.subr.mxu0 0.0
  %v751 = vand.u32 %v143, 4294901760
  %v752 = vsub.f32 %v143, %v751
  %v753 = vand.u32 %v752, 4294901760
  %754 = vmatpush1.msra.mxu0 %v753
  %755 = vmatprep.subr.mxu0 0.0
  %v756 = vand.u32 %v142, 4294901760
  %v757 = vsub.f32 %v142, %v756
  %v758 = vand.u32 %v757, 4294901760
  %759 = vmatpush1.msra.mxu0 %v758
  %760 = vmatprep.subr.mxu0 0.0
  %v761 = vand.u32 %v141, 4294901760
  %v762 = vsub.f32 %v141, %v761
  %v763 = vand.u32 %v762, 4294901760
  %764 = vmatpush1.msra.mxu0 %v763
  %765 = vmatprep.subr.mxu0 0.0
  %766 = vmatpush2.msra.mxu0 0.0
  %767 = vmatprep.subr.mxu0 0.0
  %768 = vmatpush2.msra.mxu0 0.0
  %769 = vmatprep.subr.mxu0 0.0
  %770 = vmatpush2.msra.mxu0 0.0
  %771 = vmatprep.subr.mxu0 0.0
  %772 = vmatpush2.msra.mxu0 0.0
  %773 = vmatprep.subr.mxu0 0.0
  %774 = vmatpush2.msra.mxu0 0.0
  %775 = vmatprep.subr.mxu0 0.0
  %776 = vmatpush2.msra.mxu0 0.0
  %777 = vmatprep.subr.mxu0 0.0
  %778 = vmatpush2.msra.mxu0 0.0
  %779 = vmatprep.subr.mxu0 0.0
  %780 = vmatpush2.msra.mxu0 0.0
  %781 = vmatprep.subr.mxu0 0.0
  %782 = vmatpush2.msra.mxu0 0.0
  %783 = vmatprep.subr.mxu0 0.0
  %784 = vmatpush2.msra.mxu0 0.0
  %785 = vmatprep.subr.mxu0 0.0
  %786 = vmatpush2.msra.mxu0 0.0
  %787 = vmatprep.subr.mxu0 0.0
  %788 = vmatpush2.msra.mxu0 0.0
  %789 = vmatprep.subr.mxu0 0.0
  %790 = vmatpush2.msra.mxu0 0.0
  %791 = vmatprep.subr.mxu0 0.0
  %792 = vmatpush2.msra.mxu0 0.0
  %793 = vmatprep.subr.mxu0 0.0
  %794 = vmatpush2.msra.mxu0 0.0
  %795 = vmatprep.subr.mxu0 0.0
  %796 = vmatpush2.msra.mxu0 0.0
  %797 = vmatprep.mubr.f32.mxu0 0.0
  %v798 = vand.u32 %v17, 4294901760
  %799 = vmatmul.mubr.f32.gmra.mxu0 %v798
  %v800 = vpop.f32.mrf.mxu0
  %v801 = vadd.f32 %v658, %v800
  %v802 = vpop.f32.mrf.mxu0
  %803 = vmatprep.mubr.f32.mxu0 0.0
  %v804 = vand.u32 %v18, 4294901760
  %805 = vmatmul.mubr.f32.gmra.mxu0 %v804
  %v806 = vpop.f32.mrf.mxu0
  %v807 = vadd.f32 %v666, %v806
  %v808 = vpop.f32.mrf.mxu0
  %809 = vmatprep.mubr.f32.mxu0 0.0
  %v810 = vand.u32 %v19, 4294901760
  %811 = vmatmul.mubr.f32.gmra.mxu0 %v810
  %v812 = vpop.f32.mrf.mxu0
  %v813 = vadd.f32 %v674, %v812
  %v814 = vpop.f32.mrf.mxu0
  %815 = vmatprep.mubr.f32.mxu0 0.0
  %v816 = vand.u32 %v20, 4294901760
  %817 = vmatmul.mubr.f32.gmra.mxu0 %v816
  %v818 = vpop.f32.mrf.mxu0
  %v819 = vadd.f32 %v682, %v818
  %v820 = vpop.f32.mrf.mxu0
  %821 = vdwg.mxu0
  %822 = vmatprep.subr.mxu0 0.0
  %v823 = vand.u32 %v156, 4294901760
  %824 = vmatpush1.msra.mxu0 %v823
  %825 = vmatprep.subr.mxu0 0.0
  %v826 = vand.u32 %v155, 4294901760
  %827 = vmatpush1.msra.mxu0 %v826
  %828 = vmatprep.subr.mxu0 0.0
  %v829 = vand.u32 %v154, 4294901760
  %830 = vmatpush1.msra.mxu0 %v829
  %831 = vmatprep.subr.mxu0 0.0
  %v832 = vand.u32 %v153, 4294901760
  %833 = vmatpush1.msra.mxu0 %v832
  %834 = vmatprep.subr.mxu0 0.0
  %v835 = vand.u32 %v152, 4294901760
  %836 = vmatpush1.msra.mxu0 %v835
  %837 = vmatprep.subr.mxu0 0.0
  %v838 = vand.u32 %v151, 4294901760
  %839 = vmatpush1.msra.mxu0 %v838
  %840 = vmatprep.subr.mxu0 0.0
  %v841 = vand.u32 %v150, 4294901760
  %842 = vmatpush1.msra.mxu0 %v841
  %843 = vmatprep.subr.mxu0 0.0
  %v844 = vand.u32 %v149, 4294901760
  %845 = vmatpush1.msra.mxu0 %v844
  %846 = vmatprep.subr.mxu0 0.0
  %v847 = vand.u32 %v148, 4294901760
  %848 = vmatpush1.msra.mxu0 %v847
  %849 = vmatprep.subr.mxu0 0.0
  %v850 = vand.u32 %v147, 4294901760
  %851 = vmatpush1.msra.mxu0 %v850
  %852 = vmatprep.subr.mxu0 0.0
  %v853 = vand.u32 %v146, 4294901760
  %854 = vmatpush1.msra.mxu0 %v853
  %855 = vmatprep.subr.mxu0 0.0
  %v856 = vand.u32 %v145, 4294901760
  %857 = vmatpush1.msra.mxu0 %v856
  %858 = vmatprep.subr.mxu0 0.0
  %v859 = vand.u32 %v144, 4294901760
  %860 = vmatpush1.msra.mxu0 %v859
  %861 = vmatprep.subr.mxu0 0.0
  %v862 = vand.u32 %v143, 4294901760
  %863 = vmatpush1.msra.mxu0 %v862
  %864 = vmatprep.subr.mxu0 0.0
  %v865 = vand.u32 %v142, 4294901760
  %866 = vmatpush1.msra.mxu0 %v865
  %867 = vmatprep.subr.mxu0 0.0
  %v868 = vand.u32 %v141, 4294901760
  %869 = vmatpush1.msra.mxu0 %v868
  %870 = vmatprep.subr.mxu0 0.0
  %871 = vmatpush2.msra.mxu0 0.0
  %872 = vmatprep.subr.mxu0 0.0
  %873 = vmatpush2.msra.mxu0 0.0
  %874 = vmatprep.subr.mxu0 0.0
  %875 = vmatpush2.msra.mxu0 0.0
  %876 = vmatprep.subr.mxu0 0.0
  %877 = vmatpush2.msra.mxu0 0.0
  %878 = vmatprep.subr.mxu0 0.0
  %879 = vmatpush2.msra.mxu0 0.0
  %880 = vmatprep.subr.mxu0 0.0
  %881 = vmatpush2.msra.mxu0 0.0
  %882 = vmatprep.subr.mxu0 0.0
  %883 = vmatpush2.msra.mxu0 0.0
  %884 = vmatprep.subr.mxu0 0.0
  %885 = vmatpush2.msra.mxu0 0.0
  %886 = vmatprep.subr.mxu0 0.0
  %887 = vmatpush2.msra.mxu0 0.0
  %888 = vmatprep.subr.mxu0 0.0
  %889 = vmatpush2.msra.mxu0 0.0
  %890 = vmatprep.subr.mxu0 0.0
  %891 = vmatpush2.msra.mxu0 0.0
  %892 = vmatprep.subr.mxu0 0.0
  %893 = vmatpush2.msra.mxu0 0.0
  %894 = vmatprep.subr.mxu0 0.0
  %895 = vmatpush2.msra.mxu0 0.0
  %896 = vmatprep.subr.mxu0 0.0
  %897 = vmatpush2.msra.mxu0 0.0
  %898 = vmatprep.subr.mxu0 0.0
  %899 = vmatpush2.msra.mxu0 0.0
  %900 = vmatprep.subr.mxu0 0.0
  %901 = vmatpush2.msra.mxu0 0.0
  %902 = vmatprep.mubr.f32.mxu0 0.0
  %v903 = vand.u32 %v17, 4294901760
  %904 = vmatmul.mubr.f32.gmra.mxu0 %v903
  %v905 = vpop.f32.mrf.mxu0
  %v906 = vadd.f32 %v801, %v905
  %v907 = vpop.f32.mrf.mxu0
  %908 = vmatprep.mubr.f32.mxu0 0.0
  %v909 = vand.u32 %v18, 4294901760
  %910 = vmatmul.mubr.f32.gmra.mxu0 %v909
  %v911 = vpop.f32.mrf.mxu0
  %v912 = vadd.f32 %v807, %v911
  %v913 = vpop.f32.mrf.mxu0
  %914 = vmatprep.mubr.f32.mxu0 0.0
  %v915 = vand.u32 %v19, 4294901760
  %916 = vmatmul.mubr.f32.gmra.mxu0 %v915
  %v917 = vpop.f32.mrf.mxu0
  %v918 = vadd.f32 %v813, %v917
  %v919 = vpop.f32.mrf.mxu0
  %920 = vmatprep.mubr.f32.mxu0 0.0
  %v921 = vand.u32 %v20, 4294901760
  %922 = vmatmul.mubr.f32.gmra.mxu0 %v921
  %v923 = vpop.f32.mrf.mxu0
  %v924 = vadd.f32 %v819, %v923
  %v925 = vpop.f32.mrf.mxu0
  %926 = vdwg.mxu0
  %927 = vmatprep.subr.mxu0 0.0
  %v928 = vand.u32 %v140, 4294901760
  %929 = vmatpush1.msra.mxu0 %v928
  %930 = vmatprep.subr.mxu0 0.0
  %v931 = vand.u32 %v139, 4294901760
  %932 = vmatpush1.msra.mxu0 %v931
  %933 = vmatprep.subr.mxu0 0.0
  %v934 = vand.u32 %v138, 4294901760
  %935 = vmatpush1.msra.mxu0 %v934
  %936 = vmatprep.subr.mxu0 0.0
  %v937 = vand.u32 %v137, 4294901760
  %938 = vmatpush1.msra.mxu0 %v937
  %939 = vmatprep.subr.mxu0 0.0
  %v940 = vand.u32 %v136, 4294901760
  %941 = vmatpush1.msra.mxu0 %v940
  %942 = vmatprep.subr.mxu0 0.0
  %v943 = vand.u32 %v135, 4294901760
  %944 = vmatpush1.msra.mxu0 %v943
  %945 = vmatprep.subr.mxu0 0.0
  %v946 = vand.u32 %v134, 4294901760
  %947 = vmatpush1.msra.mxu0 %v946
  %948 = vmatprep.subr.mxu0 0.0
  %v949 = vand.u32 %v133, 4294901760
  %950 = vmatpush1.msra.mxu0 %v949
  %951 = vmatprep.subr.mxu0 0.0
  %v952 = vand.u32 %v132, 4294901760
  %953 = vmatpush1.msra.mxu0 %v952
  %954 = vmatprep.subr.mxu0 0.0
  %v955 = vand.u32 %v131, 4294901760
  %956 = vmatpush1.msra.mxu0 %v955
  %957 = vmatprep.subr.mxu0 0.0
  %v958 = vand.u32 %v130, 4294901760
  %959 = vmatpush1.msra.mxu0 %v958
  %960 = vmatprep.subr.mxu0 0.0
  %v961 = vand.u32 %v129, 4294901760
  %962 = vmatpush1.msra.mxu0 %v961
  %963 = vmatprep.subr.mxu0 0.0
  %v964 = vand.u32 %v128, 4294901760
  %965 = vmatpush1.msra.mxu0 %v964
  %966 = vmatprep.subr.mxu0 0.0
  %v967 = vand.u32 %v127, 4294901760
  %968 = vmatpush1.msra.mxu0 %v967
  %969 = vmatprep.subr.mxu0 0.0
  %v970 = vand.u32 %v126, 4294901760
  %971 = vmatpush1.msra.mxu0 %v970
  %972 = vmatprep.subr.mxu0 0.0
  %v973 = vand.u32 %v125, 4294901760
  %974 = vmatpush1.msra.mxu0 %v973
  %975 = vmatprep.subr.mxu0 0.0
  %976 = vmatpush2.msra.mxu0 0.0
  %977 = vmatprep.subr.mxu0 0.0
  %978 = vmatpush2.msra.mxu0 0.0
  %979 = vmatprep.subr.mxu0 0.0
  %980 = vmatpush2.msra.mxu0 0.0
  %981 = vmatprep.subr.mxu0 0.0
  %982 = vmatpush2.msra.mxu0 0.0
  %983 = vmatprep.subr.mxu0 0.0
  %984 = vmatpush2.msra.mxu0 0.0
  %985 = vmatprep.subr.mxu0 0.0
  %986 = vmatpush2.msra.mxu0 0.0
  %987 = vmatprep.subr.mxu0 0.0
  %988 = vmatpush2.msra.mxu0 0.0
  %989 = vmatprep.subr.mxu0 0.0
  %990 = vmatpush2.msra.mxu0 0.0
  %991 = vmatprep.subr.mxu0 0.0
  %992 = vmatpush2.msra.mxu0 0.0
  %993 = vmatprep.subr.mxu0 0.0
  %994 = vmatpush2.msra.mxu0 0.0
  %995 = vmatprep.subr.mxu0 0.0
  %996 = vmatpush2.msra.mxu0 0.0
  %997 = vmatprep.subr.mxu0 0.0
  %998 = vmatpush2.msra.mxu0 0.0
  %999 = vmatprep.subr.mxu0 0.0
  %1000 = vmatpush2.msra.mxu0 0.0
  %1001 = vmatprep.subr.mxu0 0.0
  %1002 = vmatpush2.msra.mxu0 0.0
  %1003 = vmatprep.subr.mxu0 0.0
  %1004 = vmatpush2.msra.mxu0 0.0
  %1005 = vmatprep.subr.mxu0 0.0
  %1006 = vmatpush2.msra.mxu0 0.0
  %1007 = vmatprep.mubr.f32.mxu0 0.0
  %v1008 = vand.u32 %v109, 4294901760
  %v1009 = vsub.f32 %v109, %v1008
  %v1010 = vand.u32 %v1009, 4294901760
  %v1011 = vsub.f32 %v1009, %v1010
  %v1012 = vand.u32 %v1011, 4294901760
  %1013 = vmatmul.mubr.f32.gmra.mxu0 %v1012
  %v1014 = vpop.f32.mrf.mxu0
  %v1015 = vadd.f32 %v906, %v1014
  %v1016 = vpop.f32.mrf.mxu0
  %1017 = vmatprep.mubr.f32.mxu0 0.0
  %v1018 = vand.u32 %v110, 4294901760
  %v1019 = vsub.f32 %v110, %v1018
  %v1020 = vand.u32 %v1019, 4294901760
  %v1021 = vsub.f32 %v1019, %v1020
  %v1022 = vand.u32 %v1021, 4294901760
  %1023 = vmatmul.mubr.f32.gmra.mxu0 %v1022
  %v1024 = vpop.f32.mrf.mxu0
  %v1025 = vadd.f32 %v912, %v1024
  %v1026 = vpop.f32.mrf.mxu0
  %1027 = vmatprep.mubr.f32.mxu0 0.0
  %v1028 = vand.u32 %v111, 4294901760
  %v1029 = vsub.f32 %v111, %v1028
  %v1030 = vand.u32 %v1029, 4294901760
  %v1031 = vsub.f32 %v1029, %v1030
  %v1032 = vand.u32 %v1031, 4294901760
  %1033 = vmatmul.mubr.f32.gmra.mxu0 %v1032
  %v1034 = vpop.f32.mrf.mxu0
  %v1035 = vadd.f32 %v918, %v1034
  %v1036 = vpop.f32.mrf.mxu0
  %1037 = vmatprep.mubr.f32.mxu0 0.0
  %v1038 = vand.u32 %v112, 4294901760
  %v1039 = vsub.f32 %v112, %v1038
  %v1040 = vand.u32 %v1039, 4294901760
  %v1041 = vsub.f32 %v1039, %v1040
  %v1042 = vand.u32 %v1041, 4294901760
  %1043 = vmatmul.mubr.f32.gmra.mxu0 %v1042
  %v1044 = vpop.f32.mrf.mxu0
  %v1045 = vadd.f32 %v924, %v1044
  %v1046 = vpop.f32.mrf.mxu0
  %1047 = vdwg.mxu0
  %1048 = vmatprep.subr.mxu0 0.0
  %v1049 = vand.u32 %v140, 4294901760
  %v1050 = vsub.f32 %v140, %v1049
  %v1051 = vand.u32 %v1050, 4294901760
  %v1052 = vsub.f32 %v1050, %v1051
  %v1053 = vand.u32 %v1052, 4294901760
  %1054 = vmatpush1.msra.mxu0 %v1053
  %1055 = vmatprep.subr.mxu0 0.0
  %v1056 = vand.u32 %v139, 4294901760
  %v1057 = vsub.f32 %v139, %v1056
  %v1058 = vand.u32 %v1057, 4294901760
  %v1059 = vsub.f32 %v1057, %v1058
  %v1060 = vand.u32 %v1059, 4294901760
  %1061 = vmatpush1.msra.mxu0 %v1060
  %1062 = vmatprep.subr.mxu0 0.0
  %v1063 = vand.u32 %v138, 4294901760
  %v1064 = vsub.f32 %v138, %v1063
  %v1065 = vand.u32 %v1064, 4294901760
  %v1066 = vsub.f32 %v1064, %v1065
  %v1067 = vand.u32 %v1066, 4294901760
  %1068 = vmatpush1.msra.mxu0 %v1067
  %1069 = vmatprep.subr.mxu0 0.0
  %v1070 = vand.u32 %v137, 4294901760
  %v1071 = vsub.f32 %v137, %v1070
  %v1072 = vand.u32 %v1071, 4294901760
  %v1073 = vsub.f32 %v1071, %v1072
  %v1074 = vand.u32 %v1073, 4294901760
  %1075 = vmatpush1.msra.mxu0 %v1074
  %1076 = vmatprep.subr.mxu0 0.0
  %v1077 = vand.u32 %v136, 4294901760
  %v1078 = vsub.f32 %v136, %v1077
  %v1079 = vand.u32 %v1078, 4294901760
  %v1080 = vsub.f32 %v1078, %v1079
  %v1081 = vand.u32 %v1080, 4294901760
  %1082 = vmatpush1.msra.mxu0 %v1081
  %1083 = vmatprep.subr.mxu0 0.0
  %v1084 = vand.u32 %v135, 4294901760
  %v1085 = vsub.f32 %v135, %v1084
  %v1086 = vand.u32 %v1085, 4294901760
  %v1087 = vsub.f32 %v1085, %v1086
  %v1088 = vand.u32 %v1087, 4294901760
  %1089 = vmatpush1.msra.mxu0 %v1088
  %1090 = vmatprep.subr.mxu0 0.0
  %v1091 = vand.u32 %v134, 4294901760
  %v1092 = vsub.f32 %v134, %v1091
  %v1093 = vand.u32 %v1092, 4294901760
  %v1094 = vsub.f32 %v1092, %v1093
  %v1095 = vand.u32 %v1094, 4294901760
  %1096 = vmatpush1.msra.mxu0 %v1095
  %1097 = vmatprep.subr.mxu0 0.0
  %v1098 = vand.u32 %v133, 4294901760
  %v1099 = vsub.f32 %v133, %v1098
  %v1100 = vand.u32 %v1099, 4294901760
  %v1101 = vsub.f32 %v1099, %v1100
  %v1102 = vand.u32 %v1101, 4294901760
  %1103 = vmatpush1.msra.mxu0 %v1102
  %1104 = vmatprep.subr.mxu0 0.0
  %v1105 = vand.u32 %v132, 4294901760
  %v1106 = vsub.f32 %v132, %v1105
  %v1107 = vand.u32 %v1106, 4294901760
  %v1108 = vsub.f32 %v1106, %v1107
  %v1109 = vand.u32 %v1108, 4294901760
  %1110 = vmatpush1.msra.mxu0 %v1109
  %1111 = vmatprep.subr.mxu0 0.0
  %v1112 = vand.u32 %v131, 4294901760
  %v1113 = vsub.f32 %v131, %v1112
  %v1114 = vand.u32 %v1113, 4294901760
  %v1115 = vsub.f32 %v1113, %v1114
  %v1116 = vand.u32 %v1115, 4294901760
  %1117 = vmatpush1.msra.mxu0 %v1116
  %1118 = vmatprep.subr.mxu0 0.0
  %v1119 = vand.u32 %v130, 4294901760
  %v1120 = vsub.f32 %v130, %v1119
  %v1121 = vand.u32 %v1120, 4294901760
  %v1122 = vsub.f32 %v1120, %v1121
  %v1123 = vand.u32 %v1122, 4294901760
  %1124 = vmatpush1.msra.mxu0 %v1123
  %1125 = vmatprep.subr.mxu0 0.0
  %v1126 = vand.u32 %v129, 4294901760
  %v1127 = vsub.f32 %v129, %v1126
  %v1128 = vand.u32 %v1127, 4294901760
  %v1129 = vsub.f32 %v1127, %v1128
  %v1130 = vand.u32 %v1129, 4294901760
  %1131 = vmatpush1.msra.mxu0 %v1130
  %1132 = vmatprep.subr.mxu0 0.0
  %v1133 = vand.u32 %v128, 4294901760
  %v1134 = vsub.f32 %v128, %v1133
  %v1135 = vand.u32 %v1134, 4294901760
  %v1136 = vsub.f32 %v1134, %v1135
  %v1137 = vand.u32 %v1136, 4294901760
  %1138 = vmatpush1.msra.mxu0 %v1137
  %1139 = vmatprep.subr.mxu0 0.0
  %v1140 = vand.u32 %v127, 4294901760
  %v1141 = vsub.f32 %v127, %v1140
  %v1142 = vand.u32 %v1141, 4294901760
  %v1143 = vsub.f32 %v1141, %v1142
  %v1144 = vand.u32 %v1143, 4294901760
  %1145 = vmatpush1.msra.mxu0 %v1144
  %1146 = vmatprep.subr.mxu0 0.0
  %v1147 = vand.u32 %v126, 4294901760
  %v1148 = vsub.f32 %v126, %v1147
  %v1149 = vand.u32 %v1148, 4294901760
  %v1150 = vsub.f32 %v1148, %v1149
  %v1151 = vand.u32 %v1150, 4294901760
  %1152 = vmatpush1.msra.mxu0 %v1151
  %1153 = vmatprep.subr.mxu0 0.0
  %v1154 = vand.u32 %v125, 4294901760
  %v1155 = vsub.f32 %v125, %v1154
  %v1156 = vand.u32 %v1155, 4294901760
  %v1157 = vsub.f32 %v1155, %v1156
  %v1158 = vand.u32 %v1157, 4294901760
  %1159 = vmatpush1.msra.mxu0 %v1158
  %1160 = vmatprep.subr.mxu0 0.0
  %1161 = vmatpush2.msra.mxu0 0.0
  %1162 = vmatprep.subr.mxu0 0.0
  %1163 = vmatpush2.msra.mxu0 0.0
  %1164 = vmatprep.subr.mxu0 0.0
  %1165 = vmatpush2.msra.mxu0 0.0
  %1166 = vmatprep.subr.mxu0 0.0
  %1167 = vmatpush2.msra.mxu0 0.0
  %1168 = vmatprep.subr.mxu0 0.0
  %1169 = vmatpush2.msra.mxu0 0.0
  %1170 = vmatprep.subr.mxu0 0.0
  %1171 = vmatpush2.msra.mxu0 0.0
  %1172 = vmatprep.subr.mxu0 0.0
  %1173 = vmatpush2.msra.mxu0 0.0
  %1174 = vmatprep.subr.mxu0 0.0
  %1175 = vmatpush2.msra.mxu0 0.0
  %1176 = vmatprep.subr.mxu0 0.0
  %1177 = vmatpush2.msra.mxu0 0.0
  %1178 = vmatprep.subr.mxu0 0.0
  %1179 = vmatpush2.msra.mxu0 0.0
  %1180 = vmatprep.subr.mxu0 0.0
  %1181 = vmatpush2.msra.mxu0 0.0
  %1182 = vmatprep.subr.mxu0 0.0
  %1183 = vmatpush2.msra.mxu0 0.0
  %1184 = vmatprep.subr.mxu0 0.0
  %1185 = vmatpush2.msra.mxu0 0.0
  %1186 = vmatprep.subr.mxu0 0.0
  %1187 = vmatpush2.msra.mxu0 0.0
  %1188 = vmatprep.subr.mxu0 0.0
  %1189 = vmatpush2.msra.mxu0 0.0
  %1190 = vmatprep.subr.mxu0 0.0
  %1191 = vmatpush2.msra.mxu0 0.0
  %1192 = vmatprep.mubr.f32.mxu0 0.0
  %v1193 = vand.u32 %v109, 4294901760
  %1194 = vmatmul.mubr.f32.gmra.mxu0 %v1193
  %v1195 = vpop.f32.mrf.mxu0
  %v1196 = vadd.f32 %v1015, %v1195
  %v1197 = vpop.f32.mrf.mxu0
  %1198 = vmatprep.mubr.f32.mxu0 0.0
  %v1199 = vand.u32 %v110, 4294901760
  %1200 = vmatmul.mubr.f32.gmra.mxu0 %v1199
  %v1201 = vpop.f32.mrf.mxu0
  %v1202 = vadd.f32 %v1025, %v1201
  %v1203 = vpop.f32.mrf.mxu0
  %1204 = vmatprep.mubr.f32.mxu0 0.0
  %v1205 = vand.u32 %v111, 4294901760
  %1206 = vmatmul.mubr.f32.gmra.mxu0 %v1205
  %v1207 = vpop.f32.mrf.mxu0
  %v1208 = vadd.f32 %v1035, %v1207
  %v1209 = vpop.f32.mrf.mxu0
  %1210 = vmatprep.mubr.f32.mxu0 0.0
  %v1211 = vand.u32 %v112, 4294901760
  %1212 = vmatmul.mubr.f32.gmra.mxu0 %v1211
  %v1213 = vpop.f32.mrf.mxu0
  %v1214 = vadd.f32 %v1045, %v1213
  %v1215 = vpop.f32.mrf.mxu0
  %1216 = vdwg.mxu0
  %1217 = vmatprep.subr.mxu0 0.0
  %v1218 = vand.u32 %v140, 4294901760
  %v1219 = vsub.f32 %v140, %v1218
  %1220 = vmatpush1.msra.mxu0 %v1219
  %1221 = vmatprep.subr.mxu0 0.0
  %v1222 = vand.u32 %v139, 4294901760
  %v1223 = vsub.f32 %v139, %v1222
  %1224 = vmatpush1.msra.mxu0 %v1223
  %1225 = vmatprep.subr.mxu0 0.0
  %v1226 = vand.u32 %v138, 4294901760
  %v1227 = vsub.f32 %v138, %v1226
  %1228 = vmatpush1.msra.mxu0 %v1227
  %1229 = vmatprep.subr.mxu0 0.0
  %v1230 = vand.u32 %v137, 4294901760
  %v1231 = vsub.f32 %v137, %v1230
  %1232 = vmatpush1.msra.mxu0 %v1231
  %1233 = vmatprep.subr.mxu0 0.0
  %v1234 = vand.u32 %v136, 4294901760
  %v1235 = vsub.f32 %v136, %v1234
  %1236 = vmatpush1.msra.mxu0 %v1235
  %1237 = vmatprep.subr.mxu0 0.0
  %v1238 = vand.u32 %v135, 4294901760
  %v1239 = vsub.f32 %v135, %v1238
  %1240 = vmatpush1.msra.mxu0 %v1239
  %1241 = vmatprep.subr.mxu0 0.0
  %v1242 = vand.u32 %v134, 4294901760
  %v1243 = vsub.f32 %v134, %v1242
  %1244 = vmatpush1.msra.mxu0 %v1243
  %1245 = vmatprep.subr.mxu0 0.0
  %v1246 = vand.u32 %v133, 4294901760
  %v1247 = vsub.f32 %v133, %v1246
  %1248 = vmatpush1.msra.mxu0 %v1247
  %1249 = vmatprep.subr.mxu0 0.0
  %v1250 = vand.u32 %v132, 4294901760
  %v1251 = vsub.f32 %v132, %v1250
  %1252 = vmatpush1.msra.mxu0 %v1251
  %1253 = vmatprep.subr.mxu0 0.0
  %v1254 = vand.u32 %v131, 4294901760
  %v1255 = vsub.f32 %v131, %v1254
  %1256 = vmatpush1.msra.mxu0 %v1255
  %1257 = vmatprep.subr.mxu0 0.0
  %v1258 = vand.u32 %v130, 4294901760
  %v1259 = vsub.f32 %v130, %v1258
  %1260 = vmatpush1.msra.mxu0 %v1259
  %1261 = vmatprep.subr.mxu0 0.0
  %v1262 = vand.u32 %v129, 4294901760
  %v1263 = vsub.f32 %v129, %v1262
  %1264 = vmatpush1.msra.mxu0 %v1263
  %1265 = vmatprep.subr.mxu0 0.0
  %v1266 = vand.u32 %v128, 4294901760
  %v1267 = vsub.f32 %v128, %v1266
  %1268 = vmatpush1.msra.mxu0 %v1267
  %1269 = vmatprep.subr.mxu0 0.0
  %v1270 = vand.u32 %v127, 4294901760
  %v1271 = vsub.f32 %v127, %v1270
  %1272 = vmatpush1.msra.mxu0 %v1271
  %1273 = vmatprep.subr.mxu0 0.0
  %v1274 = vand.u32 %v126, 4294901760
  %v1275 = vsub.f32 %v126, %v1274
  %1276 = vmatpush1.msra.mxu0 %v1275
  %1277 = vmatprep.subr.mxu0 0.0
  %v1278 = vand.u32 %v125, 4294901760
  %v1279 = vsub.f32 %v125, %v1278
  %1280 = vmatpush1.msra.mxu0 %v1279
  %1281 = vmatprep.subr.mxu0 0.0
  %1282 = vmatpush2.msra.mxu0 0.0
  %1283 = vmatprep.subr.mxu0 0.0
  %1284 = vmatpush2.msra.mxu0 0.0
  %1285 = vmatprep.subr.mxu0 0.0
  %1286 = vmatpush2.msra.mxu0 0.0
  %1287 = vmatprep.subr.mxu0 0.0
  %1288 = vmatpush2.msra.mxu0 0.0
  %1289 = vmatprep.subr.mxu0 0.0
  %1290 = vmatpush2.msra.mxu0 0.0
  %1291 = vmatprep.subr.mxu0 0.0
  %1292 = vmatpush2.msra.mxu0 0.0
  %1293 = vmatprep.subr.mxu0 0.0
  %1294 = vmatpush2.msra.mxu0 0.0
  %1295 = vmatprep.subr.mxu0 0.0
  %1296 = vmatpush2.msra.mxu0 0.0
  %1297 = vmatprep.subr.mxu0 0.0
  %1298 = vmatpush2.msra.mxu0 0.0
  %1299 = vmatprep.subr.mxu0 0.0
  %1300 = vmatpush2.msra.mxu0 0.0
  %1301 = vmatprep.subr.mxu0 0.0
  %1302 = vmatpush2.msra.mxu0 0.0
  %1303 = vmatprep.subr.mxu0 0.0
  %1304 = vmatpush2.msra.mxu0 0.0
  %1305 = vmatprep.subr.mxu0 0.0
  %1306 = vmatpush2.msra.mxu0 0.0
  %1307 = vmatprep.subr.mxu0 0.0
  %1308 = vmatpush2.msra.mxu0 0.0
  %1309 = vmatprep.subr.mxu0 0.0
  %1310 = vmatpush2.msra.mxu0 0.0
  %1311 = vmatprep.subr.mxu0 0.0
  %1312 = vmatpush2.msra.mxu0 0.0
  %1313 = vmatprep.mubr.f32.mxu0 0.0
  %v1314 = vand.u32 %v109, 4294901760
  %v1315 = vsub.f32 %v109, %v1314
  %1316 = vmatmul.mubr.f32.gmra.mxu0 %v1315
  %v1317 = vpop.f32.mrf.mxu0
  %v1318 = vadd.f32 %v1196, %v1317
  %v1319 = vpop.f32.mrf.mxu0
  %1320 = vmatprep.mubr.f32.mxu0 0.0
  %v1321 = vand.u32 %v110, 4294901760
  %v1322 = vsub.f32 %v110, %v1321
  %1323 = vmatmul.mubr.f32.gmra.mxu0 %v1322
  %v1324 = vpop.f32.mrf.mxu0
  %v1325 = vadd.f32 %v1202, %v1324
  %v1326 = vpop.f32.mrf.mxu0
  %1327 = vmatprep.mubr.f32.mxu0 0.0
  %v1328 = vand.u32 %v111, 4294901760
  %v1329 = vsub.f32 %v111, %v1328
  %1330 = vmatmul.mubr.f32.gmra.mxu0 %v1329
  %v1331 = vpop.f32.mrf.mxu0
  %v1332 = vadd.f32 %v1208, %v1331
  %v1333 = vpop.f32.mrf.mxu0
  %1334 = vmatprep.mubr.f32.mxu0 0.0
  %v1335 = vand.u32 %v112, 4294901760
  %v1336 = vsub.f32 %v112, %v1335
  %1337 = vmatmul.mubr.f32.gmra.mxu0 %v1336
  %v1338 = vpop.f32.mrf.mxu0
  %v1339 = vadd.f32 %v1214, %v1338
  %v1340 = vpop.f32.mrf.mxu0
  %1341 = vdwg.mxu0
  %1342 = vmatprep.subr.mxu0 0.0
  %v1343 = vand.u32 %v140, 4294901760
  %1344 = vmatpush1.msra.mxu0 %v1343
  %1345 = vmatprep.subr.mxu0 0.0
  %v1346 = vand.u32 %v139, 4294901760
  %1347 = vmatpush1.msra.mxu0 %v1346
  %1348 = vmatprep.subr.mxu0 0.0
  %v1349 = vand.u32 %v138, 4294901760
  %1350 = vmatpush1.msra.mxu0 %v1349
  %1351 = vmatprep.subr.mxu0 0.0
  %v1352 = vand.u32 %v137, 4294901760
  %1353 = vmatpush1.msra.mxu0 %v1352
  %1354 = vmatprep.subr.mxu0 0.0
  %v1355 = vand.u32 %v136, 4294901760
  %1356 = vmatpush1.msra.mxu0 %v1355
  %1357 = vmatprep.subr.mxu0 0.0
  %v1358 = vand.u32 %v135, 4294901760
  %1359 = vmatpush1.msra.mxu0 %v1358
  %1360 = vmatprep.subr.mxu0 0.0
  %v1361 = vand.u32 %v134, 4294901760
  %1362 = vmatpush1.msra.mxu0 %v1361
  %1363 = vmatprep.subr.mxu0 0.0
  %v1364 = vand.u32 %v133, 4294901760
  %1365 = vmatpush1.msra.mxu0 %v1364
  %1366 = vmatprep.subr.mxu0 0.0
  %v1367 = vand.u32 %v132, 4294901760
  %1368 = vmatpush1.msra.mxu0 %v1367
  %1369 = vmatprep.subr.mxu0 0.0
  %v1370 = vand.u32 %v131, 4294901760
  %1371 = vmatpush1.msra.mxu0 %v1370
  %1372 = vmatprep.subr.mxu0 0.0
  %v1373 = vand.u32 %v130, 4294901760
  %1374 = vmatpush1.msra.mxu0 %v1373
  %1375 = vmatprep.subr.mxu0 0.0
  %v1376 = vand.u32 %v129, 4294901760
  %1377 = vmatpush1.msra.mxu0 %v1376
  %1378 = vmatprep.subr.mxu0 0.0
  %v1379 = vand.u32 %v128, 4294901760
  %1380 = vmatpush1.msra.mxu0 %v1379
  %1381 = vmatprep.subr.mxu0 0.0
  %v1382 = vand.u32 %v127, 4294901760
  %1383 = vmatpush1.msra.mxu0 %v1382
  %1384 = vmatprep.subr.mxu0 0.0
  %v1385 = vand.u32 %v126, 4294901760
  %1386 = vmatpush1.msra.mxu0 %v1385
  %1387 = vmatprep.subr.mxu0 0.0
  %v1388 = vand.u32 %v125, 4294901760
  %1389 = vmatpush1.msra.mxu0 %v1388
  %1390 = vmatprep.subr.mxu0 0.0
  %1391 = vmatpush2.msra.mxu0 0.0
  %1392 = vmatprep.subr.mxu0 0.0
  %1393 = vmatpush2.msra.mxu0 0.0
  %1394 = vmatprep.subr.mxu0 0.0
  %1395 = vmatpush2.msra.mxu0 0.0
  %1396 = vmatprep.subr.mxu0 0.0
  %1397 = vmatpush2.msra.mxu0 0.0
  %1398 = vmatprep.subr.mxu0 0.0
  %1399 = vmatpush2.msra.mxu0 0.0
  %1400 = vmatprep.subr.mxu0 0.0
  %1401 = vmatpush2.msra.mxu0 0.0
  %1402 = vmatprep.subr.mxu0 0.0
  %1403 = vmatpush2.msra.mxu0 0.0
  %1404 = vmatprep.subr.mxu0 0.0
  %1405 = vmatpush2.msra.mxu0 0.0
  %1406 = vmatprep.subr.mxu0 0.0
  %1407 = vmatpush2.msra.mxu0 0.0
  %1408 = vmatprep.subr.mxu0 0.0
  %1409 = vmatpush2.msra.mxu0 0.0
  %1410 = vmatprep.subr.mxu0 0.0
  %1411 = vmatpush2.msra.mxu0 0.0
  %1412 = vmatprep.subr.mxu0 0.0
  %1413 = vmatpush2.msra.mxu0 0.0
  %1414 = vmatprep.subr.mxu0 0.0
  %1415 = vmatpush2.msra.mxu0 0.0
  %1416 = vmatprep.subr.mxu0 0.0
  %1417 = vmatpush2.msra.mxu0 0.0
  %1418 = vmatprep.subr.mxu0 0.0
  %1419 = vmatpush2.msra.mxu0 0.0
  %1420 = vmatprep.subr.mxu0 0.0
  %1421 = vmatpush2.msra.mxu0 0.0
  %1422 = vmatprep.mubr.f32.mxu0 0.0
  %v1423 = vand.u32 %v109, 4294901760
  %v1424 = vsub.f32 %v109, %v1423
  %v1425 = vand.u32 %v1424, 4294901760
  %1426 = vmatmul.mubr.f32.gmra.mxu0 %v1425
  %v1427 = vpop.f32.mrf.mxu0
  %v1428 = vadd.f32 %v1318, %v1427
  %v1429 = vpop.f32.mrf.mxu0
  %1430 = vmatprep.mubr.f32.mxu0 0.0
  %v1431 = vand.u32 %v110, 4294901760
  %v1432 = vsub.f32 %v110, %v1431
  %v1433 = vand.u32 %v1432, 4294901760
  %1434 = vmatmul.mubr.f32.gmra.mxu0 %v1433
  %v1435 = vpop.f32.mrf.mxu0
  %v1436 = vadd.f32 %v1325, %v1435
  %v1437 = vpop.f32.mrf.mxu0
  %1438 = vmatprep.mubr.f32.mxu0 0.0
  %v1439 = vand.u32 %v111, 4294901760
  %v1440 = vsub.f32 %v111, %v1439
  %v1441 = vand.u32 %v1440, 4294901760
  %1442 = vmatmul.mubr.f32.gmra.mxu0 %v1441
  %v1443 = vpop.f32.mrf.mxu0
  %v1444 = vadd.f32 %v1332, %v1443
  %v1445 = vpop.f32.mrf.mxu0
  %1446 = vmatprep.mubr.f32.mxu0 0.0
  %v1447 = vand.u32 %v112, 4294901760
  %v1448 = vsub.f32 %v112, %v1447
  %v1449 = vand.u32 %v1448, 4294901760
  %1450 = vmatmul.mubr.f32.gmra.mxu0 %v1449
  %v1451 = vpop.f32.mrf.mxu0
  %v1452 = vadd.f32 %v1339, %v1451
  %v1453 = vpop.f32.mrf.mxu0
  %1454 = vdwg.mxu0
  %1455 = vmatprep.subr.mxu0 0.0
  %v1456 = vand.u32 %v140, 4294901760
  %v1457 = vsub.f32 %v140, %v1456
  %v1458 = vand.u32 %v1457, 4294901760
  %1459 = vmatpush1.msra.mxu0 %v1458
  %1460 = vmatprep.subr.mxu0 0.0
  %v1461 = vand.u32 %v139, 4294901760
  %v1462 = vsub.f32 %v139, %v1461
  %v1463 = vand.u32 %v1462, 4294901760
  %1464 = vmatpush1.msra.mxu0 %v1463
  %1465 = vmatprep.subr.mxu0 0.0
  %v1466 = vand.u32 %v138, 4294901760
  %v1467 = vsub.f32 %v138, %v1466
  %v1468 = vand.u32 %v1467, 4294901760
  %1469 = vmatpush1.msra.mxu0 %v1468
  %1470 = vmatprep.subr.mxu0 0.0
  %v1471 = vand.u32 %v137, 4294901760
  %v1472 = vsub.f32 %v137, %v1471
  %v1473 = vand.u32 %v1472, 4294901760
  %1474 = vmatpush1.msra.mxu0 %v1473
  %1475 = vmatprep.subr.mxu0 0.0
  %v1476 = vand.u32 %v136, 4294901760
  %v1477 = vsub.f32 %v136, %v1476
  %v1478 = vand.u32 %v1477, 4294901760
  %1479 = vmatpush1.msra.mxu0 %v1478
  %1480 = vmatprep.subr.mxu0 0.0
  %v1481 = vand.u32 %v135, 4294901760
  %v1482 = vsub.f32 %v135, %v1481
  %v1483 = vand.u32 %v1482, 4294901760
  %1484 = vmatpush1.msra.mxu0 %v1483
  %1485 = vmatprep.subr.mxu0 0.0
  %v1486 = vand.u32 %v134, 4294901760
  %v1487 = vsub.f32 %v134, %v1486
  %v1488 = vand.u32 %v1487, 4294901760
  %1489 = vmatpush1.msra.mxu0 %v1488
  %1490 = vmatprep.subr.mxu0 0.0
  %v1491 = vand.u32 %v133, 4294901760
  %v1492 = vsub.f32 %v133, %v1491
  %v1493 = vand.u32 %v1492, 4294901760
  %1494 = vmatpush1.msra.mxu0 %v1493
  %1495 = vmatprep.subr.mxu0 0.0
  %v1496 = vand.u32 %v132, 4294901760
  %v1497 = vsub.f32 %v132, %v1496
  %v1498 = vand.u32 %v1497, 4294901760
  %1499 = vmatpush1.msra.mxu0 %v1498
  %1500 = vmatprep.subr.mxu0 0.0
  %v1501 = vand.u32 %v131, 4294901760
  %v1502 = vsub.f32 %v131, %v1501
  %v1503 = vand.u32 %v1502, 4294901760
  %1504 = vmatpush1.msra.mxu0 %v1503
  %1505 = vmatprep.subr.mxu0 0.0
  %v1506 = vand.u32 %v130, 4294901760
  %v1507 = vsub.f32 %v130, %v1506
  %v1508 = vand.u32 %v1507, 4294901760
  %1509 = vmatpush1.msra.mxu0 %v1508
  %1510 = vmatprep.subr.mxu0 0.0
  %v1511 = vand.u32 %v129, 4294901760
  %v1512 = vsub.f32 %v129, %v1511
  %v1513 = vand.u32 %v1512, 4294901760
  %1514 = vmatpush1.msra.mxu0 %v1513
  %1515 = vmatprep.subr.mxu0 0.0
  %v1516 = vand.u32 %v128, 4294901760
  %v1517 = vsub.f32 %v128, %v1516
  %v1518 = vand.u32 %v1517, 4294901760
  %1519 = vmatpush1.msra.mxu0 %v1518
  %1520 = vmatprep.subr.mxu0 0.0
  %v1521 = vand.u32 %v127, 4294901760
  %v1522 = vsub.f32 %v127, %v1521
  %v1523 = vand.u32 %v1522, 4294901760
  %1524 = vmatpush1.msra.mxu0 %v1523
  %1525 = vmatprep.subr.mxu0 0.0
  %v1526 = vand.u32 %v126, 4294901760
  %v1527 = vsub.f32 %v126, %v1526
  %v1528 = vand.u32 %v1527, 4294901760
  %1529 = vmatpush1.msra.mxu0 %v1528
  %1530 = vmatprep.subr.mxu0 0.0
  %v1531 = vand.u32 %v125, 4294901760
  %v1532 = vsub.f32 %v125, %v1531
  %v1533 = vand.u32 %v1532, 4294901760
  %1534 = vmatpush1.msra.mxu0 %v1533
  %1535 = vmatprep.subr.mxu0 0.0
  %1536 = vmatpush2.msra.mxu0 0.0
  %1537 = vmatprep.subr.mxu0 0.0
  %1538 = vmatpush2.msra.mxu0 0.0
  %1539 = vmatprep.subr.mxu0 0.0
  %1540 = vmatpush2.msra.mxu0 0.0
  %1541 = vmatprep.subr.mxu0 0.0
  %1542 = vmatpush2.msra.mxu0 0.0
  %1543 = vmatprep.subr.mxu0 0.0
  %1544 = vmatpush2.msra.mxu0 0.0
  %1545 = vmatprep.subr.mxu0 0.0
  %1546 = vmatpush2.msra.mxu0 0.0
  %1547 = vmatprep.subr.mxu0 0.0
  %1548 = vmatpush2.msra.mxu0 0.0
  %1549 = vmatprep.subr.mxu0 0.0
  %1550 = vmatpush2.msra.mxu0 0.0
  %1551 = vmatprep.subr.mxu0 0.0
  %1552 = vmatpush2.msra.mxu0 0.0
  %1553 = vmatprep.subr.mxu0 0.0
  %1554 = vmatpush2.msra.mxu0 0.0
  %1555 = vmatprep.subr.mxu0 0.0
  %1556 = vmatpush2.msra.mxu0 0.0
  %1557 = vmatprep.subr.mxu0 0.0
  %1558 = vmatpush2.msra.mxu0 0.0
  %1559 = vmatprep.subr.mxu0 0.0
  %1560 = vmatpush2.msra.mxu0 0.0
  %1561 = vmatprep.subr.mxu0 0.0
  %1562 = vmatpush2.msra.mxu0 0.0
  %1563 = vmatprep.subr.mxu0 0.0
  %1564 = vmatpush2.msra.mxu0 0.0
  %1565 = vmatprep.subr.mxu0 0.0
  %1566 = vmatpush2.msra.mxu0 0.0
  %1567 = vmatprep.mubr.f32.mxu0 0.0
  %v1568 = vand.u32 %v109, 4294901760
  %1569 = vmatmul.mubr.f32.gmra.mxu0 %v1568
  %v1570 = vpop.f32.mrf.mxu0
  %v1571 = vadd.f32 %v1428, %v1570
  %v1572 = vpop.f32.mrf.mxu0
  %1573 = vmatprep.mubr.f32.mxu0 0.0
  %v1574 = vand.u32 %v110, 4294901760
  %1575 = vmatmul.mubr.f32.gmra.mxu0 %v1574
  %v1576 = vpop.f32.mrf.mxu0
  %v1577 = vadd.f32 %v1436, %v1576
  %v1578 = vpop.f32.mrf.mxu0
  %1579 = vmatprep.mubr.f32.mxu0 0.0
  %v1580 = vand.u32 %v111, 4294901760
  %1581 = vmatmul.mubr.f32.gmra.mxu0 %v1580
  %v1582 = vpop.f32.mrf.mxu0
  %v1583 = vadd.f32 %v1444, %v1582
  %v1584 = vpop.f32.mrf.mxu0
  %1585 = vmatprep.mubr.f32.mxu0 0.0
  %v1586 = vand.u32 %v112, 4294901760
  %1587 = vmatmul.mubr.f32.gmra.mxu0 %v1586
  %v1588 = vpop.f32.mrf.mxu0
  %v1589 = vadd.f32 %v1452, %v1588
  %v1590 = vpop.f32.mrf.mxu0
  %1591 = vdwg.mxu0
  %1592 = vmatprep.subr.mxu0 0.0
  %v1593 = vand.u32 %v140, 4294901760
  %1594 = vmatpush1.msra.mxu0 %v1593
  %1595 = vmatprep.subr.mxu0 0.0
  %v1596 = vand.u32 %v139, 4294901760
  %1597 = vmatpush1.msra.mxu0 %v1596
  %1598 = vmatprep.subr.mxu0 0.0
  %v1599 = vand.u32 %v138, 4294901760
  %1600 = vmatpush1.msra.mxu0 %v1599
  %1601 = vmatprep.subr.mxu0 0.0
  %v1602 = vand.u32 %v137, 4294901760
  %1603 = vmatpush1.msra.mxu0 %v1602
  %1604 = vmatprep.subr.mxu0 0.0
  %v1605 = vand.u32 %v136, 4294901760
  %1606 = vmatpush1.msra.mxu0 %v1605
  %1607 = vmatprep.subr.mxu0 0.0
  %v1608 = vand.u32 %v135, 4294901760
  %1609 = vmatpush1.msra.mxu0 %v1608
  %1610 = vmatprep.subr.mxu0 0.0
  %v1611 = vand.u32 %v134, 4294901760
  %1612 = vmatpush1.msra.mxu0 %v1611
  %1613 = vmatprep.subr.mxu0 0.0
  %v1614 = vand.u32 %v133, 4294901760
  %1615 = vmatpush1.msra.mxu0 %v1614
  %1616 = vmatprep.subr.mxu0 0.0
  %v1617 = vand.u32 %v132, 4294901760
  %1618 = vmatpush1.msra.mxu0 %v1617
  %1619 = vmatprep.subr.mxu0 0.0
  %v1620 = vand.u32 %v131, 4294901760
  %1621 = vmatpush1.msra.mxu0 %v1620
  %1622 = vmatprep.subr.mxu0 0.0
  %v1623 = vand.u32 %v130, 4294901760
  %1624 = vmatpush1.msra.mxu0 %v1623
  %1625 = vmatprep.subr.mxu0 0.0
  %v1626 = vand.u32 %v129, 4294901760
  %1627 = vmatpush1.msra.mxu0 %v1626
  %1628 = vmatprep.subr.mxu0 0.0
  %v1629 = vand.u32 %v128, 4294901760
  %1630 = vmatpush1.msra.mxu0 %v1629
  %1631 = vmatprep.subr.mxu0 0.0
  %v1632 = vand.u32 %v127, 4294901760
  %1633 = vmatpush1.msra.mxu0 %v1632
  %1634 = vmatprep.subr.mxu0 0.0
  %v1635 = vand.u32 %v126, 4294901760
  %1636 = vmatpush1.msra.mxu0 %v1635
  %1637 = vmatprep.subr.mxu0 0.0
  %v1638 = vand.u32 %v125, 4294901760
  %1639 = vmatpush1.msra.mxu0 %v1638
  %1640 = vmatprep.subr.mxu0 0.0
  %1641 = vmatpush2.msra.mxu0 0.0
  %1642 = vmatprep.subr.mxu0 0.0
  %1643 = vmatpush2.msra.mxu0 0.0
  %1644 = vmatprep.subr.mxu0 0.0
  %1645 = vmatpush2.msra.mxu0 0.0
  %1646 = vmatprep.subr.mxu0 0.0
  %1647 = vmatpush2.msra.mxu0 0.0
  %1648 = vmatprep.subr.mxu0 0.0
  %1649 = vmatpush2.msra.mxu0 0.0
  %1650 = vmatprep.subr.mxu0 0.0
  %1651 = vmatpush2.msra.mxu0 0.0
  %1652 = vmatprep.subr.mxu0 0.0
  %1653 = vmatpush2.msra.mxu0 0.0
  %1654 = vmatprep.subr.mxu0 0.0
  %1655 = vmatpush2.msra.mxu0 0.0
  %1656 = vmatprep.subr.mxu0 0.0
  %1657 = vmatpush2.msra.mxu0 0.0
  %1658 = vmatprep.subr.mxu0 0.0
  %1659 = vmatpush2.msra.mxu0 0.0
  %1660 = vmatprep.subr.mxu0 0.0
  %1661 = vmatpush2.msra.mxu0 0.0
  %1662 = vmatprep.subr.mxu0 0.0
  %1663 = vmatpush2.msra.mxu0 0.0
  %1664 = vmatprep.subr.mxu0 0.0
  %1665 = vmatpush2.msra.mxu0 0.0
  %1666 = vmatprep.subr.mxu0 0.0
  %1667 = vmatpush2.msra.mxu0 0.0
  %1668 = vmatprep.subr.mxu0 0.0
  %1669 = vmatpush2.msra.mxu0 0.0
  %1670 = vmatprep.subr.mxu0 0.0
  %1671 = vmatpush2.msra.mxu0 0.0
  %1672 = vmatprep.mubr.f32.mxu0 0.0
  %v1673 = vand.u32 %v109, 4294901760
  %1674 = vmatmul.mubr.f32.gmra.mxu0 %v1673
  %v1675 = vpop.f32.mrf.mxu0
  %v1676 = vadd.f32 %v1571, %v1675
  %v1677 = vpop.f32.mrf.mxu0
  %1678 = vmatprep.mubr.f32.mxu0 0.0
  %v1679 = vand.u32 %v110, 4294901760
  %1680 = vmatmul.mubr.f32.gmra.mxu0 %v1679
  %v1681 = vpop.f32.mrf.mxu0
  %v1682 = vadd.f32 %v1577, %v1681
  %v1683 = vpop.f32.mrf.mxu0
  %1684 = vmatprep.mubr.f32.mxu0 0.0
  %v1685 = vand.u32 %v111, 4294901760
  %1686 = vmatmul.mubr.f32.gmra.mxu0 %v1685
  %v1687 = vpop.f32.mrf.mxu0
  %v1688 = vadd.f32 %v1583, %v1687
  %v1689 = vpop.f32.mrf.mxu0
  %1690 = vmatprep.mubr.f32.mxu0 0.0
  %v1691 = vand.u32 %v112, 4294901760
  %1692 = vmatmul.mubr.f32.gmra.mxu0 %v1691
  %v1693 = vpop.f32.mrf.mxu0
  %v1694 = vadd.f32 %v1589, %v1693
  %v1695 = vpop.f32.mrf.mxu0
  %1696 = vdwg.mxu0
  %v1697 = vld [vmem:[%s1 + $0x100] sm:$0xff]
  %v1698 = vld [vmem:[%s1 + $0x108] sm:$0xff]
  %v1699 = vld [vmem:[%s1 + $0x110] sm:$0xff]
  %v1700 = vld [vmem:[%s1 + $0x118] sm:$0xff]
  %v1701 = vld [vmem:[%s1 + $0x120] sm:$0xff]
  %v1702 = vld [vmem:[%s1 + $0x128] sm:$0xff]
  %v1703 = vld [vmem:[%s1 + $0x130] sm:$0xff]
  %v1704 = vld [vmem:[%s1 + $0x138] sm:$0xff]
  %v1705 = vld [vmem:[%s1 + $0x140] sm:$0xff]
  %v1706 = vld [vmem:[%s1 + $0x148] sm:$0xff]
  %v1707 = vld [vmem:[%s1 + $0x150] sm:$0xff]
  %v1708 = vld [vmem:[%s1 + $0x158] sm:$0xff]
  %v1709 = vld [vmem:[%s1 + $0x160] sm:$0xff]
  %v1710 = vld [vmem:[%s1 + $0x168] sm:$0xff]
  %v1711 = vld [vmem:[%s1 + $0x170] sm:$0xff]
  %v1712 = vld [vmem:[%s1 + $0x178] sm:$0xff]
  %1713 = vmatprep.subr.mxu0 0.0
  %v1714 = vand.u32 %v1712, 4294901760
  %1715 = vmatpush1.msra.mxu0 %v1714
  %1716 = vmatprep.subr.mxu0 0.0
  %v1717 = vand.u32 %v1711, 4294901760
  %1718 = vmatpush1.msra.mxu0 %v1717
  %1719 = vmatprep.subr.mxu0 0.0
  %v1720 = vand.u32 %v1710, 4294901760
  %1721 = vmatpush1.msra.mxu0 %v1720
  %1722 = vmatprep.subr.mxu0 0.0
  %v1723 = vand.u32 %v1709, 4294901760
  %1724 = vmatpush1.msra.mxu0 %v1723
  %1725 = vmatprep.subr.mxu0 0.0
  %v1726 = vand.u32 %v1708, 4294901760
  %1727 = vmatpush1.msra.mxu0 %v1726
  %1728 = vmatprep.subr.mxu0 0.0
  %v1729 = vand.u32 %v1707, 4294901760
  %1730 = vmatpush1.msra.mxu0 %v1729
  %1731 = vmatprep.subr.mxu0 0.0
  %v1732 = vand.u32 %v1706, 4294901760
  %1733 = vmatpush1.msra.mxu0 %v1732
  %1734 = vmatprep.subr.mxu0 0.0
  %v1735 = vand.u32 %v1705, 4294901760
  %1736 = vmatpush1.msra.mxu0 %v1735
  %1737 = vmatprep.subr.mxu0 0.0
  %v1738 = vand.u32 %v1704, 4294901760
  %1739 = vmatpush1.msra.mxu0 %v1738
  %1740 = vmatprep.subr.mxu0 0.0
  %v1741 = vand.u32 %v1703, 4294901760
  %1742 = vmatpush1.msra.mxu0 %v1741
  %1743 = vmatprep.subr.mxu0 0.0
  %v1744 = vand.u32 %v1702, 4294901760
  %1745 = vmatpush1.msra.mxu0 %v1744
  %1746 = vmatprep.subr.mxu0 0.0
  %v1747 = vand.u32 %v1701, 4294901760
  %1748 = vmatpush1.msra.mxu0 %v1747
  %1749 = vmatprep.subr.mxu0 0.0
  %v1750 = vand.u32 %v1700, 4294901760
  %1751 = vmatpush1.msra.mxu0 %v1750
  %1752 = vmatprep.subr.mxu0 0.0
  %v1753 = vand.u32 %v1699, 4294901760
  %1754 = vmatpush1.msra.mxu0 %v1753
  %1755 = vmatprep.subr.mxu0 0.0
  %v1756 = vand.u32 %v1698, 4294901760
  %1757 = vmatpush1.msra.mxu0 %v1756
  %1758 = vmatprep.subr.mxu0 0.0
  %v1759 = vand.u32 %v1697, 4294901760
  %1760 = vmatpush1.msra.mxu0 %v1759
  %1761 = vmatprep.subr.mxu0 0.0
  %1762 = vmatpush2.msra.mxu0 0.0
  %1763 = vmatprep.subr.mxu0 0.0
  %1764 = vmatpush2.msra.mxu0 0.0
  %1765 = vmatprep.subr.mxu0 0.0
  %1766 = vmatpush2.msra.mxu0 0.0
  %1767 = vmatprep.subr.mxu0 0.0
  %1768 = vmatpush2.msra.mxu0 0.0
  %1769 = vmatprep.subr.mxu0 0.0
  %1770 = vmatpush2.msra.mxu0 0.0
  %1771 = vmatprep.subr.mxu0 0.0
  %1772 = vmatpush2.msra.mxu0 0.0
  %1773 = vmatprep.subr.mxu0 0.0
  %1774 = vmatpush2.msra.mxu0 0.0
  %1775 = vmatprep.subr.mxu0 0.0
  %1776 = vmatpush2.msra.mxu0 0.0
  %1777 = vmatprep.subr.mxu0 0.0
  %1778 = vmatpush2.msra.mxu0 0.0
  %1779 = vmatprep.subr.mxu0 0.0
  %1780 = vmatpush2.msra.mxu0 0.0
  %1781 = vmatprep.subr.mxu0 0.0
  %1782 = vmatpush2.msra.mxu0 0.0
  %1783 = vmatprep.subr.mxu0 0.0
  %1784 = vmatpush2.msra.mxu0 0.0
  %1785 = vmatprep.subr.mxu0 0.0
  %1786 = vmatpush2.msra.mxu0 0.0
  %1787 = vmatprep.subr.mxu0 0.0
  %1788 = vmatpush2.msra.mxu0 0.0
  %1789 = vmatprep.subr.mxu0 0.0
  %1790 = vmatpush2.msra.mxu0 0.0
  %1791 = vmatprep.subr.mxu0 0.0
  %1792 = vmatpush2.msra.mxu0 0.0
  %1793 = vmatprep.mubr.f32.mxu0 0.0
  %v1794 = vand.u32 %v121, 4294901760
  %v1795 = vsub.f32 %v121, %v1794
  %v1796 = vand.u32 %v1795, 4294901760
  %v1797 = vsub.f32 %v1795, %v1796
  %v1798 = vand.u32 %v1797, 4294901760
  %1799 = vmatmul.mubr.f32.gmra.mxu0 %v1798
  %v1800 = vpop.f32.mrf.mxu0
  %v1801 = vadd.f32 0.0, %v1800
  %v1802 = vpop.f32.mrf.mxu0
  %1803 = vmatprep.mubr.f32.mxu0 0.0
  %v1804 = vand.u32 %v122, 4294901760
  %v1805 = vsub.f32 %v122, %v1804
  %v1806 = vand.u32 %v1805, 4294901760
  %v1807 = vsub.f32 %v1805, %v1806
  %v1808 = vand.u32 %v1807, 4294901760
  %1809 = vmatmul.mubr.f32.gmra.mxu0 %v1808
  %v1810 = vpop.f32.mrf.mxu0
  %v1811 = vadd.f32 0.0, %v1810
  %v1812 = vpop.f32.mrf.mxu0
  %1813 = vmatprep.mubr.f32.mxu0 0.0
  %v1814 = vand.u32 %v123, 4294901760
  %v1815 = vsub.f32 %v123, %v1814
  %v1816 = vand.u32 %v1815, 4294901760
  %v1817 = vsub.f32 %v1815, %v1816
  %v1818 = vand.u32 %v1817, 4294901760
  %1819 = vmatmul.mubr.f32.gmra.mxu0 %v1818
  %v1820 = vpop.f32.mrf.mxu0
  %v1821 = vadd.f32 0.0, %v1820
  %v1822 = vpop.f32.mrf.mxu0
  %1823 = vmatprep.mubr.f32.mxu0 0.0
  %v1824 = vand.u32 %v124, 4294901760
  %v1825 = vsub.f32 %v124, %v1824
  %v1826 = vand.u32 %v1825, 4294901760
  %v1827 = vsub.f32 %v1825, %v1826
  %v1828 = vand.u32 %v1827, 4294901760
  %1829 = vmatmul.mubr.f32.gmra.mxu0 %v1828
  %v1830 = vpop.f32.mrf.mxu0
  %v1831 = vadd.f32 0.0, %v1830
  %v1832 = vpop.f32.mrf.mxu0
  %1833 = vdwg.mxu0
  %1834 = vmatprep.subr.mxu0 0.0
  %v1835 = vand.u32 %v1712, 4294901760
  %v1836 = vsub.f32 %v1712, %v1835
  %v1837 = vand.u32 %v1836, 4294901760
  %v1838 = vsub.f32 %v1836, %v1837
  %v1839 = vand.u32 %v1838, 4294901760
  %1840 = vmatpush1.msra.mxu0 %v1839
  %1841 = vmatprep.subr.mxu0 0.0
  %v1842 = vand.u32 %v1711, 4294901760
  %v1843 = vsub.f32 %v1711, %v1842
  %v1844 = vand.u32 %v1843, 4294901760
  %v1845 = vsub.f32 %v1843, %v1844
  %v1846 = vand.u32 %v1845, 4294901760
  %1847 = vmatpush1.msra.mxu0 %v1846
  %1848 = vmatprep.subr.mxu0 0.0
  %v1849 = vand.u32 %v1710, 4294901760
  %v1850 = vsub.f32 %v1710, %v1849
  %v1851 = vand.u32 %v1850, 4294901760
  %v1852 = vsub.f32 %v1850, %v1851
  %v1853 = vand.u32 %v1852, 4294901760
  %1854 = vmatpush1.msra.mxu0 %v1853
  %1855 = vmatprep.subr.mxu0 0.0
  %v1856 = vand.u32 %v1709, 4294901760
  %v1857 = vsub.f32 %v1709, %v1856
  %v1858 = vand.u32 %v1857, 4294901760
  %v1859 = vsub.f32 %v1857, %v1858
  %v1860 = vand.u32 %v1859, 4294901760
  %1861 = vmatpush1.msra.mxu0 %v1860
  %1862 = vmatprep.subr.mxu0 0.0
  %v1863 = vand.u32 %v1708, 4294901760
  %v1864 = vsub.f32 %v1708, %v1863
  %v1865 = vand.u32 %v1864, 4294901760
  %v1866 = vsub.f32 %v1864, %v1865
  %v1867 = vand.u32 %v1866, 4294901760
  %1868 = vmatpush1.msra.mxu0 %v1867
  %1869 = vmatprep.subr.mxu0 0.0
  %v1870 = vand.u32 %v1707, 4294901760
  %v1871 = vsub.f32 %v1707, %v1870
  %v1872 = vand.u32 %v1871, 4294901760
  %v1873 = vsub.f32 %v1871, %v1872
  %v1874 = vand.u32 %v1873, 4294901760
  %1875 = vmatpush1.msra.mxu0 %v1874
  %1876 = vmatprep.subr.mxu0 0.0
  %v1877 = vand.u32 %v1706, 4294901760
  %v1878 = vsub.f32 %v1706, %v1877
  %v1879 = vand.u32 %v1878, 4294901760
  %v1880 = vsub.f32 %v1878, %v1879
  %v1881 = vand.u32 %v1880, 4294901760
  %1882 = vmatpush1.msra.mxu0 %v1881
  %1883 = vmatprep.subr.mxu0 0.0
  %v1884 = vand.u32 %v1705, 4294901760
  %v1885 = vsub.f32 %v1705, %v1884
  %v1886 = vand.u32 %v1885, 4294901760
  %v1887 = vsub.f32 %v1885, %v1886
  %v1888 = vand.u32 %v1887, 4294901760
  %1889 = vmatpush1.msra.mxu0 %v1888
  %1890 = vmatprep.subr.mxu0 0.0
  %v1891 = vand.u32 %v1704, 4294901760
  %v1892 = vsub.f32 %v1704, %v1891
  %v1893 = vand.u32 %v1892, 4294901760
  %v1894 = vsub.f32 %v1892, %v1893
  %v1895 = vand.u32 %v1894, 4294901760
  %1896 = vmatpush1.msra.mxu0 %v1895
  %1897 = vmatprep.subr.mxu0 0.0
  %v1898 = vand.u32 %v1703, 4294901760
  %v1899 = vsub.f32 %v1703, %v1898
  %v1900 = vand.u32 %v1899, 4294901760
  %v1901 = vsub.f32 %v1899, %v1900
  %v1902 = vand.u32 %v1901, 4294901760
  %1903 = vmatpush1.msra.mxu0 %v1902
  %1904 = vmatprep.subr.mxu0 0.0
  %v1905 = vand.u32 %v1702, 4294901760
  %v1906 = vsub.f32 %v1702, %v1905
  %v1907 = vand.u32 %v1906, 4294901760
  %v1908 = vsub.f32 %v1906, %v1907
  %v1909 = vand.u32 %v1908, 4294901760
  %1910 = vmatpush1.msra.mxu0 %v1909
  %1911 = vmatprep.subr.mxu0 0.0
  %v1912 = vand.u32 %v1701, 4294901760
  %v1913 = vsub.f32 %v1701, %v1912
  %v1914 = vand.u32 %v1913, 4294901760
  %v1915 = vsub.f32 %v1913, %v1914
  %v1916 = vand.u32 %v1915, 4294901760
  %1917 = vmatpush1.msra.mxu0 %v1916
  %1918 = vmatprep.subr.mxu0 0.0
  %v1919 = vand.u32 %v1700, 4294901760
  %v1920 = vsub.f32 %v1700, %v1919
  %v1921 = vand.u32 %v1920, 4294901760
  %v1922 = vsub.f32 %v1920, %v1921
  %v1923 = vand.u32 %v1922, 4294901760
  %1924 = vmatpush1.msra.mxu0 %v1923
  %1925 = vmatprep.subr.mxu0 0.0
  %v1926 = vand.u32 %v1699, 4294901760
  %v1927 = vsub.f32 %v1699, %v1926
  %v1928 = vand.u32 %v1927, 4294901760
  %v1929 = vsub.f32 %v1927, %v1928
  %v1930 = vand.u32 %v1929, 4294901760
  %1931 = vmatpush1.msra.mxu0 %v1930
  %1932 = vmatprep.subr.mxu0 0.0
  %v1933 = vand.u32 %v1698, 4294901760
  %v1934 = vsub.f32 %v1698, %v1933
  %v1935 = vand.u32 %v1934, 4294901760
  %v1936 = vsub.f32 %v1934, %v1935
  %v1937 = vand.u32 %v1936, 4294901760
  %1938 = vmatpush1.msra.mxu0 %v1937
  %1939 = vmatprep.subr.mxu0 0.0
  %v1940 = vand.u32 %v1697, 4294901760
  %v1941 = vsub.f32 %v1697, %v1940
  %v1942 = vand.u32 %v1941, 4294901760
  %v1943 = vsub.f32 %v1941, %v1942
  %v1944 = vand.u32 %v1943, 4294901760
  %1945 = vmatpush1.msra.mxu0 %v1944
  %1946 = vmatprep.subr.mxu0 0.0
  %1947 = vmatpush2.msra.mxu0 0.0
  %1948 = vmatprep.subr.mxu0 0.0
  %1949 = vmatpush2.msra.mxu0 0.0
  %1950 = vmatprep.subr.mxu0 0.0
  %1951 = vmatpush2.msra.mxu0 0.0
  %1952 = vmatprep.subr.mxu0 0.0
  %1953 = vmatpush2.msra.mxu0 0.0
  %1954 = vmatprep.subr.mxu0 0.0
  %1955 = vmatpush2.msra.mxu0 0.0
  %1956 = vmatprep.subr.mxu0 0.0
  %1957 = vmatpush2.msra.mxu0 0.0
  %1958 = vmatprep.subr.mxu0 0.0
  %1959 = vmatpush2.msra.mxu0 0.0
  %1960 = vmatprep.subr.mxu0 0.0
  %1961 = vmatpush2.msra.mxu0 0.0
  %1962 = vmatprep.subr.mxu0 0.0
  %1963 = vmatpush2.msra.mxu0 0.0
  %1964 = vmatprep.subr.mxu0 0.0
  %1965 = vmatpush2.msra.mxu0 0.0
  %1966 = vmatprep.subr.mxu0 0.0
  %1967 = vmatpush2.msra.mxu0 0.0
  %1968 = vmatprep.subr.mxu0 0.0
  %1969 = vmatpush2.msra.mxu0 0.0
  %1970 = vmatprep.subr.mxu0 0.0
  %1971 = vmatpush2.msra.mxu0 0.0
  %1972 = vmatprep.subr.mxu0 0.0
  %1973 = vmatpush2.msra.mxu0 0.0
  %1974 = vmatprep.subr.mxu0 0.0
  %1975 = vmatpush2.msra.mxu0 0.0
  %1976 = vmatprep.subr.mxu0 0.0
  %1977 = vmatpush2.msra.mxu0 0.0
  %1978 = vmatprep.mubr.f32.mxu0 0.0
  %v1979 = vand.u32 %v121, 4294901760
  %1980 = vmatmul.mubr.f32.gmra.mxu0 %v1979
  %v1981 = vpop.f32.mrf.mxu0
  %v1982 = vadd.f32 %v1801, %v1981
  %v1983 = vpop.f32.mrf.mxu0
  %1984 = vmatprep.mubr.f32.mxu0 0.0
  %v1985 = vand.u32 %v122, 4294901760
  %1986 = vmatmul.mubr.f32.gmra.mxu0 %v1985
  %v1987 = vpop.f32.mrf.mxu0
  %v1988 = vadd.f32 %v1811, %v1987
  %v1989 = vpop.f32.mrf.mxu0
  %1990 = vmatprep.mubr.f32.mxu0 0.0
  %v1991 = vand.u32 %v123, 4294901760
  %1992 = vmatmul.mubr.f32.gmra.mxu0 %v1991
  %v1993 = vpop.f32.mrf.mxu0
  %v1994 = vadd.f32 %v1821, %v1993
  %v1995 = vpop.f32.mrf.mxu0
  %1996 = vmatprep.mubr.f32.mxu0 0.0
  %v1997 = vand.u32 %v124, 4294901760
  %1998 = vmatmul.mubr.f32.gmra.mxu0 %v1997
  %v1999 = vpop.f32.mrf.mxu0
  %v2000 = vadd.f32 %v1831, %v1999
  %v2001 = vpop.f32.mrf.mxu0
  %2002 = vdwg.mxu0
  %2003 = vmatprep.subr.mxu0 0.0
  %v2004 = vand.u32 %v1712, 4294901760
  %v2005 = vsub.f32 %v1712, %v2004
  %2006 = vmatpush1.msra.mxu0 %v2005
  %2007 = vmatprep.subr.mxu0 0.0
  %v2008 = vand.u32 %v1711, 4294901760
  %v2009 = vsub.f32 %v1711, %v2008
  %2010 = vmatpush1.msra.mxu0 %v2009
  %2011 = vmatprep.subr.mxu0 0.0
  %v2012 = vand.u32 %v1710, 4294901760
  %v2013 = vsub.f32 %v1710, %v2012
  %2014 = vmatpush1.msra.mxu0 %v2013
  %2015 = vmatprep.subr.mxu0 0.0
  %v2016 = vand.u32 %v1709, 4294901760
  %v2017 = vsub.f32 %v1709, %v2016
  %2018 = vmatpush1.msra.mxu0 %v2017
  %2019 = vmatprep.subr.mxu0 0.0
  %v2020 = vand.u32 %v1708, 4294901760
  %v2021 = vsub.f32 %v1708, %v2020
  %2022 = vmatpush1.msra.mxu0 %v2021
  %2023 = vmatprep.subr.mxu0 0.0
  %v2024 = vand.u32 %v1707, 4294901760
  %v2025 = vsub.f32 %v1707, %v2024
  %2026 = vmatpush1.msra.mxu0 %v2025
  %2027 = vmatprep.subr.mxu0 0.0
  %v2028 = vand.u32 %v1706, 4294901760
  %v2029 = vsub.f32 %v1706, %v2028
  %2030 = vmatpush1.msra.mxu0 %v2029
  %2031 = vmatprep.subr.mxu0 0.0
  %v2032 = vand.u32 %v1705, 4294901760
  %v2033 = vsub.f32 %v1705, %v2032
  %2034 = vmatpush1.msra.mxu0 %v2033
  %2035 = vmatprep.subr.mxu0 0.0
  %v2036 = vand.u32 %v1704, 4294901760
  %v2037 = vsub.f32 %v1704, %v2036
  %2038 = vmatpush1.msra.mxu0 %v2037
  %2039 = vmatprep.subr.mxu0 0.0
  %v2040 = vand.u32 %v1703, 4294901760
  %v2041 = vsub.f32 %v1703, %v2040
  %2042 = vmatpush1.msra.mxu0 %v2041
  %2043 = vmatprep.subr.mxu0 0.0
  %v2044 = vand.u32 %v1702, 4294901760
  %v2045 = vsub.f32 %v1702, %v2044
  %2046 = vmatpush1.msra.mxu0 %v2045
  %2047 = vmatprep.subr.mxu0 0.0
  %v2048 = vand.u32 %v1701, 4294901760
  %v2049 = vsub.f32 %v1701, %v2048
  %2050 = vmatpush1.msra.mxu0 %v2049
  %2051 = vmatprep.subr.mxu0 0.0
  %v2052 = vand.u32 %v1700, 4294901760
  %v2053 = vsub.f32 %v1700, %v2052
  %2054 = vmatpush1.msra.mxu0 %v2053
  %2055 = vmatprep.subr.mxu0 0.0
  %v2056 = vand.u32 %v1699, 4294901760
  %v2057 = vsub.f32 %v1699, %v2056
  %2058 = vmatpush1.msra.mxu0 %v2057
  %2059 = vmatprep.subr.mxu0 0.0
  %v2060 = vand.u32 %v1698, 4294901760
  %v2061 = vsub.f32 %v1698, %v2060
  %2062 = vmatpush1.msra.mxu0 %v2061
  %2063 = vmatprep.subr.mxu0 0.0
  %v2064 = vand.u32 %v1697, 4294901760
  %v2065 = vsub.f32 %v1697, %v2064
  %2066 = vmatpush1.msra.mxu0 %v2065
  %2067 = vmatprep.subr.mxu0 0.0
  %2068 = vmatpush2.msra.mxu0 0.0
  %2069 = vmatprep.subr.mxu0 0.0
  %2070 = vmatpush2.msra.mxu0 0.0
  %2071 = vmatprep.subr.mxu0 0.0
  %2072 = vmatpush2.msra.mxu0 0.0
  %2073 = vmatprep.subr.mxu0 0.0
  %2074 = vmatpush2.msra.mxu0 0.0
  %2075 = vmatprep.subr.mxu0 0.0
  %2076 = vmatpush2.msra.mxu0 0.0
  %2077 = vmatprep.subr.mxu0 0.0
  %2078 = vmatpush2.msra.mxu0 0.0
  %2079 = vmatprep.subr.mxu0 0.0
  %2080 = vmatpush2.msra.mxu0 0.0
  %2081 = vmatprep.subr.mxu0 0.0
  %2082 = vmatpush2.msra.mxu0 0.0
  %2083 = vmatprep.subr.mxu0 0.0
  %2084 = vmatpush2.msra.mxu0 0.0
  %2085 = vmatprep.subr.mxu0 0.0
  %2086 = vmatpush2.msra.mxu0 0.0
  %2087 = vmatprep.subr.mxu0 0.0
  %2088 = vmatpush2.msra.mxu0 0.0
  %2089 = vmatprep.subr.mxu0 0.0
  %2090 = vmatpush2.msra.mxu0 0.0
  %2091 = vmatprep.subr.mxu0 0.0
  %2092 = vmatpush2.msra.mxu0 0.0
  %2093 = vmatprep.subr.mxu0 0.0
  %2094 = vmatpush2.msra.mxu0 0.0
  %2095 = vmatprep.subr.mxu0 0.0
  %2096 = vmatpush2.msra.mxu0 0.0
  %2097 = vmatprep.subr.mxu0 0.0
  %2098 = vmatpush2.msra.mxu0 0.0
  %2099 = vmatprep.mubr.f32.mxu0 0.0
  %v2100 = vand.u32 %v121, 4294901760
  %v2101 = vsub.f32 %v121, %v2100
  %2102 = vmatmul.mubr.f32.gmra.mxu0 %v2101
  %v2103 = vpop.f32.mrf.mxu0
  %v2104 = vadd.f32 %v1982, %v2103
  %v2105 = vpop.f32.mrf.mxu0
  %2106 = vmatprep.mubr.f32.mxu0 0.0
  %v2107 = vand.u32 %v122, 4294901760
  %v2108 = vsub.f32 %v122, %v2107
  %2109 = vmatmul.mubr.f32.gmra.mxu0 %v2108
  %v2110 = vpop.f32.mrf.mxu0
  %v2111 = vadd.f32 %v1988, %v2110
  %v2112 = vpop.f32.mrf.mxu0
  %2113 = vmatprep.mubr.f32.mxu0 0.0
  %v2114 = vand.u32 %v123, 4294901760
  %v2115 = vsub.f32 %v123, %v2114
  %2116 = vmatmul.mubr.f32.gmra.mxu0 %v2115
  %v2117 = vpop.f32.mrf.mxu0
  %v2118 = vadd.f32 %v1994, %v2117
  %v2119 = vpop.f32.mrf.mxu0
  %2120 = vmatprep.mubr.f32.mxu0 0.0
  %v2121 = vand.u32 %v124, 4294901760
  %v2122 = vsub.f32 %v124, %v2121
  %2123 = vmatmul.mubr.f32.gmra.mxu0 %v2122
  %v2124 = vpop.f32.mrf.mxu0
  %v2125 = vadd.f32 %v2000, %v2124
  %v2126 = vpop.f32.mrf.mxu0
  %2127 = vdwg.mxu0
  %2128 = vmatprep.subr.mxu0 0.0
  %v2129 = vand.u32 %v1712, 4294901760
  %2130 = vmatpush1.msra.mxu0 %v2129
  %2131 = vmatprep.subr.mxu0 0.0
  %v2132 = vand.u32 %v1711, 4294901760
  %2133 = vmatpush1.msra.mxu0 %v2132
  %2134 = vmatprep.subr.mxu0 0.0
  %v2135 = vand.u32 %v1710, 4294901760
  %2136 = vmatpush1.msra.mxu0 %v2135
  %2137 = vmatprep.subr.mxu0 0.0
  %v2138 = vand.u32 %v1709, 4294901760
  %2139 = vmatpush1.msra.mxu0 %v2138
  %2140 = vmatprep.subr.mxu0 0.0
  %v2141 = vand.u32 %v1708, 4294901760
  %2142 = vmatpush1.msra.mxu0 %v2141
  %2143 = vmatprep.subr.mxu0 0.0
  %v2144 = vand.u32 %v1707, 4294901760
  %2145 = vmatpush1.msra.mxu0 %v2144
  %2146 = vmatprep.subr.mxu0 0.0
  %v2147 = vand.u32 %v1706, 4294901760
  %2148 = vmatpush1.msra.mxu0 %v2147
  %2149 = vmatprep.subr.mxu0 0.0
  %v2150 = vand.u32 %v1705, 4294901760
  %2151 = vmatpush1.msra.mxu0 %v2150
  %2152 = vmatprep.subr.mxu0 0.0
  %v2153 = vand.u32 %v1704, 4294901760
  %2154 = vmatpush1.msra.mxu0 %v2153
  %2155 = vmatprep.subr.mxu0 0.0
  %v2156 = vand.u32 %v1703, 4294901760
  %2157 = vmatpush1.msra.mxu0 %v2156
  %2158 = vmatprep.subr.mxu0 0.0
  %v2159 = vand.u32 %v1702, 4294901760
  %2160 = vmatpush1.msra.mxu0 %v2159
  %2161 = vmatprep.subr.mxu0 0.0
  %v2162 = vand.u32 %v1701, 4294901760
  %2163 = vmatpush1.msra.mxu0 %v2162
  %2164 = vmatprep.subr.mxu0 0.0
  %v2165 = vand.u32 %v1700, 4294901760
  %2166 = vmatpush1.msra.mxu0 %v2165
  %2167 = vmatprep.subr.mxu0 0.0
  %v2168 = vand.u32 %v1699, 4294901760
  %2169 = vmatpush1.msra.mxu0 %v2168
  %2170 = vmatprep.subr.mxu0 0.0
  %v2171 = vand.u32 %v1698, 4294901760
  %2172 = vmatpush1.msra.mxu0 %v2171
  %2173 = vmatprep.subr.mxu0 0.0
  %v2174 = vand.u32 %v1697, 4294901760
  %2175 = vmatpush1.msra.mxu0 %v2174
  %2176 = vmatprep.subr.mxu0 0.0
  %2177 = vmatpush2.msra.mxu0 0.0
  %2178 = vmatprep.subr.mxu0 0.0
  %2179 = vmatpush2.msra.mxu0 0.0
  %2180 = vmatprep.subr.mxu0 0.0
  %2181 = vmatpush2.msra.mxu0 0.0
  %2182 = vmatprep.subr.mxu0 0.0
  %2183 = vmatpush2.msra.mxu0 0.0
  %2184 = vmatprep.subr.mxu0 0.0
  %2185 = vmatpush2.msra.mxu0 0.0
  %2186 = vmatprep.subr.mxu0 0.0
  %2187 = vmatpush2.msra.mxu0 0.0
  %2188 = vmatprep.subr.mxu0 0.0
  %2189 = vmatpush2.msra.mxu0 0.0
  %2190 = vmatprep.subr.mxu0 0.0
  %2191 = vmatpush2.msra.mxu0 0.0
  %2192 = vmatprep.subr.mxu0 0.0
  %2193 = vmatpush2.msra.mxu0 0.0
  %2194 = vmatprep.subr.mxu0 0.0
  %2195 = vmatpush2.msra.mxu0 0.0
  %2196 = vmatprep.subr.mxu0 0.0
  %2197 = vmatpush2.msra.mxu0 0.0
  %2198 = vmatprep.subr.mxu0 0.0
  %2199 = vmatpush2.msra.mxu0 0.0
  %2200 = vmatprep.subr.mxu0 0.0
  %2201 = vmatpush2.msra.mxu0 0.0
  %2202 = vmatprep.subr.mxu0 0.0
  %2203 = vmatpush2.msra.mxu0 0.0
  %2204 = vmatprep.subr.mxu0 0.0
  %2205 = vmatpush2.msra.mxu0 0.0
  %2206 = vmatprep.subr.mxu0 0.0
  %2207 = vmatpush2.msra.mxu0 0.0
  %2208 = vmatprep.mubr.f32.mxu0 0.0
  %v2209 = vand.u32 %v121, 4294901760
  %v2210 = vsub.f32 %v121, %v2209
  %v2211 = vand.u32 %v2210, 4294901760
  %2212 = vmatmul.mubr.f32.gmra.mxu0 %v2211
  %v2213 = vpop.f32.mrf.mxu0
  %v2214 = vadd.f32 %v2104, %v2213
  %v2215 = vpop.f32.mrf.mxu0
  %2216 = vmatprep.mubr.f32.mxu0 0.0
  %v2217 = vand.u32 %v122, 4294901760
  %v2218 = vsub.f32 %v122, %v2217
  %v2219 = vand.u32 %v2218, 4294901760
  %2220 = vmatmul.mubr.f32.gmra.mxu0 %v2219
  %v2221 = vpop.f32.mrf.mxu0
  %v2222 = vadd.f32 %v2111, %v2221
  %v2223 = vpop.f32.mrf.mxu0
  %2224 = vmatprep.mubr.f32.mxu0 0.0
  %v2225 = vand.u32 %v123, 4294901760
  %v2226 = vsub.f32 %v123, %v2225
  %v2227 = vand.u32 %v2226, 4294901760
  %2228 = vmatmul.mubr.f32.gmra.mxu0 %v2227
  %v2229 = vpop.f32.mrf.mxu0
  %v2230 = vadd.f32 %v2118, %v2229
  %v2231 = vpop.f32.mrf.mxu0
  %2232 = vmatprep.mubr.f32.mxu0 0.0
  %v2233 = vand.u32 %v124, 4294901760
  %v2234 = vsub.f32 %v124, %v2233
  %v2235 = vand.u32 %v2234, 4294901760
  %2236 = vmatmul.mubr.f32.gmra.mxu0 %v2235
  %v2237 = vpop.f32.mrf.mxu0
  %v2238 = vadd.f32 %v2125, %v2237
  %v2239 = vpop.f32.mrf.mxu0
  %2240 = vdwg.mxu0
  %2241 = vmatprep.subr.mxu0 0.0
  %v2242 = vand.u32 %v1712, 4294901760
  %v2243 = vsub.f32 %v1712, %v2242
  %v2244 = vand.u32 %v2243, 4294901760
  %2245 = vmatpush1.msra.mxu0 %v2244
  %2246 = vmatprep.subr.mxu0 0.0
  %v2247 = vand.u32 %v1711, 4294901760
  %v2248 = vsub.f32 %v1711, %v2247
  %v2249 = vand.u32 %v2248, 4294901760
  %2250 = vmatpush1.msra.mxu0 %v2249
  %2251 = vmatprep.subr.mxu0 0.0
  %v2252 = vand.u32 %v1710, 4294901760
  %v2253 = vsub.f32 %v1710, %v2252
  %v2254 = vand.u32 %v2253, 4294901760
  %2255 = vmatpush1.msra.mxu0 %v2254
  %2256 = vmatprep.subr.mxu0 0.0
  %v2257 = vand.u32 %v1709, 4294901760
  %v2258 = vsub.f32 %v1709, %v2257
  %v2259 = vand.u32 %v2258, 4294901760
  %2260 = vmatpush1.msra.mxu0 %v2259
  %2261 = vmatprep.subr.mxu0 0.0
  %v2262 = vand.u32 %v1708, 4294901760
  %v2263 = vsub.f32 %v1708, %v2262
  %v2264 = vand.u32 %v2263, 4294901760
  %2265 = vmatpush1.msra.mxu0 %v2264
  %2266 = vmatprep.subr.mxu0 0.0
  %v2267 = vand.u32 %v1707, 4294901760
  %v2268 = vsub.f32 %v1707, %v2267
  %v2269 = vand.u32 %v2268, 4294901760
  %2270 = vmatpush1.msra.mxu0 %v2269
  %2271 = vmatprep.subr.mxu0 0.0
  %v2272 = vand.u32 %v1706, 4294901760
  %v2273 = vsub.f32 %v1706, %v2272
  %v2274 = vand.u32 %v2273, 4294901760
  %2275 = vmatpush1.msra.mxu0 %v2274
  %2276 = vmatprep.subr.mxu0 0.0
  %v2277 = vand.u32 %v1705, 4294901760
  %v2278 = vsub.f32 %v1705, %v2277
  %v2279 = vand.u32 %v2278, 4294901760
  %2280 = vmatpush1.msra.mxu0 %v2279
  %2281 = vmatprep.subr.mxu0 0.0
  %v2282 = vand.u32 %v1704, 4294901760
  %v2283 = vsub.f32 %v1704, %v2282
  %v2284 = vand.u32 %v2283, 4294901760
  %2285 = vmatpush1.msra.mxu0 %v2284
  %2286 = vmatprep.subr.mxu0 0.0
  %v2287 = vand.u32 %v1703, 4294901760
  %v2288 = vsub.f32 %v1703, %v2287
  %v2289 = vand.u32 %v2288, 4294901760
  %2290 = vmatpush1.msra.mxu0 %v2289
  %2291 = vmatprep.subr.mxu0 0.0
  %v2292 = vand.u32 %v1702, 4294901760
  %v2293 = vsub.f32 %v1702, %v2292
  %v2294 = vand.u32 %v2293, 4294901760
  %2295 = vmatpush1.msra.mxu0 %v2294
  %2296 = vmatprep.subr.mxu0 0.0
  %v2297 = vand.u32 %v1701, 4294901760
  %v2298 = vsub.f32 %v1701, %v2297
  %v2299 = vand.u32 %v2298, 4294901760
  %2300 = vmatpush1.msra.mxu0 %v2299
  %2301 = vmatprep.subr.mxu0 0.0
  %v2302 = vand.u32 %v1700, 4294901760
  %v2303 = vsub.f32 %v1700, %v2302
  %v2304 = vand.u32 %v2303, 4294901760
  %2305 = vmatpush1.msra.mxu0 %v2304
  %2306 = vmatprep.subr.mxu0 0.0
  %v2307 = vand.u32 %v1699, 4294901760
  %v2308 = vsub.f32 %v1699, %v2307
  %v2309 = vand.u32 %v2308, 4294901760
  %2310 = vmatpush1.msra.mxu0 %v2309
  %2311 = vmatprep.subr.mxu0 0.0
  %v2312 = vand.u32 %v1698, 4294901760
  %v2313 = vsub.f32 %v1698, %v2312
  %v2314 = vand.u32 %v2313, 4294901760
  %2315 = vmatpush1.msra.mxu0 %v2314
  %2316 = vmatprep.subr.mxu0 0.0
  %v2317 = vand.u32 %v1697, 4294901760
  %v2318 = vsub.f32 %v1697, %v2317
  %v2319 = vand.u32 %v2318, 4294901760
  %2320 = vmatpush1.msra.mxu0 %v2319
  %2321 = vmatprep.subr.mxu0 0.0
  %2322 = vmatpush2.msra.mxu0 0.0
  %2323 = vmatprep.subr.mxu0 0.0
  %2324 = vmatpush2.msra.mxu0 0.0
  %2325 = vmatprep.subr.mxu0 0.0
  %2326 = vmatpush2.msra.mxu0 0.0
  %2327 = vmatprep.subr.mxu0 0.0
  %2328 = vmatpush2.msra.mxu0 0.0
  %2329 = vmatprep.subr.mxu0 0.0
  %2330 = vmatpush2.msra.mxu0 0.0
  %2331 = vmatprep.subr.mxu0 0.0
  %2332 = vmatpush2.msra.mxu0 0.0
  %2333 = vmatprep.subr.mxu0 0.0
  %2334 = vmatpush2.msra.mxu0 0.0
  %2335 = vmatprep.subr.mxu0 0.0
  %2336 = vmatpush2.msra.mxu0 0.0
  %2337 = vmatprep.subr.mxu0 0.0
  %2338 = vmatpush2.msra.mxu0 0.0
  %2339 = vmatprep.subr.mxu0 0.0
  %2340 = vmatpush2.msra.mxu0 0.0
  %2341 = vmatprep.subr.mxu0 0.0
  %2342 = vmatpush2.msra.mxu0 0.0
  %2343 = vmatprep.subr.mxu0 0.0
  %2344 = vmatpush2.msra.mxu0 0.0
  %2345 = vmatprep.subr.mxu0 0.0
  %2346 = vmatpush2.msra.mxu0 0.0
  %2347 = vmatprep.subr.mxu0 0.0
  %2348 = vmatpush2.msra.mxu0 0.0
  %2349 = vmatprep.subr.mxu0 0.0
  %2350 = vmatpush2.msra.mxu0 0.0
  %2351 = vmatprep.subr.mxu0 0.0
  %2352 = vmatpush2.msra.mxu0 0.0
  %2353 = vmatprep.mubr.f32.mxu0 0.0
  %v2354 = vand.u32 %v121, 4294901760
  %2355 = vmatmul.mubr.f32.gmra.mxu0 %v2354
  %v2356 = vpop.f32.mrf.mxu0
  %v2357 = vadd.f32 %v2214, %v2356
  %v2358 = vpop.f32.mrf.mxu0
  %2359 = vmatprep.mubr.f32.mxu0 0.0
  %v2360 = vand.u32 %v122, 4294901760
  %2361 = vmatmul.mubr.f32.gmra.mxu0 %v2360
  %v2362 = vpop.f32.mrf.mxu0
  %v2363 = vadd.f32 %v2222, %v2362
  %v2364 = vpop.f32.mrf.mxu0
  %2365 = vmatprep.mubr.f32.mxu0 0.0
  %v2366 = vand.u32 %v123, 4294901760
  %2367 = vmatmul.mubr.f32.gmra.mxu0 %v2366
  %v2368 = vpop.f32.mrf.mxu0
  %v2369 = vadd.f32 %v2230, %v2368
  %v2370 = vpop.f32.mrf.mxu0
  %2371 = vmatprep.mubr.f32.mxu0 0.0
  %v2372 = vand.u32 %v124, 4294901760
  %2373 = vmatmul.mubr.f32.gmra.mxu0 %v2372
  %v2374 = vpop.f32.mrf.mxu0
  %v2375 = vadd.f32 %v2238, %v2374
  %v2376 = vpop.f32.mrf.mxu0
  %2377 = vdwg.mxu0
  %2378 = vmatprep.subr.mxu0 0.0
  %v2379 = vand.u32 %v1712, 4294901760
  %2380 = vmatpush1.msra.mxu0 %v2379
  %2381 = vmatprep.subr.mxu0 0.0
  %v2382 = vand.u32 %v1711, 4294901760
  %2383 = vmatpush1.msra.mxu0 %v2382
  %2384 = vmatprep.subr.mxu0 0.0
  %v2385 = vand.u32 %v1710, 4294901760
  %2386 = vmatpush1.msra.mxu0 %v2385
  %2387 = vmatprep.subr.mxu0 0.0
  %v2388 = vand.u32 %v1709, 4294901760
  %2389 = vmatpush1.msra.mxu0 %v2388
  %2390 = vmatprep.subr.mxu0 0.0
  %v2391 = vand.u32 %v1708, 4294901760
  %2392 = vmatpush1.msra.mxu0 %v2391
  %2393 = vmatprep.subr.mxu0 0.0
  %v2394 = vand.u32 %v1707, 4294901760
  %2395 = vmatpush1.msra.mxu0 %v2394
  %2396 = vmatprep.subr.mxu0 0.0
  %v2397 = vand.u32 %v1706, 4294901760
  %2398 = vmatpush1.msra.mxu0 %v2397
  %2399 = vmatprep.subr.mxu0 0.0
  %v2400 = vand.u32 %v1705, 4294901760
  %2401 = vmatpush1.msra.mxu0 %v2400
  %2402 = vmatprep.subr.mxu0 0.0
  %v2403 = vand.u32 %v1704, 4294901760
  %2404 = vmatpush1.msra.mxu0 %v2403
  %2405 = vmatprep.subr.mxu0 0.0
  %v2406 = vand.u32 %v1703, 4294901760
  %2407 = vmatpush1.msra.mxu0 %v2406
  %2408 = vmatprep.subr.mxu0 0.0
  %v2409 = vand.u32 %v1702, 4294901760
  %2410 = vmatpush1.msra.mxu0 %v2409
  %2411 = vmatprep.subr.mxu0 0.0
  %v2412 = vand.u32 %v1701, 4294901760
  %2413 = vmatpush1.msra.mxu0 %v2412
  %2414 = vmatprep.subr.mxu0 0.0
  %v2415 = vand.u32 %v1700, 4294901760
  %2416 = vmatpush1.msra.mxu0 %v2415
  %2417 = vmatprep.subr.mxu0 0.0
  %v2418 = vand.u32 %v1699, 4294901760
  %2419 = vmatpush1.msra.mxu0 %v2418
  %2420 = vmatprep.subr.mxu0 0.0
  %v2421 = vand.u32 %v1698, 4294901760
  %2422 = vmatpush1.msra.mxu0 %v2421
  %2423 = vmatprep.subr.mxu0 0.0
  %v2424 = vand.u32 %v1697, 4294901760
  %2425 = vmatpush1.msra.mxu0 %v2424
  %2426 = vmatprep.subr.mxu0 0.0
  %2427 = vmatpush2.msra.mxu0 0.0
  %2428 = vmatprep.subr.mxu0 0.0
  %2429 = vmatpush2.msra.mxu0 0.0
  %2430 = vmatprep.subr.mxu0 0.0
  %2431 = vmatpush2.msra.mxu0 0.0
  %2432 = vmatprep.subr.mxu0 0.0
  %2433 = vmatpush2.msra.mxu0 0.0
  %2434 = vmatprep.subr.mxu0 0.0
  %2435 = vmatpush2.msra.mxu0 0.0
  %2436 = vmatprep.subr.mxu0 0.0
  %2437 = vmatpush2.msra.mxu0 0.0
  %2438 = vmatprep.subr.mxu0 0.0
  %2439 = vmatpush2.msra.mxu0 0.0
  %2440 = vmatprep.subr.mxu0 0.0
  %2441 = vmatpush2.msra.mxu0 0.0
  %2442 = vmatprep.subr.mxu0 0.0
  %2443 = vmatpush2.msra.mxu0 0.0
  %2444 = vmatprep.subr.mxu0 0.0
  %2445 = vmatpush2.msra.mxu0 0.0
  %2446 = vmatprep.subr.mxu0 0.0
  %2447 = vmatpush2.msra.mxu0 0.0
  %2448 = vmatprep.subr.mxu0 0.0
  %2449 = vmatpush2.msra.mxu0 0.0
  %2450 = vmatprep.subr.mxu0 0.0
  %2451 = vmatpush2.msra.mxu0 0.0
  %2452 = vmatprep.subr.mxu0 0.0
  %2453 = vmatpush2.msra.mxu0 0.0
  %2454 = vmatprep.subr.mxu0 0.0
  %2455 = vmatpush2.msra.mxu0 0.0
  %2456 = vmatprep.subr.mxu0 0.0
  %2457 = vmatpush2.msra.mxu0 0.0
  %2458 = vmatprep.mubr.f32.mxu0 0.0
  %v2459 = vand.u32 %v121, 4294901760
  %2460 = vmatmul.mubr.f32.gmra.mxu0 %v2459
  %v2461 = vpop.f32.mrf.mxu0
  %v2462 = vadd.f32 %v2357, %v2461
  %v2463 = vpop.f32.mrf.mxu0
  %2464 = vmatprep.mubr.f32.mxu0 0.0
  %v2465 = vand.u32 %v122, 4294901760
  %2466 = vmatmul.mubr.f32.gmra.mxu0 %v2465
  %v2467 = vpop.f32.mrf.mxu0
  %v2468 = vadd.f32 %v2363, %v2467
  %v2469 = vpop.f32.mrf.mxu0
  %2470 = vmatprep.mubr.f32.mxu0 0.0
  %v2471 = vand.u32 %v123, 4294901760
  %2472 = vmatmul.mubr.f32.gmra.mxu0 %v2471
  %v2473 = vpop.f32.mrf.mxu0
  %v2474 = vadd.f32 %v2369, %v2473
  %v2475 = vpop.f32.mrf.mxu0
  %2476 = vmatprep.mubr.f32.mxu0 0.0
  %v2477 = vand.u32 %v124, 4294901760
  %2478 = vmatmul.mubr.f32.gmra.mxu0 %v2477
  %v2479 = vpop.f32.mrf.mxu0
  %v2480 = vadd.f32 %v2375, %v2479
  %v2481 = vpop.f32.mrf.mxu0
  %2482 = vdwg.mxu0
  %v2483 = vadd.f32 %v1676, %v2462
  %v2484 = vadd.f32 %v1682, %v2468
  %v2485 = vadd.f32 %v1688, %v2474
  %v2486 = vadd.f32 %v1694, %v2480
  %v2487 = vlaneseq
  %v2488 = vshrl.u32 %v2487, 7
  %v2489 = vsub.s32 0, %v2488
  %v2490 = vrot.slane %v21, %v2489
  %v2491 = vadd.f32 %v2483, %v2490
  %v2492 = vadd.f32 %v2484, %v2490
  %v2493 = vadd.f32 %v2485, %v2490
  %v2494 = vadd.f32 %v2486, %v2490
  %v2495 = vmax.f32 %v2491, 0.0
  %v2496 = vmax.f32 %v2492, 0.0
  %v2497 = vmax.f32 %v2493, 0.0
  %v2498 = vmax.f32 %v2494, 0.0
  %v2499 = vrot.slane %v2495, 7
  %v2500 = vrot.slane %v2496, 7
  %v2501 = vrot.slane %v2497, 7
  %v2502 = vrot.slane %v2498, 7
  %v2503 = vsel %vm87, %v2501, %v2502
  %v2504 = vsel %vm87, %v2500, %v2501
  %v2505 = vsel %vm87, %v2499, %v2500
  %v2506 = vsel %vm87, %v2502, %v2499
  %v2507 = vrot.slane %v2495, 1
  %v2508 = vrot.slane %v2496, 1
  %v2509 = vrot.slane %v2497, 1
  %v2510 = vrot.slane %v2498, 1
  %v2511 = vsel %vm96, %v2509, %v2510
  %v2512 = vsel %vm96, %v2508, %v2509
  %v2513 = vsel %vm96, %v2507, %v2508
  %v2514 = vsel %vm96, %v2510, %v2507
  %v2515 = vsel %vm105, %v2513, %v2506
  %v2516 = vsel %vm106, %v2512, %v2505
  %v2517 = vsel %vm107, %v2511, %v2504
  %v2518 = vsel %vm108, %v2514, %v2503
  %v2519 = vsel %vm117, %v2506, %v2513
  %v2520 = vsel %vm118, %v2505, %v2512
  %v2521 = vsel %vm119, %v2504, %v2511
  %v2522 = vsel %vm120, %v2503, %v2514
  %v2523 = vld [vmem:[%s2] sm:$0xff]
  %v2524 = vld [vmem:[%s2 + $0x8] sm:$0xff]
  %v2525 = vld [vmem:[%s2 + $0x10] sm:$0xff]
  %v2526 = vld [vmem:[%s2 + $0x18] sm:$0xff]
  %v2527 = vld [vmem:[%s2 + $0x20] sm:$0xff]
  %v2528 = vld [vmem:[%s2 + $0x28] sm:$0xff]
  %v2529 = vld [vmem:[%s2 + $0x30] sm:$0xff]
  %v2530 = vld [vmem:[%s2 + $0x38] sm:$0xff]
  %v2531 = vld [vmem:[%s2 + $0x40] sm:$0xff]
  %v2532 = vld [vmem:[%s2 + $0x48] sm:$0xff]
  %v2533 = vld [vmem:[%s2 + $0x50] sm:$0xff]
  %v2534 = vld [vmem:[%s2 + $0x58] sm:$0xff]
  %v2535 = vld [vmem:[%s2 + $0x60] sm:$0xff]
  %v2536 = vld [vmem:[%s2 + $0x68] sm:$0xff]
  %v2537 = vld [vmem:[%s2 + $0x70] sm:$0xff]
  %v2538 = vld [vmem:[%s2 + $0x78] sm:$0xff]
  %v2539 = vld [vmem:[%s2 + $0x80] sm:$0xff]
  %v2540 = vld [vmem:[%s2 + $0x88] sm:$0xff]
  %v2541 = vld [vmem:[%s2 + $0x90] sm:$0xff]
  %v2542 = vld [vmem:[%s2 + $0x98] sm:$0xff]
  %v2543 = vld [vmem:[%s2 + $0xa0] sm:$0xff]
  %v2544 = vld [vmem:[%s2 + $0xa8] sm:$0xff]
  %v2545 = vld [vmem:[%s2 + $0xb0] sm:$0xff]
  %v2546 = vld [vmem:[%s2 + $0xb8] sm:$0xff]
  %v2547 = vld [vmem:[%s2 + $0xc0] sm:$0xff]
  %v2548 = vld [vmem:[%s2 + $0xc8] sm:$0xff]
  %v2549 = vld [vmem:[%s2 + $0xd0] sm:$0xff]
  %v2550 = vld [vmem:[%s2 + $0xd8] sm:$0xff]
  %v2551 = vld [vmem:[%s2 + $0xe0] sm:$0xff]
  %v2552 = vld [vmem:[%s2 + $0xe8] sm:$0xff]
  %v2553 = vld [vmem:[%s2 + $0xf0] sm:$0xff]
  %v2554 = vld [vmem:[%s2 + $0xf8] sm:$0xff]
  %2555 = vmatprep.subr.mxu0 0.0
  %v2556 = vand.u32 %v2554, 4294901760
  %2557 = vmatpush1.msra.mxu0 %v2556
  %2558 = vmatprep.subr.mxu0 0.0
  %v2559 = vand.u32 %v2553, 4294901760
  %2560 = vmatpush1.msra.mxu0 %v2559
  %2561 = vmatprep.subr.mxu0 0.0
  %v2562 = vand.u32 %v2552, 4294901760
  %2563 = vmatpush1.msra.mxu0 %v2562
  %2564 = vmatprep.subr.mxu0 0.0
  %v2565 = vand.u32 %v2551, 4294901760
  %2566 = vmatpush1.msra.mxu0 %v2565
  %2567 = vmatprep.subr.mxu0 0.0
  %v2568 = vand.u32 %v2550, 4294901760
  %2569 = vmatpush1.msra.mxu0 %v2568
  %2570 = vmatprep.subr.mxu0 0.0
  %v2571 = vand.u32 %v2549, 4294901760
  %2572 = vmatpush1.msra.mxu0 %v2571
  %2573 = vmatprep.subr.mxu0 0.0
  %v2574 = vand.u32 %v2548, 4294901760
  %2575 = vmatpush1.msra.mxu0 %v2574
  %2576 = vmatprep.subr.mxu0 0.0
  %v2577 = vand.u32 %v2547, 4294901760
  %2578 = vmatpush1.msra.mxu0 %v2577
  %2579 = vmatprep.subr.mxu0 0.0
  %v2580 = vand.u32 %v2546, 4294901760
  %2581 = vmatpush1.msra.mxu0 %v2580
  %2582 = vmatprep.subr.mxu0 0.0
  %v2583 = vand.u32 %v2545, 4294901760
  %2584 = vmatpush1.msra.mxu0 %v2583
  %2585 = vmatprep.subr.mxu0 0.0
  %v2586 = vand.u32 %v2544, 4294901760
  %2587 = vmatpush1.msra.mxu0 %v2586
  %2588 = vmatprep.subr.mxu0 0.0
  %v2589 = vand.u32 %v2543, 4294901760
  %2590 = vmatpush1.msra.mxu0 %v2589
  %2591 = vmatprep.subr.mxu0 0.0
  %v2592 = vand.u32 %v2542, 4294901760
  %2593 = vmatpush1.msra.mxu0 %v2592
  %2594 = vmatprep.subr.mxu0 0.0
  %v2595 = vand.u32 %v2541, 4294901760
  %2596 = vmatpush1.msra.mxu0 %v2595
  %2597 = vmatprep.subr.mxu0 0.0
  %v2598 = vand.u32 %v2540, 4294901760
  %2599 = vmatpush1.msra.mxu0 %v2598
  %2600 = vmatprep.subr.mxu0 0.0
  %v2601 = vand.u32 %v2539, 4294901760
  %2602 = vmatpush1.msra.mxu0 %v2601
  %2603 = vmatprep.subr.mxu0 0.0
  %2604 = vmatpush2.msra.mxu0 0.0
  %2605 = vmatprep.subr.mxu0 0.0
  %2606 = vmatpush2.msra.mxu0 0.0
  %2607 = vmatprep.subr.mxu0 0.0
  %2608 = vmatpush2.msra.mxu0 0.0
  %2609 = vmatprep.subr.mxu0 0.0
  %2610 = vmatpush2.msra.mxu0 0.0
  %2611 = vmatprep.subr.mxu0 0.0
  %2612 = vmatpush2.msra.mxu0 0.0
  %2613 = vmatprep.subr.mxu0 0.0
  %2614 = vmatpush2.msra.mxu0 0.0
  %2615 = vmatprep.subr.mxu0 0.0
  %2616 = vmatpush2.msra.mxu0 0.0
  %2617 = vmatprep.subr.mxu0 0.0
  %2618 = vmatpush2.msra.mxu0 0.0
  %2619 = vmatprep.subr.mxu0 0.0
  %2620 = vmatpush2.msra.mxu0 0.0
  %2621 = vmatprep.subr.mxu0 0.0
  %2622 = vmatpush2.msra.mxu0 0.0
  %2623 = vmatprep.subr.mxu0 0.0
  %2624 = vmatpush2.msra.mxu0 0.0
  %2625 = vmatprep.subr.mxu0 0.0
  %2626 = vmatpush2.msra.mxu0 0.0
  %2627 = vmatprep.subr.mxu0 0.0
  %2628 = vmatpush2.msra.mxu0 0.0
  %2629 = vmatprep.subr.mxu0 0.0
  %2630 = vmatpush2.msra.mxu0 0.0
  %2631 = vmatprep.subr.mxu0 0.0
  %2632 = vmatpush2.msra.mxu0 0.0
  %2633 = vmatprep.subr.mxu0 0.0
  %2634 = vmatpush2.msra.mxu0 0.0
  %2635 = vmatprep.mubr.f32.mxu0 0.0
  %v2636 = vand.u32 %v2495, 4294901760
  %v2637 = vsub.f32 %v2495, %v2636
  %v2638 = vand.u32 %v2637, 4294901760
  %v2639 = vsub.f32 %v2637, %v2638
  %v2640 = vand.u32 %v2639, 4294901760
  %2641 = vmatmul.mubr.f32.gmra.mxu0 %v2640
  %v2642 = vpop.f32.mrf.mxu0
  %v2643 = vadd.f32 0.0, %v2642
  %v2644 = vpop.f32.mrf.mxu0
  %2645 = vmatprep.mubr.f32.mxu0 0.0
  %v2646 = vand.u32 %v2496, 4294901760
  %v2647 = vsub.f32 %v2496, %v2646
  %v2648 = vand.u32 %v2647, 4294901760
  %v2649 = vsub.f32 %v2647, %v2648
  %v2650 = vand.u32 %v2649, 4294901760
  %2651 = vmatmul.mubr.f32.gmra.mxu0 %v2650
  %v2652 = vpop.f32.mrf.mxu0
  %v2653 = vadd.f32 0.0, %v2652
  %v2654 = vpop.f32.mrf.mxu0
  %2655 = vmatprep.mubr.f32.mxu0 0.0
  %v2656 = vand.u32 %v2497, 4294901760
  %v2657 = vsub.f32 %v2497, %v2656
  %v2658 = vand.u32 %v2657, 4294901760
  %v2659 = vsub.f32 %v2657, %v2658
  %v2660 = vand.u32 %v2659, 4294901760
  %2661 = vmatmul.mubr.f32.gmra.mxu0 %v2660
  %v2662 = vpop.f32.mrf.mxu0
  %v2663 = vadd.f32 0.0, %v2662
  %v2664 = vpop.f32.mrf.mxu0
  %2665 = vmatprep.mubr.f32.mxu0 0.0
  %v2666 = vand.u32 %v2498, 4294901760
  %v2667 = vsub.f32 %v2498, %v2666
  %v2668 = vand.u32 %v2667, 4294901760
  %v2669 = vsub.f32 %v2667, %v2668
  %v2670 = vand.u32 %v2669, 4294901760
  %2671 = vmatmul.mubr.f32.gmra.mxu0 %v2670
  %v2672 = vpop.f32.mrf.mxu0
  %v2673 = vadd.f32 0.0, %v2672
  %v2674 = vpop.f32.mrf.mxu0
  %2675 = vdwg.mxu0
  %2676 = vmatprep.subr.mxu0 0.0
  %v2677 = vand.u32 %v2554, 4294901760
  %v2678 = vsub.f32 %v2554, %v2677
  %v2679 = vand.u32 %v2678, 4294901760
  %v2680 = vsub.f32 %v2678, %v2679
  %v2681 = vand.u32 %v2680, 4294901760
  %2682 = vmatpush1.msra.mxu0 %v2681
  %2683 = vmatprep.subr.mxu0 0.0
  %v2684 = vand.u32 %v2553, 4294901760
  %v2685 = vsub.f32 %v2553, %v2684
  %v2686 = vand.u32 %v2685, 4294901760
  %v2687 = vsub.f32 %v2685, %v2686
  %v2688 = vand.u32 %v2687, 4294901760
  %2689 = vmatpush1.msra.mxu0 %v2688
  %2690 = vmatprep.subr.mxu0 0.0
  %v2691 = vand.u32 %v2552, 4294901760
  %v2692 = vsub.f32 %v2552, %v2691
  %v2693 = vand.u32 %v2692, 4294901760
  %v2694 = vsub.f32 %v2692, %v2693
  %v2695 = vand.u32 %v2694, 4294901760
  %2696 = vmatpush1.msra.mxu0 %v2695
  %2697 = vmatprep.subr.mxu0 0.0
  %v2698 = vand.u32 %v2551, 4294901760
  %v2699 = vsub.f32 %v2551, %v2698
  %v2700 = vand.u32 %v2699, 4294901760
  %v2701 = vsub.f32 %v2699, %v2700
  %v2702 = vand.u32 %v2701, 4294901760
  %2703 = vmatpush1.msra.mxu0 %v2702
  %2704 = vmatprep.subr.mxu0 0.0
  %v2705 = vand.u32 %v2550, 4294901760
  %v2706 = vsub.f32 %v2550, %v2705
  %v2707 = vand.u32 %v2706, 4294901760
  %v2708 = vsub.f32 %v2706, %v2707
  %v2709 = vand.u32 %v2708, 4294901760
  %2710 = vmatpush1.msra.mxu0 %v2709
  %2711 = vmatprep.subr.mxu0 0.0
  %v2712 = vand.u32 %v2549, 4294901760
  %v2713 = vsub.f32 %v2549, %v2712
  %v2714 = vand.u32 %v2713, 4294901760
  %v2715 = vsub.f32 %v2713, %v2714
  %v2716 = vand.u32 %v2715, 4294901760
  %2717 = vmatpush1.msra.mxu0 %v2716
  %2718 = vmatprep.subr.mxu0 0.0
  %v2719 = vand.u32 %v2548, 4294901760
  %v2720 = vsub.f32 %v2548, %v2719
  %v2721 = vand.u32 %v2720, 4294901760
  %v2722 = vsub.f32 %v2720, %v2721
  %v2723 = vand.u32 %v2722, 4294901760
  %2724 = vmatpush1.msra.mxu0 %v2723
  %2725 = vmatprep.subr.mxu0 0.0
  %v2726 = vand.u32 %v2547, 4294901760
  %v2727 = vsub.f32 %v2547, %v2726
  %v2728 = vand.u32 %v2727, 4294901760
  %v2729 = vsub.f32 %v2727, %v2728
  %v2730 = vand.u32 %v2729, 4294901760
  %2731 = vmatpush1.msra.mxu0 %v2730
  %2732 = vmatprep.subr.mxu0 0.0
  %v2733 = vand.u32 %v2546, 4294901760
  %v2734 = vsub.f32 %v2546, %v2733
  %v2735 = vand.u32 %v2734, 4294901760
  %v2736 = vsub.f32 %v2734, %v2735
  %v2737 = vand.u32 %v2736, 4294901760
  %2738 = vmatpush1.msra.mxu0 %v2737
  %2739 = vmatprep.subr.mxu0 0.0
  %v2740 = vand.u32 %v2545, 4294901760
  %v2741 = vsub.f32 %v2545, %v2740
  %v2742 = vand.u32 %v2741, 4294901760
  %v2743 = vsub.f32 %v2741, %v2742
  %v2744 = vand.u32 %v2743, 4294901760
  %2745 = vmatpush1.msra.mxu0 %v2744
  %2746 = vmatprep.subr.mxu0 0.0
  %v2747 = vand.u32 %v2544, 4294901760
  %v2748 = vsub.f32 %v2544, %v2747
  %v2749 = vand.u32 %v2748, 4294901760
  %v2750 = vsub.f32 %v2748, %v2749
  %v2751 = vand.u32 %v2750, 4294901760
  %2752 = vmatpush1.msra.mxu0 %v2751
  %2753 = vmatprep.subr.mxu0 0.0
  %v2754 = vand.u32 %v2543, 4294901760
  %v2755 = vsub.f32 %v2543, %v2754
  %v2756 = vand.u32 %v2755, 4294901760
  %v2757 = vsub.f32 %v2755, %v2756
  %v2758 = vand.u32 %v2757, 4294901760
  %2759 = vmatpush1.msra.mxu0 %v2758
  %2760 = vmatprep.subr.mxu0 0.0
  %v2761 = vand.u32 %v2542, 4294901760
  %v2762 = vsub.f32 %v2542, %v2761
  %v2763 = vand.u32 %v2762, 4294901760
  %v2764 = vsub.f32 %v2762, %v2763
  %v2765 = vand.u32 %v2764, 4294901760
  %2766 = vmatpush1.msra.mxu0 %v2765
  %2767 = vmatprep.subr.mxu0 0.0
  %v2768 = vand.u32 %v2541, 4294901760
  %v2769 = vsub.f32 %v2541, %v2768
  %v2770 = vand.u32 %v2769, 4294901760
  %v2771 = vsub.f32 %v2769, %v2770
  %v2772 = vand.u32 %v2771, 4294901760
  %2773 = vmatpush1.msra.mxu0 %v2772
  %2774 = vmatprep.subr.mxu0 0.0
  %v2775 = vand.u32 %v2540, 4294901760
  %v2776 = vsub.f32 %v2540, %v2775
  %v2777 = vand.u32 %v2776, 4294901760
  %v2778 = vsub.f32 %v2776, %v2777
  %v2779 = vand.u32 %v2778, 4294901760
  %2780 = vmatpush1.msra.mxu0 %v2779
  %2781 = vmatprep.subr.mxu0 0.0
  %v2782 = vand.u32 %v2539, 4294901760
  %v2783 = vsub.f32 %v2539, %v2782
  %v2784 = vand.u32 %v2783, 4294901760
  %v2785 = vsub.f32 %v2783, %v2784
  %v2786 = vand.u32 %v2785, 4294901760
  %2787 = vmatpush1.msra.mxu0 %v2786
  %2788 = vmatprep.subr.mxu0 0.0
  %2789 = vmatpush2.msra.mxu0 0.0
  %2790 = vmatprep.subr.mxu0 0.0
  %2791 = vmatpush2.msra.mxu0 0.0
  %2792 = vmatprep.subr.mxu0 0.0
  %2793 = vmatpush2.msra.mxu0 0.0
  %2794 = vmatprep.subr.mxu0 0.0
  %2795 = vmatpush2.msra.mxu0 0.0
  %2796 = vmatprep.subr.mxu0 0.0
  %2797 = vmatpush2.msra.mxu0 0.0
  %2798 = vmatprep.subr.mxu0 0.0
  %2799 = vmatpush2.msra.mxu0 0.0
  %2800 = vmatprep.subr.mxu0 0.0
  %2801 = vmatpush2.msra.mxu0 0.0
  %2802 = vmatprep.subr.mxu0 0.0
  %2803 = vmatpush2.msra.mxu0 0.0
  %2804 = vmatprep.subr.mxu0 0.0
  %2805 = vmatpush2.msra.mxu0 0.0
  %2806 = vmatprep.subr.mxu0 0.0
  %2807 = vmatpush2.msra.mxu0 0.0
  %2808 = vmatprep.subr.mxu0 0.0
  %2809 = vmatpush2.msra.mxu0 0.0
  %2810 = vmatprep.subr.mxu0 0.0
  %2811 = vmatpush2.msra.mxu0 0.0
  %2812 = vmatprep.subr.mxu0 0.0
  %2813 = vmatpush2.msra.mxu0 0.0
  %2814 = vmatprep.subr.mxu0 0.0
  %2815 = vmatpush2.msra.mxu0 0.0
  %2816 = vmatprep.subr.mxu0 0.0
  %2817 = vmatpush2.msra.mxu0 0.0
  %2818 = vmatprep.subr.mxu0 0.0
  %2819 = vmatpush2.msra.mxu0 0.0
  %2820 = vmatprep.mubr.f32.mxu0 0.0
  %v2821 = vand.u32 %v2495, 4294901760
  %2822 = vmatmul.mubr.f32.gmra.mxu0 %v2821
  %v2823 = vpop.f32.mrf.mxu0
  %v2824 = vadd.f32 %v2643, %v2823
  %v2825 = vpop.f32.mrf.mxu0
  %2826 = vmatprep.mubr.f32.mxu0 0.0
  %v2827 = vand.u32 %v2496, 4294901760
  %2828 = vmatmul.mubr.f32.gmra.mxu0 %v2827
  %v2829 = vpop.f32.mrf.mxu0
  %v2830 = vadd.f32 %v2653, %v2829
  %v2831 = vpop.f32.mrf.mxu0
  %2832 = vmatprep.mubr.f32.mxu0 0.0
  %v2833 = vand.u32 %v2497, 4294901760
  %2834 = vmatmul.mubr.f32.gmra.mxu0 %v2833
  %v2835 = vpop.f32.mrf.mxu0
  %v2836 = vadd.f32 %v2663, %v2835
  %v2837 = vpop.f32.mrf.mxu0
  %2838 = vmatprep.mubr.f32.mxu0 0.0
  %v2839 = vand.u32 %v2498, 4294901760
  %2840 = vmatmul.mubr.f32.gmra.mxu0 %v2839
  %v2841 = vpop.f32.mrf.mxu0
  %v2842 = vadd.f32 %v2673, %v2841
  %v2843 = vpop.f32.mrf.mxu0
  %2844 = vdwg.mxu0
  %2845 = vmatprep.subr.mxu0 0.0
  %v2846 = vand.u32 %v2554, 4294901760
  %v2847 = vsub.f32 %v2554, %v2846
  %2848 = vmatpush1.msra.mxu0 %v2847
  %2849 = vmatprep.subr.mxu0 0.0
  %v2850 = vand.u32 %v2553, 4294901760
  %v2851 = vsub.f32 %v2553, %v2850
  %2852 = vmatpush1.msra.mxu0 %v2851
  %2853 = vmatprep.subr.mxu0 0.0
  %v2854 = vand.u32 %v2552, 4294901760
  %v2855 = vsub.f32 %v2552, %v2854
  %2856 = vmatpush1.msra.mxu0 %v2855
  %2857 = vmatprep.subr.mxu0 0.0
  %v2858 = vand.u32 %v2551, 4294901760
  %v2859 = vsub.f32 %v2551, %v2858
  %2860 = vmatpush1.msra.mxu0 %v2859
  %2861 = vmatprep.subr.mxu0 0.0
  %v2862 = vand.u32 %v2550, 4294901760
  %v2863 = vsub.f32 %v2550, %v2862
  %2864 = vmatpush1.msra.mxu0 %v2863
  %2865 = vmatprep.subr.mxu0 0.0
  %v2866 = vand.u32 %v2549, 4294901760
  %v2867 = vsub.f32 %v2549, %v2866
  %2868 = vmatpush1.msra.mxu0 %v2867
  %2869 = vmatprep.subr.mxu0 0.0
  %v2870 = vand.u32 %v2548, 4294901760
  %v2871 = vsub.f32 %v2548, %v2870
  %2872 = vmatpush1.msra.mxu0 %v2871
  %2873 = vmatprep.subr.mxu0 0.0
  %v2874 = vand.u32 %v2547, 4294901760
  %v2875 = vsub.f32 %v2547, %v2874
  %2876 = vmatpush1.msra.mxu0 %v2875
  %2877 = vmatprep.subr.mxu0 0.0
  %v2878 = vand.u32 %v2546, 4294901760
  %v2879 = vsub.f32 %v2546, %v2878
  %2880 = vmatpush1.msra.mxu0 %v2879
  %2881 = vmatprep.subr.mxu0 0.0
  %v2882 = vand.u32 %v2545, 4294901760
  %v2883 = vsub.f32 %v2545, %v2882
  %2884 = vmatpush1.msra.mxu0 %v2883
  %2885 = vmatprep.subr.mxu0 0.0
  %v2886 = vand.u32 %v2544, 4294901760
  %v2887 = vsub.f32 %v2544, %v2886
  %2888 = vmatpush1.msra.mxu0 %v2887
  %2889 = vmatprep.subr.mxu0 0.0
  %v2890 = vand.u32 %v2543, 4294901760
  %v2891 = vsub.f32 %v2543, %v2890
  %2892 = vmatpush1.msra.mxu0 %v2891
  %2893 = vmatprep.subr.mxu0 0.0
  %v2894 = vand.u32 %v2542, 4294901760
  %v2895 = vsub.f32 %v2542, %v2894
  %2896 = vmatpush1.msra.mxu0 %v2895
  %2897 = vmatprep.subr.mxu0 0.0
  %v2898 = vand.u32 %v2541, 4294901760
  %v2899 = vsub.f32 %v2541, %v2898
  %2900 = vmatpush1.msra.mxu0 %v2899
  %2901 = vmatprep.subr.mxu0 0.0
  %v2902 = vand.u32 %v2540, 4294901760
  %v2903 = vsub.f32 %v2540, %v2902
  %2904 = vmatpush1.msra.mxu0 %v2903
  %2905 = vmatprep.subr.mxu0 0.0
  %v2906 = vand.u32 %v2539, 4294901760
  %v2907 = vsub.f32 %v2539, %v2906
  %2908 = vmatpush1.msra.mxu0 %v2907
  %2909 = vmatprep.subr.mxu0 0.0
  %2910 = vmatpush2.msra.mxu0 0.0
  %2911 = vmatprep.subr.mxu0 0.0
  %2912 = vmatpush2.msra.mxu0 0.0
  %2913 = vmatprep.subr.mxu0 0.0
  %2914 = vmatpush2.msra.mxu0 0.0
  %2915 = vmatprep.subr.mxu0 0.0
  %2916 = vmatpush2.msra.mxu0 0.0
  %2917 = vmatprep.subr.mxu0 0.0
  %2918 = vmatpush2.msra.mxu0 0.0
  %2919 = vmatprep.subr.mxu0 0.0
  %2920 = vmatpush2.msra.mxu0 0.0
  %2921 = vmatprep.subr.mxu0 0.0
  %2922 = vmatpush2.msra.mxu0 0.0
  %2923 = vmatprep.subr.mxu0 0.0
  %2924 = vmatpush2.msra.mxu0 0.0
  %2925 = vmatprep.subr.mxu0 0.0
  %2926 = vmatpush2.msra.mxu0 0.0
  %2927 = vmatprep.subr.mxu0 0.0
  %2928 = vmatpush2.msra.mxu0 0.0
  %2929 = vmatprep.subr.mxu0 0.0
  %2930 = vmatpush2.msra.mxu0 0.0
  %2931 = vmatprep.subr.mxu0 0.0
  %2932 = vmatpush2.msra.mxu0 0.0
  %2933 = vmatprep.subr.mxu0 0.0
  %2934 = vmatpush2.msra.mxu0 0.0
  %2935 = vmatprep.subr.mxu0 0.0
  %2936 = vmatpush2.msra.mxu0 0.0
  %2937 = vmatprep.subr.mxu0 0.0
  %2938 = vmatpush2.msra.mxu0 0.0
  %2939 = vmatprep.subr.mxu0 0.0
  %2940 = vmatpush2.msra.mxu0 0.0
  %2941 = vmatprep.mubr.f32.mxu0 0.0
  %v2942 = vand.u32 %v2495, 4294901760
  %v2943 = vsub.f32 %v2495, %v2942
  %2944 = vmatmul.mubr.f32.gmra.mxu0 %v2943
  %v2945 = vpop.f32.mrf.mxu0
  %v2946 = vadd.f32 %v2824, %v2945
  %v2947 = vpop.f32.mrf.mxu0
  %2948 = vmatprep.mubr.f32.mxu0 0.0
  %v2949 = vand.u32 %v2496, 4294901760
  %v2950 = vsub.f32 %v2496, %v2949
  %2951 = vmatmul.mubr.f32.gmra.mxu0 %v2950
  %v2952 = vpop.f32.mrf.mxu0
  %v2953 = vadd.f32 %v2830, %v2952
  %v2954 = vpop.f32.mrf.mxu0
  %2955 = vmatprep.mubr.f32.mxu0 0.0
  %v2956 = vand.u32 %v2497, 4294901760
  %v2957 = vsub.f32 %v2497, %v2956
  %2958 = vmatmul.mubr.f32.gmra.mxu0 %v2957
  %v2959 = vpop.f32.mrf.mxu0
  %v2960 = vadd.f32 %v2836, %v2959
  %v2961 = vpop.f32.mrf.mxu0
  %2962 = vmatprep.mubr.f32.mxu0 0.0
  %v2963 = vand.u32 %v2498, 4294901760
  %v2964 = vsub.f32 %v2498, %v2963
  %2965 = vmatmul.mubr.f32.gmra.mxu0 %v2964
  %v2966 = vpop.f32.mrf.mxu0
  %v2967 = vadd.f32 %v2842, %v2966
  %v2968 = vpop.f32.mrf.mxu0
  %2969 = vdwg.mxu0
  %2970 = vmatprep.subr.mxu0 0.0
  %v2971 = vand.u32 %v2554, 4294901760
  %2972 = vmatpush1.msra.mxu0 %v2971
  %2973 = vmatprep.subr.mxu0 0.0
  %v2974 = vand.u32 %v2553, 4294901760
  %2975 = vmatpush1.msra.mxu0 %v2974
  %2976 = vmatprep.subr.mxu0 0.0
  %v2977 = vand.u32 %v2552, 4294901760
  %2978 = vmatpush1.msra.mxu0 %v2977
  %2979 = vmatprep.subr.mxu0 0.0
  %v2980 = vand.u32 %v2551, 4294901760
  %2981 = vmatpush1.msra.mxu0 %v2980
  %2982 = vmatprep.subr.mxu0 0.0
  %v2983 = vand.u32 %v2550, 4294901760
  %2984 = vmatpush1.msra.mxu0 %v2983
  %2985 = vmatprep.subr.mxu0 0.0
  %v2986 = vand.u32 %v2549, 4294901760
  %2987 = vmatpush1.msra.mxu0 %v2986
  %2988 = vmatprep.subr.mxu0 0.0
  %v2989 = vand.u32 %v2548, 4294901760
  %2990 = vmatpush1.msra.mxu0 %v2989
  %2991 = vmatprep.subr.mxu0 0.0
  %v2992 = vand.u32 %v2547, 4294901760
  %2993 = vmatpush1.msra.mxu0 %v2992
  %2994 = vmatprep.subr.mxu0 0.0
  %v2995 = vand.u32 %v2546, 4294901760
  %2996 = vmatpush1.msra.mxu0 %v2995
  %2997 = vmatprep.subr.mxu0 0.0
  %v2998 = vand.u32 %v2545, 4294901760
  %2999 = vmatpush1.msra.mxu0 %v2998
  %3000 = vmatprep.subr.mxu0 0.0
  %v3001 = vand.u32 %v2544, 4294901760
  %3002 = vmatpush1.msra.mxu0 %v3001
  %3003 = vmatprep.subr.mxu0 0.0
  %v3004 = vand.u32 %v2543, 4294901760
  %3005 = vmatpush1.msra.mxu0 %v3004
  %3006 = vmatprep.subr.mxu0 0.0
  %v3007 = vand.u32 %v2542, 4294901760
  %3008 = vmatpush1.msra.mxu0 %v3007
  %3009 = vmatprep.subr.mxu0 0.0
  %v3010 = vand.u32 %v2541, 4294901760
  %3011 = vmatpush1.msra.mxu0 %v3010
  %3012 = vmatprep.subr.mxu0 0.0
  %v3013 = vand.u32 %v2540, 4294901760
  %3014 = vmatpush1.msra.mxu0 %v3013
  %3015 = vmatprep.subr.mxu0 0.0
  %v3016 = vand.u32 %v2539, 4294901760
  %3017 = vmatpush1.msra.mxu0 %v3016
  %3018 = vmatprep.subr.mxu0 0.0
  %3019 = vmatpush2.msra.mxu0 0.0
  %3020 = vmatprep.subr.mxu0 0.0
  %3021 = vmatpush2.msra.mxu0 0.0
  %3022 = vmatprep.subr.mxu0 0.0
  %3023 = vmatpush2.msra.mxu0 0.0
  %3024 = vmatprep.subr.mxu0 0.0
  %3025 = vmatpush2.msra.mxu0 0.0
  %3026 = vmatprep.subr.mxu0 0.0
  %3027 = vmatpush2.msra.mxu0 0.0
  %3028 = vmatprep.subr.mxu0 0.0
  %3029 = vmatpush2.msra.mxu0 0.0
  %3030 = vmatprep.subr.mxu0 0.0
  %3031 = vmatpush2.msra.mxu0 0.0
  %3032 = vmatprep.subr.mxu0 0.0
  %3033 = vmatpush2.msra.mxu0 0.0
  %3034 = vmatprep.subr.mxu0 0.0
  %3035 = vmatpush2.msra.mxu0 0.0
  %3036 = vmatprep.subr.mxu0 0.0
  %3037 = vmatpush2.msra.mxu0 0.0
  %3038 = vmatprep.subr.mxu0 0.0
  %3039 = vmatpush2.msra.mxu0 0.0
  %3040 = vmatprep.subr.mxu0 0.0
  %3041 = vmatpush2.msra.mxu0 0.0
  %3042 = vmatprep.subr.mxu0 0.0
  %3043 = vmatpush2.msra.mxu0 0.0
  %3044 = vmatprep.subr.mxu0 0.0
  %3045 = vmatpush2.msra.mxu0 0.0
  %3046 = vmatprep.subr.mxu0 0.0
  %3047 = vmatpush2.msra.mxu0 0.0
  %3048 = vmatprep.subr.mxu0 0.0
  %3049 = vmatpush2.msra.mxu0 0.0
  %3050 = vmatprep.mubr.f32.mxu0 0.0
  %v3051 = vand.u32 %v2495, 4294901760
  %v3052 = vsub.f32 %v2495, %v3051
  %v3053 = vand.u32 %v3052, 4294901760
  %3054 = vmatmul.mubr.f32.gmra.mxu0 %v3053
  %v3055 = vpop.f32.mrf.mxu0
  %v3056 = vadd.f32 %v2946, %v3055
  %v3057 = vpop.f32.mrf.mxu0
  %3058 = vmatprep.mubr.f32.mxu0 0.0
  %v3059 = vand.u32 %v2496, 4294901760
  %v3060 = vsub.f32 %v2496, %v3059
  %v3061 = vand.u32 %v3060, 4294901760
  %3062 = vmatmul.mubr.f32.gmra.mxu0 %v3061
  %v3063 = vpop.f32.mrf.mxu0
  %v3064 = vadd.f32 %v2953, %v3063
  %v3065 = vpop.f32.mrf.mxu0
  %3066 = vmatprep.mubr.f32.mxu0 0.0
  %v3067 = vand.u32 %v2497, 4294901760
  %v3068 = vsub.f32 %v2497, %v3067
  %v3069 = vand.u32 %v3068, 4294901760
  %3070 = vmatmul.mubr.f32.gmra.mxu0 %v3069
  %v3071 = vpop.f32.mrf.mxu0
  %v3072 = vadd.f32 %v2960, %v3071
  %v3073 = vpop.f32.mrf.mxu0
  %3074 = vmatprep.mubr.f32.mxu0 0.0
  %v3075 = vand.u32 %v2498, 4294901760
  %v3076 = vsub.f32 %v2498, %v3075
  %v3077 = vand.u32 %v3076, 4294901760
  %3078 = vmatmul.mubr.f32.gmra.mxu0 %v3077
  %v3079 = vpop.f32.mrf.mxu0
  %v3080 = vadd.f32 %v2967, %v3079
  %v3081 = vpop.f32.mrf.mxu0
  %3082 = vdwg.mxu0
  %3083 = vmatprep.subr.mxu0 0.0
  %v3084 = vand.u32 %v2554, 4294901760
  %v3085 = vsub.f32 %v2554, %v3084
  %v3086 = vand.u32 %v3085, 4294901760
  %3087 = vmatpush1.msra.mxu0 %v3086
  %3088 = vmatprep.subr.mxu0 0.0
  %v3089 = vand.u32 %v2553, 4294901760
  %v3090 = vsub.f32 %v2553, %v3089
  %v3091 = vand.u32 %v3090, 4294901760
  %3092 = vmatpush1.msra.mxu0 %v3091
  %3093 = vmatprep.subr.mxu0 0.0
  %v3094 = vand.u32 %v2552, 4294901760
  %v3095 = vsub.f32 %v2552, %v3094
  %v3096 = vand.u32 %v3095, 4294901760
  %3097 = vmatpush1.msra.mxu0 %v3096
  %3098 = vmatprep.subr.mxu0 0.0
  %v3099 = vand.u32 %v2551, 4294901760
  %v3100 = vsub.f32 %v2551, %v3099
  %v3101 = vand.u32 %v3100, 4294901760
  %3102 = vmatpush1.msra.mxu0 %v3101
  %3103 = vmatprep.subr.mxu0 0.0
  %v3104 = vand.u32 %v2550, 4294901760
  %v3105 = vsub.f32 %v2550, %v3104
  %v3106 = vand.u32 %v3105, 4294901760
  %3107 = vmatpush1.msra.mxu0 %v3106
  %3108 = vmatprep.subr.mxu0 0.0
  %v3109 = vand.u32 %v2549, 4294901760
  %v3110 = vsub.f32 %v2549, %v3109
  %v3111 = vand.u32 %v3110, 4294901760
  %3112 = vmatpush1.msra.mxu0 %v3111
  %3113 = vmatprep.subr.mxu0 0.0
  %v3114 = vand.u32 %v2548, 4294901760
  %v3115 = vsub.f32 %v2548, %v3114
  %v3116 = vand.u32 %v3115, 4294901760
  %3117 = vmatpush1.msra.mxu0 %v3116
  %3118 = vmatprep.subr.mxu0 0.0
  %v3119 = vand.u32 %v2547, 4294901760
  %v3120 = vsub.f32 %v2547, %v3119
  %v3121 = vand.u32 %v3120, 4294901760
  %3122 = vmatpush1.msra.mxu0 %v3121
  %3123 = vmatprep.subr.mxu0 0.0
  %v3124 = vand.u32 %v2546, 4294901760
  %v3125 = vsub.f32 %v2546, %v3124
  %v3126 = vand.u32 %v3125, 4294901760
  %3127 = vmatpush1.msra.mxu0 %v3126
  %3128 = vmatprep.subr.mxu0 0.0
  %v3129 = vand.u32 %v2545, 4294901760
  %v3130 = vsub.f32 %v2545, %v3129
  %v3131 = vand.u32 %v3130, 4294901760
  %3132 = vmatpush1.msra.mxu0 %v3131
  %3133 = vmatprep.subr.mxu0 0.0
  %v3134 = vand.u32 %v2544, 4294901760
  %v3135 = vsub.f32 %v2544, %v3134
  %v3136 = vand.u32 %v3135, 4294901760
  %3137 = vmatpush1.msra.mxu0 %v3136
  %3138 = vmatprep.subr.mxu0 0.0
  %v3139 = vand.u32 %v2543, 4294901760
  %v3140 = vsub.f32 %v2543, %v3139
  %v3141 = vand.u32 %v3140, 4294901760
  %3142 = vmatpush1.msra.mxu0 %v3141
  %3143 = vmatprep.subr.mxu0 0.0
  %v3144 = vand.u32 %v2542, 4294901760
  %v3145 = vsub.f32 %v2542, %v3144
  %v3146 = vand.u32 %v3145, 4294901760
  %3147 = vmatpush1.msra.mxu0 %v3146
  %3148 = vmatprep.subr.mxu0 0.0
  %v3149 = vand.u32 %v2541, 4294901760
  %v3150 = vsub.f32 %v2541, %v3149
  %v3151 = vand.u32 %v3150, 4294901760
  %3152 = vmatpush1.msra.mxu0 %v3151
  %3153 = vmatprep.subr.mxu0 0.0
  %v3154 = vand.u32 %v2540, 4294901760
  %v3155 = vsub.f32 %v2540, %v3154
  %v3156 = vand.u32 %v3155, 4294901760
  %3157 = vmatpush1.msra.mxu0 %v3156
  %3158 = vmatprep.subr.mxu0 0.0
  %v3159 = vand.u32 %v2539, 4294901760
  %v3160 = vsub.f32 %v2539, %v3159
  %v3161 = vand.u32 %v3160, 4294901760
  %3162 = vmatpush1.msra.mxu0 %v3161
  %3163 = vmatprep.subr.mxu0 0.0
  %3164 = vmatpush2.msra.mxu0 0.0
  %3165 = vmatprep.subr.mxu0 0.0
  %3166 = vmatpush2.msra.mxu0 0.0
  %3167 = vmatprep.subr.mxu0 0.0
  %3168 = vmatpush2.msra.mxu0 0.0
  %3169 = vmatprep.subr.mxu0 0.0
  %3170 = vmatpush2.msra.mxu0 0.0
  %3171 = vmatprep.subr.mxu0 0.0
  %3172 = vmatpush2.msra.mxu0 0.0
  %3173 = vmatprep.subr.mxu0 0.0
  %3174 = vmatpush2.msra.mxu0 0.0
  %3175 = vmatprep.subr.mxu0 0.0
  %3176 = vmatpush2.msra.mxu0 0.0
  %3177 = vmatprep.subr.mxu0 0.0
  %3178 = vmatpush2.msra.mxu0 0.0
  %3179 = vmatprep.subr.mxu0 0.0
  %3180 = vmatpush2.msra.mxu0 0.0
  %3181 = vmatprep.subr.mxu0 0.0
  %3182 = vmatpush2.msra.mxu0 0.0
  %3183 = vmatprep.subr.mxu0 0.0
  %3184 = vmatpush2.msra.mxu0 0.0
  %3185 = vmatprep.subr.mxu0 0.0
  %3186 = vmatpush2.msra.mxu0 0.0
  %3187 = vmatprep.subr.mxu0 0.0
  %3188 = vmatpush2.msra.mxu0 0.0
  %3189 = vmatprep.subr.mxu0 0.0
  %3190 = vmatpush2.msra.mxu0 0.0
  %3191 = vmatprep.subr.mxu0 0.0
  %3192 = vmatpush2.msra.mxu0 0.0
  %3193 = vmatprep.subr.mxu0 0.0
  %3194 = vmatpush2.msra.mxu0 0.0
  %3195 = vmatprep.mubr.f32.mxu0 0.0
  %v3196 = vand.u32 %v2495, 4294901760
  %3197 = vmatmul.mubr.f32.gmra.mxu0 %v3196
  %v3198 = vpop.f32.mrf.mxu0
  %v3199 = vadd.f32 %v3056, %v3198
  %v3200 = vpop.f32.mrf.mxu0
  %3201 = vmatprep.mubr.f32.mxu0 0.0
  %v3202 = vand.u32 %v2496, 4294901760
  %3203 = vmatmul.mubr.f32.gmra.mxu0 %v3202
  %v3204 = vpop.f32.mrf.mxu0
  %v3205 = vadd.f32 %v3064, %v3204
  %v3206 = vpop.f32.mrf.mxu0
  %3207 = vmatprep.mubr.f32.mxu0 0.0
  %v3208 = vand.u32 %v2497, 4294901760
  %3209 = vmatmul.mubr.f32.gmra.mxu0 %v3208
  %v3210 = vpop.f32.mrf.mxu0
  %v3211 = vadd.f32 %v3072, %v3210
  %v3212 = vpop.f32.mrf.mxu0
  %3213 = vmatprep.mubr.f32.mxu0 0.0
  %v3214 = vand.u32 %v2498, 4294901760
  %3215 = vmatmul.mubr.f32.gmra.mxu0 %v3214
  %v3216 = vpop.f32.mrf.mxu0
  %v3217 = vadd.f32 %v3080, %v3216
  %v3218 = vpop.f32.mrf.mxu0
  %3219 = vdwg.mxu0
  %3220 = vmatprep.subr.mxu0 0.0
  %v3221 = vand.u32 %v2554, 4294901760
  %3222 = vmatpush1.msra.mxu0 %v3221
  %3223 = vmatprep.subr.mxu0 0.0
  %v3224 = vand.u32 %v2553, 4294901760
  %3225 = vmatpush1.msra.mxu0 %v3224
  %3226 = vmatprep.subr.mxu0 0.0
  %v3227 = vand.u32 %v2552, 4294901760
  %3228 = vmatpush1.msra.mxu0 %v3227
  %3229 = vmatprep.subr.mxu0 0.0
  %v3230 = vand.u32 %v2551, 4294901760
  %3231 = vmatpush1.msra.mxu0 %v3230
  %3232 = vmatprep.subr.mxu0 0.0
  %v3233 = vand.u32 %v2550, 4294901760
  %3234 = vmatpush1.msra.mxu0 %v3233
  %3235 = vmatprep.subr.mxu0 0.0
  %v3236 = vand.u32 %v2549, 4294901760
  %3237 = vmatpush1.msra.mxu0 %v3236
  %3238 = vmatprep.subr.mxu0 0.0
  %v3239 = vand.u32 %v2548, 4294901760
  %3240 = vmatpush1.msra.mxu0 %v3239
  %3241 = vmatprep.subr.mxu0 0.0
  %v3242 = vand.u32 %v2547, 4294901760
  %3243 = vmatpush1.msra.mxu0 %v3242
  %3244 = vmatprep.subr.mxu0 0.0
  %v3245 = vand.u32 %v2546, 4294901760
  %3246 = vmatpush1.msra.mxu0 %v3245
  %3247 = vmatprep.subr.mxu0 0.0
  %v3248 = vand.u32 %v2545, 4294901760
  %3249 = vmatpush1.msra.mxu0 %v3248
  %3250 = vmatprep.subr.mxu0 0.0
  %v3251 = vand.u32 %v2544, 4294901760
  %3252 = vmatpush1.msra.mxu0 %v3251
  %3253 = vmatprep.subr.mxu0 0.0
  %v3254 = vand.u32 %v2543, 4294901760
  %3255 = vmatpush1.msra.mxu0 %v3254
  %3256 = vmatprep.subr.mxu0 0.0
  %v3257 = vand.u32 %v2542, 4294901760
  %3258 = vmatpush1.msra.mxu0 %v3257
  %3259 = vmatprep.subr.mxu0 0.0
  %v3260 = vand.u32 %v2541, 4294901760
  %3261 = vmatpush1.msra.mxu0 %v3260
  %3262 = vmatprep.subr.mxu0 0.0
  %v3263 = vand.u32 %v2540, 4294901760
  %3264 = vmatpush1.msra.mxu0 %v3263
  %3265 = vmatprep.subr.mxu0 0.0
  %v3266 = vand.u32 %v2539, 4294901760
  %3267 = vmatpush1.msra.mxu0 %v3266
  %3268 = vmatprep.subr.mxu0 0.0
  %3269 = vmatpush2.msra.mxu0 0.0
  %3270 = vmatprep.subr.mxu0 0.0
  %3271 = vmatpush2.msra.mxu0 0.0
  %3272 = vmatprep.subr.mxu0 0.0
  %3273 = vmatpush2.msra.mxu0 0.0
  %3274 = vmatprep.subr.mxu0 0.0
  %3275 = vmatpush2.msra.mxu0 0.0
  %3276 = vmatprep.subr.mxu0 0.0
  %3277 = vmatpush2.msra.mxu0 0.0
  %3278 = vmatprep.subr.mxu0 0.0
  %3279 = vmatpush2.msra.mxu0 0.0
  %3280 = vmatprep.subr.mxu0 0.0
  %3281 = vmatpush2.msra.mxu0 0.0
  %3282 = vmatprep.subr.mxu0 0.0
  %3283 = vmatpush2.msra.mxu0 0.0
  %3284 = vmatprep.subr.mxu0 0.0
  %3285 = vmatpush2.msra.mxu0 0.0
  %3286 = vmatprep.subr.mxu0 0.0
  %3287 = vmatpush2.msra.mxu0 0.0
  %3288 = vmatprep.subr.mxu0 0.0
  %3289 = vmatpush2.msra.mxu0 0.0
  %3290 = vmatprep.subr.mxu0 0.0
  %3291 = vmatpush2.msra.mxu0 0.0
  %3292 = vmatprep.subr.mxu0 0.0
  %3293 = vmatpush2.msra.mxu0 0.0
  %3294 = vmatprep.subr.mxu0 0.0
  %3295 = vmatpush2.msra.mxu0 0.0
  %3296 = vmatprep.subr.mxu0 0.0
  %3297 = vmatpush2.msra.mxu0 0.0
  %3298 = vmatprep.subr.mxu0 0.0
  %3299 = vmatpush2.msra.mxu0 0.0
  %3300 = vmatprep.mubr.f32.mxu0 0.0
  %v3301 = vand.u32 %v2495, 4294901760
  %3302 = vmatmul.mubr.f32.gmra.mxu0 %v3301
  %v3303 = vpop.f32.mrf.mxu0
  %v3304 = vadd.f32 %v3199, %v3303
  %v3305 = vpop.f32.mrf.mxu0
  %3306 = vmatprep.mubr.f32.mxu0 0.0
  %v3307 = vand.u32 %v2496, 4294901760
  %3308 = vmatmul.mubr.f32.gmra.mxu0 %v3307
  %v3309 = vpop.f32.mrf.mxu0
  %v3310 = vadd.f32 %v3205, %v3309
  %v3311 = vpop.f32.mrf.mxu0
  %3312 = vmatprep.mubr.f32.mxu0 0.0
  %v3313 = vand.u32 %v2497, 4294901760
  %3314 = vmatmul.mubr.f32.gmra.mxu0 %v3313
  %v3315 = vpop.f32.mrf.mxu0
  %v3316 = vadd.f32 %v3211, %v3315
  %v3317 = vpop.f32.mrf.mxu0
  %3318 = vmatprep.mubr.f32.mxu0 0.0
  %v3319 = vand.u32 %v2498, 4294901760
  %3320 = vmatmul.mubr.f32.gmra.mxu0 %v3319
  %v3321 = vpop.f32.mrf.mxu0
  %v3322 = vadd.f32 %v3217, %v3321
  %v3323 = vpop.f32.mrf.mxu0
  %3324 = vdwg.mxu0
  %3325 = vmatprep.subr.mxu0 0.0
  %v3326 = vand.u32 %v2538, 4294901760
  %3327 = vmatpush1.msra.mxu0 %v3326
  %3328 = vmatprep.subr.mxu0 0.0
  %v3329 = vand.u32 %v2537, 4294901760
  %3330 = vmatpush1.msra.mxu0 %v3329
  %3331 = vmatprep.subr.mxu0 0.0
  %v3332 = vand.u32 %v2536, 4294901760
  %3333 = vmatpush1.msra.mxu0 %v3332
  %3334 = vmatprep.subr.mxu0 0.0
  %v3335 = vand.u32 %v2535, 4294901760
  %3336 = vmatpush1.msra.mxu0 %v3335
  %3337 = vmatprep.subr.mxu0 0.0
  %v3338 = vand.u32 %v2534, 4294901760
  %3339 = vmatpush1.msra.mxu0 %v3338
  %3340 = vmatprep.subr.mxu0 0.0
  %v3341 = vand.u32 %v2533, 4294901760
  %3342 = vmatpush1.msra.mxu0 %v3341
  %3343 = vmatprep.subr.mxu0 0.0
  %v3344 = vand.u32 %v2532, 4294901760
  %3345 = vmatpush1.msra.mxu0 %v3344
  %3346 = vmatprep.subr.mxu0 0.0
  %v3347 = vand.u32 %v2531, 4294901760
  %3348 = vmatpush1.msra.mxu0 %v3347
  %3349 = vmatprep.subr.mxu0 0.0
  %v3350 = vand.u32 %v2530, 4294901760
  %3351 = vmatpush1.msra.mxu0 %v3350
  %3352 = vmatprep.subr.mxu0 0.0
  %v3353 = vand.u32 %v2529, 4294901760
  %3354 = vmatpush1.msra.mxu0 %v3353
  %3355 = vmatprep.subr.mxu0 0.0
  %v3356 = vand.u32 %v2528, 4294901760
  %3357 = vmatpush1.msra.mxu0 %v3356
  %3358 = vmatprep.subr.mxu0 0.0
  %v3359 = vand.u32 %v2527, 4294901760
  %3360 = vmatpush1.msra.mxu0 %v3359
  %3361 = vmatprep.subr.mxu0 0.0
  %v3362 = vand.u32 %v2526, 4294901760
  %3363 = vmatpush1.msra.mxu0 %v3362
  %3364 = vmatprep.subr.mxu0 0.0
  %v3365 = vand.u32 %v2525, 4294901760
  %3366 = vmatpush1.msra.mxu0 %v3365
  %3367 = vmatprep.subr.mxu0 0.0
  %v3368 = vand.u32 %v2524, 4294901760
  %3369 = vmatpush1.msra.mxu0 %v3368
  %3370 = vmatprep.subr.mxu0 0.0
  %v3371 = vand.u32 %v2523, 4294901760
  %3372 = vmatpush1.msra.mxu0 %v3371
  %3373 = vmatprep.subr.mxu0 0.0
  %3374 = vmatpush2.msra.mxu0 0.0
  %3375 = vmatprep.subr.mxu0 0.0
  %3376 = vmatpush2.msra.mxu0 0.0
  %3377 = vmatprep.subr.mxu0 0.0
  %3378 = vmatpush2.msra.mxu0 0.0
  %3379 = vmatprep.subr.mxu0 0.0
  %3380 = vmatpush2.msra.mxu0 0.0
  %3381 = vmatprep.subr.mxu0 0.0
  %3382 = vmatpush2.msra.mxu0 0.0
  %3383 = vmatprep.subr.mxu0 0.0
  %3384 = vmatpush2.msra.mxu0 0.0
  %3385 = vmatprep.subr.mxu0 0.0
  %3386 = vmatpush2.msra.mxu0 0.0
  %3387 = vmatprep.subr.mxu0 0.0
  %3388 = vmatpush2.msra.mxu0 0.0
  %3389 = vmatprep.subr.mxu0 0.0
  %3390 = vmatpush2.msra.mxu0 0.0
  %3391 = vmatprep.subr.mxu0 0.0
  %3392 = vmatpush2.msra.mxu0 0.0
  %3393 = vmatprep.subr.mxu0 0.0
  %3394 = vmatpush2.msra.mxu0 0.0
  %3395 = vmatprep.subr.mxu0 0.0
  %3396 = vmatpush2.msra.mxu0 0.0
  %3397 = vmatprep.subr.mxu0 0.0
  %3398 = vmatpush2.msra.mxu0 0.0
  %3399 = vmatprep.subr.mxu0 0.0
  %3400 = vmatpush2.msra.mxu0 0.0
  %3401 = vmatprep.subr.mxu0 0.0
  %3402 = vmatpush2.msra.mxu0 0.0
  %3403 = vmatprep.subr.mxu0 0.0
  %3404 = vmatpush2.msra.mxu0 0.0
  %3405 = vmatprep.mubr.f32.mxu0 0.0
  %v3406 = vand.u32 %v2515, 4294901760
  %v3407 = vsub.f32 %v2515, %v3406
  %v3408 = vand.u32 %v3407, 4294901760
  %v3409 = vsub.f32 %v3407, %v3408
  %v3410 = vand.u32 %v3409, 4294901760
  %3411 = vmatmul.mubr.f32.gmra.mxu0 %v3410
  %v3412 = vpop.f32.mrf.mxu0
  %v3413 = vadd.f32 %v3304, %v3412
  %v3414 = vpop.f32.mrf.mxu0
  %3415 = vmatprep.mubr.f32.mxu0 0.0
  %v3416 = vand.u32 %v2516, 4294901760
  %v3417 = vsub.f32 %v2516, %v3416
  %v3418 = vand.u32 %v3417, 4294901760
  %v3419 = vsub.f32 %v3417, %v3418
  %v3420 = vand.u32 %v3419, 4294901760
  %3421 = vmatmul.mubr.f32.gmra.mxu0 %v3420
  %v3422 = vpop.f32.mrf.mxu0
  %v3423 = vadd.f32 %v3310, %v3422
  %v3424 = vpop.f32.mrf.mxu0
  %3425 = vmatprep.mubr.f32.mxu0 0.0
  %v3426 = vand.u32 %v2517, 4294901760
  %v3427 = vsub.f32 %v2517, %v3426
  %v3428 = vand.u32 %v3427, 4294901760
  %v3429 = vsub.f32 %v3427, %v3428
  %v3430 = vand.u32 %v3429, 4294901760
  %3431 = vmatmul.mubr.f32.gmra.mxu0 %v3430
  %v3432 = vpop.f32.mrf.mxu0
  %v3433 = vadd.f32 %v3316, %v3432
  %v3434 = vpop.f32.mrf.mxu0
  %3435 = vmatprep.mubr.f32.mxu0 0.0
  %v3436 = vand.u32 %v2518, 4294901760
  %v3437 = vsub.f32 %v2518, %v3436
  %v3438 = vand.u32 %v3437, 4294901760
  %v3439 = vsub.f32 %v3437, %v3438
  %v3440 = vand.u32 %v3439, 4294901760
  %3441 = vmatmul.mubr.f32.gmra.mxu0 %v3440
  %v3442 = vpop.f32.mrf.mxu0
  %v3443 = vadd.f32 %v3322, %v3442
  %v3444 = vpop.f32.mrf.mxu0
  %3445 = vdwg.mxu0
  %3446 = vmatprep.subr.mxu0 0.0
  %v3447 = vand.u32 %v2538, 4294901760
  %v3448 = vsub.f32 %v2538, %v3447
  %v3449 = vand.u32 %v3448, 4294901760
  %v3450 = vsub.f32 %v3448, %v3449
  %v3451 = vand.u32 %v3450, 4294901760
  %3452 = vmatpush1.msra.mxu0 %v3451
  %3453 = vmatprep.subr.mxu0 0.0
  %v3454 = vand.u32 %v2537, 4294901760
  %v3455 = vsub.f32 %v2537, %v3454
  %v3456 = vand.u32 %v3455, 4294901760
  %v3457 = vsub.f32 %v3455, %v3456
  %v3458 = vand.u32 %v3457, 4294901760
  %3459 = vmatpush1.msra.mxu0 %v3458
  %3460 = vmatprep.subr.mxu0 0.0
  %v3461 = vand.u32 %v2536, 4294901760
  %v3462 = vsub.f32 %v2536, %v3461
  %v3463 = vand.u32 %v3462, 4294901760
  %v3464 = vsub.f32 %v3462, %v3463
  %v3465 = vand.u32 %v3464, 4294901760
  %3466 = vmatpush1.msra.mxu0 %v3465
  %3467 = vmatprep.subr.mxu0 0.0
  %v3468 = vand.u32 %v2535, 4294901760
  %v3469 = vsub.f32 %v2535, %v3468
  %v3470 = vand.u32 %v3469, 4294901760
  %v3471 = vsub.f32 %v3469, %v3470
  %v3472 = vand.u32 %v3471, 4294901760
  %3473 = vmatpush1.msra.mxu0 %v3472
  %3474 = vmatprep.subr.mxu0 0.0
  %v3475 = vand.u32 %v2534, 4294901760
  %v3476 = vsub.f32 %v2534, %v3475
  %v3477 = vand.u32 %v3476, 4294901760
  %v3478 = vsub.f32 %v3476, %v3477
  %v3479 = vand.u32 %v3478, 4294901760
  %3480 = vmatpush1.msra.mxu0 %v3479
  %3481 = vmatprep.subr.mxu0 0.0
  %v3482 = vand.u32 %v2533, 4294901760
  %v3483 = vsub.f32 %v2533, %v3482
  %v3484 = vand.u32 %v3483, 4294901760
  %v3485 = vsub.f32 %v3483, %v3484
  %v3486 = vand.u32 %v3485, 4294901760
  %3487 = vmatpush1.msra.mxu0 %v3486
  %3488 = vmatprep.subr.mxu0 0.0
  %v3489 = vand.u32 %v2532, 4294901760
  %v3490 = vsub.f32 %v2532, %v3489
  %v3491 = vand.u32 %v3490, 4294901760
  %v3492 = vsub.f32 %v3490, %v3491
  %v3493 = vand.u32 %v3492, 4294901760
  %3494 = vmatpush1.msra.mxu0 %v3493
  %3495 = vmatprep.subr.mxu0 0.0
  %v3496 = vand.u32 %v2531, 4294901760
  %v3497 = vsub.f32 %v2531, %v3496
  %v3498 = vand.u32 %v3497, 4294901760
  %v3499 = vsub.f32 %v3497, %v3498
  %v3500 = vand.u32 %v3499, 4294901760
  %3501 = vmatpush1.msra.mxu0 %v3500
  %3502 = vmatprep.subr.mxu0 0.0
  %v3503 = vand.u32 %v2530, 4294901760
  %v3504 = vsub.f32 %v2530, %v3503
  %v3505 = vand.u32 %v3504, 4294901760
  %v3506 = vsub.f32 %v3504, %v3505
  %v3507 = vand.u32 %v3506, 4294901760
  %3508 = vmatpush1.msra.mxu0 %v3507
  %3509 = vmatprep.subr.mxu0 0.0
  %v3510 = vand.u32 %v2529, 4294901760
  %v3511 = vsub.f32 %v2529, %v3510
  %v3512 = vand.u32 %v3511, 4294901760
  %v3513 = vsub.f32 %v3511, %v3512
  %v3514 = vand.u32 %v3513, 4294901760
  %3515 = vmatpush1.msra.mxu0 %v3514
  %3516 = vmatprep.subr.mxu0 0.0
  %v3517 = vand.u32 %v2528, 4294901760
  %v3518 = vsub.f32 %v2528, %v3517
  %v3519 = vand.u32 %v3518, 4294901760
  %v3520 = vsub.f32 %v3518, %v3519
  %v3521 = vand.u32 %v3520, 4294901760
  %3522 = vmatpush1.msra.mxu0 %v3521
  %3523 = vmatprep.subr.mxu0 0.0
  %v3524 = vand.u32 %v2527, 4294901760
  %v3525 = vsub.f32 %v2527, %v3524
  %v3526 = vand.u32 %v3525, 4294901760
  %v3527 = vsub.f32 %v3525, %v3526
  %v3528 = vand.u32 %v3527, 4294901760
  %3529 = vmatpush1.msra.mxu0 %v3528
  %3530 = vmatprep.subr.mxu0 0.0
  %v3531 = vand.u32 %v2526, 4294901760
  %v3532 = vsub.f32 %v2526, %v3531
  %v3533 = vand.u32 %v3532, 4294901760
  %v3534 = vsub.f32 %v3532, %v3533
  %v3535 = vand.u32 %v3534, 4294901760
  %3536 = vmatpush1.msra.mxu0 %v3535
  %3537 = vmatprep.subr.mxu0 0.0
  %v3538 = vand.u32 %v2525, 4294901760
  %v3539 = vsub.f32 %v2525, %v3538
  %v3540 = vand.u32 %v3539, 4294901760
  %v3541 = vsub.f32 %v3539, %v3540
  %v3542 = vand.u32 %v3541, 4294901760
  %3543 = vmatpush1.msra.mxu0 %v3542
  %3544 = vmatprep.subr.mxu0 0.0
  %v3545 = vand.u32 %v2524, 4294901760
  %v3546 = vsub.f32 %v2524, %v3545
  %v3547 = vand.u32 %v3546, 4294901760
  %v3548 = vsub.f32 %v3546, %v3547
  %v3549 = vand.u32 %v3548, 4294901760
  %3550 = vmatpush1.msra.mxu0 %v3549
  %3551 = vmatprep.subr.mxu0 0.0
  %v3552 = vand.u32 %v2523, 4294901760
  %v3553 = vsub.f32 %v2523, %v3552
  %v3554 = vand.u32 %v3553, 4294901760
  %v3555 = vsub.f32 %v3553, %v3554
  %v3556 = vand.u32 %v3555, 4294901760
  %3557 = vmatpush1.msra.mxu0 %v3556
  %3558 = vmatprep.subr.mxu0 0.0
  %3559 = vmatpush2.msra.mxu0 0.0
  %3560 = vmatprep.subr.mxu0 0.0
  %3561 = vmatpush2.msra.mxu0 0.0
  %3562 = vmatprep.subr.mxu0 0.0
  %3563 = vmatpush2.msra.mxu0 0.0
  %3564 = vmatprep.subr.mxu0 0.0
  %3565 = vmatpush2.msra.mxu0 0.0
  %3566 = vmatprep.subr.mxu0 0.0
  %3567 = vmatpush2.msra.mxu0 0.0
  %3568 = vmatprep.subr.mxu0 0.0
  %3569 = vmatpush2.msra.mxu0 0.0
  %3570 = vmatprep.subr.mxu0 0.0
  %3571 = vmatpush2.msra.mxu0 0.0
  %3572 = vmatprep.subr.mxu0 0.0
  %3573 = vmatpush2.msra.mxu0 0.0
  %3574 = vmatprep.subr.mxu0 0.0
  %3575 = vmatpush2.msra.mxu0 0.0
  %3576 = vmatprep.subr.mxu0 0.0
  %3577 = vmatpush2.msra.mxu0 0.0
  %3578 = vmatprep.subr.mxu0 0.0
  %3579 = vmatpush2.msra.mxu0 0.0
  %3580 = vmatprep.subr.mxu0 0.0
  %3581 = vmatpush2.msra.mxu0 0.0
  %3582 = vmatprep.subr.mxu0 0.0
  %3583 = vmatpush2.msra.mxu0 0.0
  %3584 = vmatprep.subr.mxu0 0.0
  %3585 = vmatpush2.msra.mxu0 0.0
  %3586 = vmatprep.subr.mxu0 0.0
  %3587 = vmatpush2.msra.mxu0 0.0
  %3588 = vmatprep.subr.mxu0 0.0
  %3589 = vmatpush2.msra.mxu0 0.0
  %3590 = vmatprep.mubr.f32.mxu0 0.0
  %v3591 = vand.u32 %v2515, 4294901760
  %3592 = vmatmul.mubr.f32.gmra.mxu0 %v3591
  %v3593 = vpop.f32.mrf.mxu0
  %v3594 = vadd.f32 %v3413, %v3593
  %v3595 = vpop.f32.mrf.mxu0
  %3596 = vmatprep.mubr.f32.mxu0 0.0
  %v3597 = vand.u32 %v2516, 4294901760
  %3598 = vmatmul.mubr.f32.gmra.mxu0 %v3597
  %v3599 = vpop.f32.mrf.mxu0
  %v3600 = vadd.f32 %v3423, %v3599
  %v3601 = vpop.f32.mrf.mxu0
  %3602 = vmatprep.mubr.f32.mxu0 0.0
  %v3603 = vand.u32 %v2517, 4294901760
  %3604 = vmatmul.mubr.f32.gmra.mxu0 %v3603
  %v3605 = vpop.f32.mrf.mxu0
  %v3606 = vadd.f32 %v3433, %v3605
  %v3607 = vpop.f32.mrf.mxu0
  %3608 = vmatprep.mubr.f32.mxu0 0.0
  %v3609 = vand.u32 %v2518, 4294901760
  %3610 = vmatmul.mubr.f32.gmra.mxu0 %v3609
  %v3611 = vpop.f32.mrf.mxu0
  %v3612 = vadd.f32 %v3443, %v3611
  %v3613 = vpop.f32.mrf.mxu0
  %3614 = vdwg.mxu0
  %3615 = vmatprep.subr.mxu0 0.0
  %v3616 = vand.u32 %v2538, 4294901760
  %v3617 = vsub.f32 %v2538, %v3616
  %3618 = vmatpush1.msra.mxu0 %v3617
  %3619 = vmatprep.subr.mxu0 0.0
  %v3620 = vand.u32 %v2537, 4294901760
  %v3621 = vsub.f32 %v2537, %v3620
  %3622 = vmatpush1.msra.mxu0 %v3621
  %3623 = vmatprep.subr.mxu0 0.0
  %v3624 = vand.u32 %v2536, 4294901760
  %v3625 = vsub.f32 %v2536, %v3624
  %3626 = vmatpush1.msra.mxu0 %v3625
  %3627 = vmatprep.subr.mxu0 0.0
  %v3628 = vand.u32 %v2535, 4294901760
  %v3629 = vsub.f32 %v2535, %v3628
  %3630 = vmatpush1.msra.mxu0 %v3629
  %3631 = vmatprep.subr.mxu0 0.0
  %v3632 = vand.u32 %v2534, 4294901760
  %v3633 = vsub.f32 %v2534, %v3632
  %3634 = vmatpush1.msra.mxu0 %v3633
  %3635 = vmatprep.subr.mxu0 0.0
  %v3636 = vand.u32 %v2533, 4294901760
  %v3637 = vsub.f32 %v2533, %v3636
  %3638 = vmatpush1.msra.mxu0 %v3637
  %3639 = vmatprep.subr.mxu0 0.0
  %v3640 = vand.u32 %v2532, 4294901760
  %v3641 = vsub.f32 %v2532, %v3640
  %3642 = vmatpush1.msra.mxu0 %v3641
  %3643 = vmatprep.subr.mxu0 0.0
  %v3644 = vand.u32 %v2531, 4294901760
  %v3645 = vsub.f32 %v2531, %v3644
  %3646 = vmatpush1.msra.mxu0 %v3645
  %3647 = vmatprep.subr.mxu0 0.0
  %v3648 = vand.u32 %v2530, 4294901760
  %v3649 = vsub.f32 %v2530, %v3648
  %3650 = vmatpush1.msra.mxu0 %v3649
  %3651 = vmatprep.subr.mxu0 0.0
  %v3652 = vand.u32 %v2529, 4294901760
  %v3653 = vsub.f32 %v2529, %v3652
  %3654 = vmatpush1.msra.mxu0 %v3653
  %3655 = vmatprep.subr.mxu0 0.0
  %v3656 = vand.u32 %v2528, 4294901760
  %v3657 = vsub.f32 %v2528, %v3656
  %3658 = vmatpush1.msra.mxu0 %v3657
  %3659 = vmatprep.subr.mxu0 0.0
  %v3660 = vand.u32 %v2527, 4294901760
  %v3661 = vsub.f32 %v2527, %v3660
  %3662 = vmatpush1.msra.mxu0 %v3661
  %3663 = vmatprep.subr.mxu0 0.0
  %v3664 = vand.u32 %v2526, 4294901760
  %v3665 = vsub.f32 %v2526, %v3664
  %3666 = vmatpush1.msra.mxu0 %v3665
  %3667 = vmatprep.subr.mxu0 0.0
  %v3668 = vand.u32 %v2525, 4294901760
  %v3669 = vsub.f32 %v2525, %v3668
  %3670 = vmatpush1.msra.mxu0 %v3669
  %3671 = vmatprep.subr.mxu0 0.0
  %v3672 = vand.u32 %v2524, 4294901760
  %v3673 = vsub.f32 %v2524, %v3672
  %3674 = vmatpush1.msra.mxu0 %v3673
  %3675 = vmatprep.subr.mxu0 0.0
  %v3676 = vand.u32 %v2523, 4294901760
  %v3677 = vsub.f32 %v2523, %v3676
  %3678 = vmatpush1.msra.mxu0 %v3677
  %3679 = vmatprep.subr.mxu0 0.0
  %3680 = vmatpush2.msra.mxu0 0.0
  %3681 = vmatprep.subr.mxu0 0.0
  %3682 = vmatpush2.msra.mxu0 0.0
  %3683 = vmatprep.subr.mxu0 0.0
  %3684 = vmatpush2.msra.mxu0 0.0
  %3685 = vmatprep.subr.mxu0 0.0
  %3686 = vmatpush2.msra.mxu0 0.0
  %3687 = vmatprep.subr.mxu0 0.0
  %3688 = vmatpush2.msra.mxu0 0.0
  %3689 = vmatprep.subr.mxu0 0.0
  %3690 = vmatpush2.msra.mxu0 0.0
  %3691 = vmatprep.subr.mxu0 0.0
  %3692 = vmatpush2.msra.mxu0 0.0
  %3693 = vmatprep.subr.mxu0 0.0
  %3694 = vmatpush2.msra.mxu0 0.0
  %3695 = vmatprep.subr.mxu0 0.0
  %3696 = vmatpush2.msra.mxu0 0.0
  %3697 = vmatprep.subr.mxu0 0.0
  %3698 = vmatpush2.msra.mxu0 0.0
  %3699 = vmatprep.subr.mxu0 0.0
  %3700 = vmatpush2.msra.mxu0 0.0
  %3701 = vmatprep.subr.mxu0 0.0
  %3702 = vmatpush2.msra.mxu0 0.0
  %3703 = vmatprep.subr.mxu0 0.0
  %3704 = vmatpush2.msra.mxu0 0.0
  %3705 = vmatprep.subr.mxu0 0.0
  %3706 = vmatpush2.msra.mxu0 0.0
  %3707 = vmatprep.subr.mxu0 0.0
  %3708 = vmatpush2.msra.mxu0 0.0
  %3709 = vmatprep.subr.mxu0 0.0
  %3710 = vmatpush2.msra.mxu0 0.0
  %3711 = vmatprep.mubr.f32.mxu0 0.0
  %v3712 = vand.u32 %v2515, 4294901760
  %v3713 = vsub.f32 %v2515, %v3712
  %3714 = vmatmul.mubr.f32.gmra.mxu0 %v3713
  %v3715 = vpop.f32.mrf.mxu0
  %v3716 = vadd.f32 %v3594, %v3715
  %v3717 = vpop.f32.mrf.mxu0
  %3718 = vmatprep.mubr.f32.mxu0 0.0
  %v3719 = vand.u32 %v2516, 4294901760
  %v3720 = vsub.f32 %v2516, %v3719
  %3721 = vmatmul.mubr.f32.gmra.mxu0 %v3720
  %v3722 = vpop.f32.mrf.mxu0
  %v3723 = vadd.f32 %v3600, %v3722
  %v3724 = vpop.f32.mrf.mxu0
  %3725 = vmatprep.mubr.f32.mxu0 0.0
  %v3726 = vand.u32 %v2517, 4294901760
  %v3727 = vsub.f32 %v2517, %v3726
  %3728 = vmatmul.mubr.f32.gmra.mxu0 %v3727
  %v3729 = vpop.f32.mrf.mxu0
  %v3730 = vadd.f32 %v3606, %v3729
  %v3731 = vpop.f32.mrf.mxu0
  %3732 = vmatprep.mubr.f32.mxu0 0.0
  %v3733 = vand.u32 %v2518, 4294901760
  %v3734 = vsub.f32 %v2518, %v3733
  %3735 = vmatmul.mubr.f32.gmra.mxu0 %v3734
  %v3736 = vpop.f32.mrf.mxu0
  %v3737 = vadd.f32 %v3612, %v3736
  %v3738 = vpop.f32.mrf.mxu0
  %3739 = vdwg.mxu0
  %3740 = vmatprep.subr.mxu0 0.0
  %v3741 = vand.u32 %v2538, 4294901760
  %3742 = vmatpush1.msra.mxu0 %v3741
  %3743 = vmatprep.subr.mxu0 0.0
  %v3744 = vand.u32 %v2537, 4294901760
  %3745 = vmatpush1.msra.mxu0 %v3744
  %3746 = vmatprep.subr.mxu0 0.0
  %v3747 = vand.u32 %v2536, 4294901760
  %3748 = vmatpush1.msra.mxu0 %v3747
  %3749 = vmatprep.subr.mxu0 0.0
  %v3750 = vand.u32 %v2535, 4294901760
  %3751 = vmatpush1.msra.mxu0 %v3750
  %3752 = vmatprep.subr.mxu0 0.0
  %v3753 = vand.u32 %v2534, 4294901760
  %3754 = vmatpush1.msra.mxu0 %v3753
  %3755 = vmatprep.subr.mxu0 0.0
  %v3756 = vand.u32 %v2533, 4294901760
  %3757 = vmatpush1.msra.mxu0 %v3756
  %3758 = vmatprep.subr.mxu0 0.0
  %v3759 = vand.u32 %v2532, 4294901760
  %3760 = vmatpush1.msra.mxu0 %v3759
  %3761 = vmatprep.subr.mxu0 0.0
  %v3762 = vand.u32 %v2531, 4294901760
  %3763 = vmatpush1.msra.mxu0 %v3762
  %3764 = vmatprep.subr.mxu0 0.0
  %v3765 = vand.u32 %v2530, 4294901760
  %3766 = vmatpush1.msra.mxu0 %v3765
  %3767 = vmatprep.subr.mxu0 0.0
  %v3768 = vand.u32 %v2529, 4294901760
  %3769 = vmatpush1.msra.mxu0 %v3768
  %3770 = vmatprep.subr.mxu0 0.0
  %v3771 = vand.u32 %v2528, 4294901760
  %3772 = vmatpush1.msra.mxu0 %v3771
  %3773 = vmatprep.subr.mxu0 0.0
  %v3774 = vand.u32 %v2527, 4294901760
  %3775 = vmatpush1.msra.mxu0 %v3774
  %3776 = vmatprep.subr.mxu0 0.0
  %v3777 = vand.u32 %v2526, 4294901760
  %3778 = vmatpush1.msra.mxu0 %v3777
  %3779 = vmatprep.subr.mxu0 0.0
  %v3780 = vand.u32 %v2525, 4294901760
  %3781 = vmatpush1.msra.mxu0 %v3780
  %3782 = vmatprep.subr.mxu0 0.0
  %v3783 = vand.u32 %v2524, 4294901760
  %3784 = vmatpush1.msra.mxu0 %v3783
  %3785 = vmatprep.subr.mxu0 0.0
  %v3786 = vand.u32 %v2523, 4294901760
  %3787 = vmatpush1.msra.mxu0 %v3786
  %3788 = vmatprep.subr.mxu0 0.0
  %3789 = vmatpush2.msra.mxu0 0.0
  %3790 = vmatprep.subr.mxu0 0.0
  %3791 = vmatpush2.msra.mxu0 0.0
  %3792 = vmatprep.subr.mxu0 0.0
  %3793 = vmatpush2.msra.mxu0 0.0
  %3794 = vmatprep.subr.mxu0 0.0
  %3795 = vmatpush2.msra.mxu0 0.0
  %3796 = vmatprep.subr.mxu0 0.0
  %3797 = vmatpush2.msra.mxu0 0.0
  %3798 = vmatprep.subr.mxu0 0.0
  %3799 = vmatpush2.msra.mxu0 0.0
  %3800 = vmatprep.subr.mxu0 0.0
  %3801 = vmatpush2.msra.mxu0 0.0
  %3802 = vmatprep.subr.mxu0 0.0
  %3803 = vmatpush2.msra.mxu0 0.0
  %3804 = vmatprep.subr.mxu0 0.0
  %3805 = vmatpush2.msra.mxu0 0.0
  %3806 = vmatprep.subr.mxu0 0.0
  %3807 = vmatpush2.msra.mxu0 0.0
  %3808 = vmatprep.subr.mxu0 0.0
  %3809 = vmatpush2.msra.mxu0 0.0
  %3810 = vmatprep.subr.mxu0 0.0
  %3811 = vmatpush2.msra.mxu0 0.0
  %3812 = vmatprep.subr.mxu0 0.0
  %3813 = vmatpush2.msra.mxu0 0.0
  %3814 = vmatprep.subr.mxu0 0.0
  %3815 = vmatpush2.msra.mxu0 0.0
  %3816 = vmatprep.subr.mxu0 0.0
  %3817 = vmatpush2.msra.mxu0 0.0
  %3818 = vmatprep.subr.mxu0 0.0
  %3819 = vmatpush2.msra.mxu0 0.0
  %3820 = vmatprep.mubr.f32.mxu0 0.0
  %v3821 = vand.u32 %v2515, 4294901760
  %v3822 = vsub.f32 %v2515, %v3821
  %v3823 = vand.u32 %v3822, 4294901760
  %3824 = vmatmul.mubr.f32.gmra.mxu0 %v3823
  %v3825 = vpop.f32.mrf.mxu0
  %v3826 = vadd.f32 %v3716, %v3825
  %v3827 = vpop.f32.mrf.mxu0
  %3828 = vmatprep.mubr.f32.mxu0 0.0
  %v3829 = vand.u32 %v2516, 4294901760
  %v3830 = vsub.f32 %v2516, %v3829
  %v3831 = vand.u32 %v3830, 4294901760
  %3832 = vmatmul.mubr.f32.gmra.mxu0 %v3831
  %v3833 = vpop.f32.mrf.mxu0
  %v3834 = vadd.f32 %v3723, %v3833
  %v3835 = vpop.f32.mrf.mxu0
  %3836 = vmatprep.mubr.f32.mxu0 0.0
  %v3837 = vand.u32 %v2517, 4294901760
  %v3838 = vsub.f32 %v2517, %v3837
  %v3839 = vand.u32 %v3838, 4294901760
  %3840 = vmatmul.mubr.f32.gmra.mxu0 %v3839
  %v3841 = vpop.f32.mrf.mxu0
  %v3842 = vadd.f32 %v3730, %v3841
  %v3843 = vpop.f32.mrf.mxu0
  %3844 = vmatprep.mubr.f32.mxu0 0.0
  %v3845 = vand.u32 %v2518, 4294901760
  %v3846 = vsub.f32 %v2518, %v3845
  %v3847 = vand.u32 %v3846, 4294901760
  %3848 = vmatmul.mubr.f32.gmra.mxu0 %v3847
  %v3849 = vpop.f32.mrf.mxu0
  %v3850 = vadd.f32 %v3737, %v3849
  %v3851 = vpop.f32.mrf.mxu0
  %3852 = vdwg.mxu0
  %3853 = vmatprep.subr.mxu0 0.0
  %v3854 = vand.u32 %v2538, 4294901760
  %v3855 = vsub.f32 %v2538, %v3854
  %v3856 = vand.u32 %v3855, 4294901760
  %3857 = vmatpush1.msra.mxu0 %v3856
  %3858 = vmatprep.subr.mxu0 0.0
  %v3859 = vand.u32 %v2537, 4294901760
  %v3860 = vsub.f32 %v2537, %v3859
  %v3861 = vand.u32 %v3860, 4294901760
  %3862 = vmatpush1.msra.mxu0 %v3861
  %3863 = vmatprep.subr.mxu0 0.0
  %v3864 = vand.u32 %v2536, 4294901760
  %v3865 = vsub.f32 %v2536, %v3864
  %v3866 = vand.u32 %v3865, 4294901760
  %3867 = vmatpush1.msra.mxu0 %v3866
  %3868 = vmatprep.subr.mxu0 0.0
  %v3869 = vand.u32 %v2535, 4294901760
  %v3870 = vsub.f32 %v2535, %v3869
  %v3871 = vand.u32 %v3870, 4294901760
  %3872 = vmatpush1.msra.mxu0 %v3871
  %3873 = vmatprep.subr.mxu0 0.0
  %v3874 = vand.u32 %v2534, 4294901760
  %v3875 = vsub.f32 %v2534, %v3874
  %v3876 = vand.u32 %v3875, 4294901760
  %3877 = vmatpush1.msra.mxu0 %v3876
  %3878 = vmatprep.subr.mxu0 0.0
  %v3879 = vand.u32 %v2533, 4294901760
  %v3880 = vsub.f32 %v2533, %v3879
  %v3881 = vand.u32 %v3880, 4294901760
  %3882 = vmatpush1.msra.mxu0 %v3881
  %3883 = vmatprep.subr.mxu0 0.0
  %v3884 = vand.u32 %v2532, 4294901760
  %v3885 = vsub.f32 %v2532, %v3884
  %v3886 = vand.u32 %v3885, 4294901760
  %3887 = vmatpush1.msra.mxu0 %v3886
  %3888 = vmatprep.subr.mxu0 0.0
  %v3889 = vand.u32 %v2531, 4294901760
  %v3890 = vsub.f32 %v2531, %v3889
  %v3891 = vand.u32 %v3890, 4294901760
  %3892 = vmatpush1.msra.mxu0 %v3891
  %3893 = vmatprep.subr.mxu0 0.0
  %v3894 = vand.u32 %v2530, 4294901760
  %v3895 = vsub.f32 %v2530, %v3894
  %v3896 = vand.u32 %v3895, 4294901760
  %3897 = vmatpush1.msra.mxu0 %v3896
  %3898 = vmatprep.subr.mxu0 0.0
  %v3899 = vand.u32 %v2529, 4294901760
  %v3900 = vsub.f32 %v2529, %v3899
  %v3901 = vand.u32 %v3900, 4294901760
  %3902 = vmatpush1.msra.mxu0 %v3901
  %3903 = vmatprep.subr.mxu0 0.0
  %v3904 = vand.u32 %v2528, 4294901760
  %v3905 = vsub.f32 %v2528, %v3904
  %v3906 = vand.u32 %v3905, 4294901760
  %3907 = vmatpush1.msra.mxu0 %v3906
  %3908 = vmatprep.subr.mxu0 0.0
  %v3909 = vand.u32 %v2527, 4294901760
  %v3910 = vsub.f32 %v2527, %v3909
  %v3911 = vand.u32 %v3910, 4294901760
  %3912 = vmatpush1.msra.mxu0 %v3911
  %3913 = vmatprep.subr.mxu0 0.0
  %v3914 = vand.u32 %v2526, 4294901760
  %v3915 = vsub.f32 %v2526, %v3914
  %v3916 = vand.u32 %v3915, 4294901760
  %3917 = vmatpush1.msra.mxu0 %v3916
  %3918 = vmatprep.subr.mxu0 0.0
  %v3919 = vand.u32 %v2525, 4294901760
  %v3920 = vsub.f32 %v2525, %v3919
  %v3921 = vand.u32 %v3920, 4294901760
  %3922 = vmatpush1.msra.mxu0 %v3921
  %3923 = vmatprep.subr.mxu0 0.0
  %v3924 = vand.u32 %v2524, 4294901760
  %v3925 = vsub.f32 %v2524, %v3924
  %v3926 = vand.u32 %v3925, 4294901760
  %3927 = vmatpush1.msra.mxu0 %v3926
  %3928 = vmatprep.subr.mxu0 0.0
  %v3929 = vand.u32 %v2523, 4294901760
  %v3930 = vsub.f32 %v2523, %v3929
  %v3931 = vand.u32 %v3930, 4294901760
  %3932 = vmatpush1.msra.mxu0 %v3931
  %3933 = vmatprep.subr.mxu0 0.0
  %3934 = vmatpush2.msra.mxu0 0.0
  %3935 = vmatprep.subr.mxu0 0.0
  %3936 = vmatpush2.msra.mxu0 0.0
  %3937 = vmatprep.subr.mxu0 0.0
  %3938 = vmatpush2.msra.mxu0 0.0
  %3939 = vmatprep.subr.mxu0 0.0
  %3940 = vmatpush2.msra.mxu0 0.0
  %3941 = vmatprep.subr.mxu0 0.0
  %3942 = vmatpush2.msra.mxu0 0.0
  %3943 = vmatprep.subr.mxu0 0.0
  %3944 = vmatpush2.msra.mxu0 0.0
  %3945 = vmatprep.subr.mxu0 0.0
  %3946 = vmatpush2.msra.mxu0 0.0
  %3947 = vmatprep.subr.mxu0 0.0
  %3948 = vmatpush2.msra.mxu0 0.0
  %3949 = vmatprep.subr.mxu0 0.0
  %3950 = vmatpush2.msra.mxu0 0.0
  %3951 = vmatprep.subr.mxu0 0.0
  %3952 = vmatpush2.msra.mxu0 0.0
  %3953 = vmatprep.subr.mxu0 0.0
  %3954 = vmatpush2.msra.mxu0 0.0
  %3955 = vmatprep.subr.mxu0 0.0
  %3956 = vmatpush2.msra.mxu0 0.0
  %3957 = vmatprep.subr.mxu0 0.0
  %3958 = vmatpush2.msra.mxu0 0.0
  %3959 = vmatprep.subr.mxu0 0.0
  %3960 = vmatpush2.msra.mxu0 0.0
  %3961 = vmatprep.subr.mxu0 0.0
  %3962 = vmatpush2.msra.mxu0 0.0
  %3963 = vmatprep.subr.mxu0 0.0
  %3964 = vmatpush2.msra.mxu0 0.0
  %3965 = vmatprep.mubr.f32.mxu0 0.0
  %v3966 = vand.u32 %v2515, 4294901760
  %3967 = vmatmul.mubr.f32.gmra.mxu0 %v3966
  %v3968 = vpop.f32.mrf.mxu0
  %v3969 = vadd.f32 %v3826, %v3968
  %v3970 = vpop.f32.mrf.mxu0
  %3971 = vmatprep.mubr.f32.mxu0 0.0
  %v3972 = vand.u32 %v2516, 4294901760
  %3973 = vmatmul.mubr.f32.gmra.mxu0 %v3972
  %v3974 = vpop.f32.mrf.mxu0
  %v3975 = vadd.f32 %v3834, %v3974
  %v3976 = vpop.f32.mrf.mxu0
  %3977 = vmatprep.mubr.f32.mxu0 0.0
  %v3978 = vand.u32 %v2517, 4294901760
  %3979 = vmatmul.mubr.f32.gmra.mxu0 %v3978
  %v3980 = vpop.f32.mrf.mxu0
  %v3981 = vadd.f32 %v3842, %v3980
  %v3982 = vpop.f32.mrf.mxu0
  %3983 = vmatprep.mubr.f32.mxu0 0.0
  %v3984 = vand.u32 %v2518, 4294901760
  %3985 = vmatmul.mubr.f32.gmra.mxu0 %v3984
  %v3986 = vpop.f32.mrf.mxu0
  %v3987 = vadd.f32 %v3850, %v3986
  %v3988 = vpop.f32.mrf.mxu0
  %3989 = vdwg.mxu0
  %3990 = vmatprep.subr.mxu0 0.0
  %v3991 = vand.u32 %v2538, 4294901760
  %3992 = vmatpush1.msra.mxu0 %v3991
  %3993 = vmatprep.subr.mxu0 0.0
  %v3994 = vand.u32 %v2537, 4294901760
  %3995 = vmatpush1.msra.mxu0 %v3994
  %3996 = vmatprep.subr.mxu0 0.0
  %v3997 = vand.u32 %v2536, 4294901760
  %3998 = vmatpush1.msra.mxu0 %v3997
  %3999 = vmatprep.subr.mxu0 0.0
  %v4000 = vand.u32 %v2535, 4294901760
  %4001 = vmatpush1.msra.mxu0 %v4000
  %4002 = vmatprep.subr.mxu0 0.0
  %v4003 = vand.u32 %v2534, 4294901760
  %4004 = vmatpush1.msra.mxu0 %v4003
  %4005 = vmatprep.subr.mxu0 0.0
  %v4006 = vand.u32 %v2533, 4294901760
  %4007 = vmatpush1.msra.mxu0 %v4006
  %4008 = vmatprep.subr.mxu0 0.0
  %v4009 = vand.u32 %v2532, 4294901760
  %4010 = vmatpush1.msra.mxu0 %v4009
  %4011 = vmatprep.subr.mxu0 0.0
  %v4012 = vand.u32 %v2531, 4294901760
  %4013 = vmatpush1.msra.mxu0 %v4012
  %4014 = vmatprep.subr.mxu0 0.0
  %v4015 = vand.u32 %v2530, 4294901760
  %4016 = vmatpush1.msra.mxu0 %v4015
  %4017 = vmatprep.subr.mxu0 0.0
  %v4018 = vand.u32 %v2529, 4294901760
  %4019 = vmatpush1.msra.mxu0 %v4018
  %4020 = vmatprep.subr.mxu0 0.0
  %v4021 = vand.u32 %v2528, 4294901760
  %4022 = vmatpush1.msra.mxu0 %v4021
  %4023 = vmatprep.subr.mxu0 0.0
  %v4024 = vand.u32 %v2527, 4294901760
  %4025 = vmatpush1.msra.mxu0 %v4024
  %4026 = vmatprep.subr.mxu0 0.0
  %v4027 = vand.u32 %v2526, 4294901760
  %4028 = vmatpush1.msra.mxu0 %v4027
  %4029 = vmatprep.subr.mxu0 0.0
  %v4030 = vand.u32 %v2525, 4294901760
  %4031 = vmatpush1.msra.mxu0 %v4030
  %4032 = vmatprep.subr.mxu0 0.0
  %v4033 = vand.u32 %v2524, 4294901760
  %4034 = vmatpush1.msra.mxu0 %v4033
  %4035 = vmatprep.subr.mxu0 0.0
  %v4036 = vand.u32 %v2523, 4294901760
  %4037 = vmatpush1.msra.mxu0 %v4036
  %4038 = vmatprep.subr.mxu0 0.0
  %4039 = vmatpush2.msra.mxu0 0.0
  %4040 = vmatprep.subr.mxu0 0.0
  %4041 = vmatpush2.msra.mxu0 0.0
  %4042 = vmatprep.subr.mxu0 0.0
  %4043 = vmatpush2.msra.mxu0 0.0
  %4044 = vmatprep.subr.mxu0 0.0
  %4045 = vmatpush2.msra.mxu0 0.0
  %4046 = vmatprep.subr.mxu0 0.0
  %4047 = vmatpush2.msra.mxu0 0.0
  %4048 = vmatprep.subr.mxu0 0.0
  %4049 = vmatpush2.msra.mxu0 0.0
  %4050 = vmatprep.subr.mxu0 0.0
  %4051 = vmatpush2.msra.mxu0 0.0
  %4052 = vmatprep.subr.mxu0 0.0
  %4053 = vmatpush2.msra.mxu0 0.0
  %4054 = vmatprep.subr.mxu0 0.0
  %4055 = vmatpush2.msra.mxu0 0.0
  %4056 = vmatprep.subr.mxu0 0.0
  %4057 = vmatpush2.msra.mxu0 0.0
  %4058 = vmatprep.subr.mxu0 0.0
  %4059 = vmatpush2.msra.mxu0 0.0
  %4060 = vmatprep.subr.mxu0 0.0
  %4061 = vmatpush2.msra.mxu0 0.0
  %4062 = vmatprep.subr.mxu0 0.0
  %4063 = vmatpush2.msra.mxu0 0.0
  %4064 = vmatprep.subr.mxu0 0.0
  %4065 = vmatpush2.msra.mxu0 0.0
  %4066 = vmatprep.subr.mxu0 0.0
  %4067 = vmatpush2.msra.mxu0 0.0
  %4068 = vmatprep.subr.mxu0 0.0
  %4069 = vmatpush2.msra.mxu0 0.0
  %4070 = vmatprep.mubr.f32.mxu0 0.0
  %v4071 = vand.u32 %v2515, 4294901760
  %4072 = vmatmul.mubr.f32.gmra.mxu0 %v4071
  %v4073 = vpop.f32.mrf.mxu0
  %v4074 = vadd.f32 %v3969, %v4073
  %v4075 = vpop.f32.mrf.mxu0
  %4076 = vmatprep.mubr.f32.mxu0 0.0
  %v4077 = vand.u32 %v2516, 4294901760
  %4078 = vmatmul.mubr.f32.gmra.mxu0 %v4077
  %v4079 = vpop.f32.mrf.mxu0
  %v4080 = vadd.f32 %v3975, %v4079
  %v4081 = vpop.f32.mrf.mxu0
  %4082 = vmatprep.mubr.f32.mxu0 0.0
  %v4083 = vand.u32 %v2517, 4294901760
  %4084 = vmatmul.mubr.f32.gmra.mxu0 %v4083
  %v4085 = vpop.f32.mrf.mxu0
  %v4086 = vadd.f32 %v3981, %v4085
  %v4087 = vpop.f32.mrf.mxu0
  %4088 = vmatprep.mubr.f32.mxu0 0.0
  %v4089 = vand.u32 %v2518, 4294901760
  %4090 = vmatmul.mubr.f32.gmra.mxu0 %v4089
  %v4091 = vpop.f32.mrf.mxu0
  %v4092 = vadd.f32 %v3987, %v4091
  %v4093 = vpop.f32.mrf.mxu0
  %4094 = vdwg.mxu0
  %v4095 = vld [vmem:[%s2 + $0x100] sm:$0xff]
  %v4096 = vld [vmem:[%s2 + $0x108] sm:$0xff]
  %v4097 = vld [vmem:[%s2 + $0x110] sm:$0xff]
  %v4098 = vld [vmem:[%s2 + $0x118] sm:$0xff]
  %v4099 = vld [vmem:[%s2 + $0x120] sm:$0xff]
  %v4100 = vld [vmem:[%s2 + $0x128] sm:$0xff]
  %v4101 = vld [vmem:[%s2 + $0x130] sm:$0xff]
  %v4102 = vld [vmem:[%s2 + $0x138] sm:$0xff]
  %v4103 = vld [vmem:[%s2 + $0x140] sm:$0xff]
  %v4104 = vld [vmem:[%s2 + $0x148] sm:$0xff]
  %v4105 = vld [vmem:[%s2 + $0x150] sm:$0xff]
  %v4106 = vld [vmem:[%s2 + $0x158] sm:$0xff]
  %v4107 = vld [vmem:[%s2 + $0x160] sm:$0xff]
  %v4108 = vld [vmem:[%s2 + $0x168] sm:$0xff]
  %v4109 = vld [vmem:[%s2 + $0x170] sm:$0xff]
  %v4110 = vld [vmem:[%s2 + $0x178] sm:$0xff]
  %4111 = vmatprep.subr.mxu0 0.0
  %v4112 = vand.u32 %v4110, 4294901760
  %4113 = vmatpush1.msra.mxu0 %v4112
  %4114 = vmatprep.subr.mxu0 0.0
  %v4115 = vand.u32 %v4109, 4294901760
  %4116 = vmatpush1.msra.mxu0 %v4115
  %4117 = vmatprep.subr.mxu0 0.0
  %v4118 = vand.u32 %v4108, 4294901760
  %4119 = vmatpush1.msra.mxu0 %v4118
  %4120 = vmatprep.subr.mxu0 0.0
  %v4121 = vand.u32 %v4107, 4294901760
  %4122 = vmatpush1.msra.mxu0 %v4121
  %4123 = vmatprep.subr.mxu0 0.0
  %v4124 = vand.u32 %v4106, 4294901760
  %4125 = vmatpush1.msra.mxu0 %v4124
  %4126 = vmatprep.subr.mxu0 0.0
  %v4127 = vand.u32 %v4105, 4294901760
  %4128 = vmatpush1.msra.mxu0 %v4127
  %4129 = vmatprep.subr.mxu0 0.0
  %v4130 = vand.u32 %v4104, 4294901760
  %4131 = vmatpush1.msra.mxu0 %v4130
  %4132 = vmatprep.subr.mxu0 0.0
  %v4133 = vand.u32 %v4103, 4294901760
  %4134 = vmatpush1.msra.mxu0 %v4133
  %4135 = vmatprep.subr.mxu0 0.0
  %v4136 = vand.u32 %v4102, 4294901760
  %4137 = vmatpush1.msra.mxu0 %v4136
  %4138 = vmatprep.subr.mxu0 0.0
  %v4139 = vand.u32 %v4101, 4294901760
  %4140 = vmatpush1.msra.mxu0 %v4139
  %4141 = vmatprep.subr.mxu0 0.0
  %v4142 = vand.u32 %v4100, 4294901760
  %4143 = vmatpush1.msra.mxu0 %v4142
  %4144 = vmatprep.subr.mxu0 0.0
  %v4145 = vand.u32 %v4099, 4294901760
  %4146 = vmatpush1.msra.mxu0 %v4145
  %4147 = vmatprep.subr.mxu0 0.0
  %v4148 = vand.u32 %v4098, 4294901760
  %4149 = vmatpush1.msra.mxu0 %v4148
  %4150 = vmatprep.subr.mxu0 0.0
  %v4151 = vand.u32 %v4097, 4294901760
  %4152 = vmatpush1.msra.mxu0 %v4151
  %4153 = vmatprep.subr.mxu0 0.0
  %v4154 = vand.u32 %v4096, 4294901760
  %4155 = vmatpush1.msra.mxu0 %v4154
  %4156 = vmatprep.subr.mxu0 0.0
  %v4157 = vand.u32 %v4095, 4294901760
  %4158 = vmatpush1.msra.mxu0 %v4157
  %4159 = vmatprep.subr.mxu0 0.0
  %4160 = vmatpush2.msra.mxu0 0.0
  %4161 = vmatprep.subr.mxu0 0.0
  %4162 = vmatpush2.msra.mxu0 0.0
  %4163 = vmatprep.subr.mxu0 0.0
  %4164 = vmatpush2.msra.mxu0 0.0
  %4165 = vmatprep.subr.mxu0 0.0
  %4166 = vmatpush2.msra.mxu0 0.0
  %4167 = vmatprep.subr.mxu0 0.0
  %4168 = vmatpush2.msra.mxu0 0.0
  %4169 = vmatprep.subr.mxu0 0.0
  %4170 = vmatpush2.msra.mxu0 0.0
  %4171 = vmatprep.subr.mxu0 0.0
  %4172 = vmatpush2.msra.mxu0 0.0
  %4173 = vmatprep.subr.mxu0 0.0
  %4174 = vmatpush2.msra.mxu0 0.0
  %4175 = vmatprep.subr.mxu0 0.0
  %4176 = vmatpush2.msra.mxu0 0.0
  %4177 = vmatprep.subr.mxu0 0.0
  %4178 = vmatpush2.msra.mxu0 0.0
  %4179 = vmatprep.subr.mxu0 0.0
  %4180 = vmatpush2.msra.mxu0 0.0
  %4181 = vmatprep.subr.mxu0 0.0
  %4182 = vmatpush2.msra.mxu0 0.0
  %4183 = vmatprep.subr.mxu0 0.0
  %4184 = vmatpush2.msra.mxu0 0.0
  %4185 = vmatprep.subr.mxu0 0.0
  %4186 = vmatpush2.msra.mxu0 0.0
  %4187 = vmatprep.subr.mxu0 0.0
  %4188 = vmatpush2.msra.mxu0 0.0
  %4189 = vmatprep.subr.mxu0 0.0
  %4190 = vmatpush2.msra.mxu0 0.0
  %4191 = vmatprep.mubr.f32.mxu0 0.0
  %v4192 = vand.u32 %v2519, 4294901760
  %v4193 = vsub.f32 %v2519, %v4192
  %v4194 = vand.u32 %v4193, 4294901760
  %v4195 = vsub.f32 %v4193, %v4194
  %v4196 = vand.u32 %v4195, 4294901760
  %4197 = vmatmul.mubr.f32.gmra.mxu0 %v4196
  %v4198 = vpop.f32.mrf.mxu0
  %v4199 = vadd.f32 0.0, %v4198
  %v4200 = vpop.f32.mrf.mxu0
  %4201 = vmatprep.mubr.f32.mxu0 0.0
  %v4202 = vand.u32 %v2520, 4294901760
  %v4203 = vsub.f32 %v2520, %v4202
  %v4204 = vand.u32 %v4203, 4294901760
  %v4205 = vsub.f32 %v4203, %v4204
  %v4206 = vand.u32 %v4205, 4294901760
  %4207 = vmatmul.mubr.f32.gmra.mxu0 %v4206
  %v4208 = vpop.f32.mrf.mxu0
  %v4209 = vadd.f32 0.0, %v4208
  %v4210 = vpop.f32.mrf.mxu0
  %4211 = vmatprep.mubr.f32.mxu0 0.0
  %v4212 = vand.u32 %v2521, 4294901760
  %v4213 = vsub.f32 %v2521, %v4212
  %v4214 = vand.u32 %v4213, 4294901760
  %v4215 = vsub.f32 %v4213, %v4214
  %v4216 = vand.u32 %v4215, 4294901760
  %4217 = vmatmul.mubr.f32.gmra.mxu0 %v4216
  %v4218 = vpop.f32.mrf.mxu0
  %v4219 = vadd.f32 0.0, %v4218
  %v4220 = vpop.f32.mrf.mxu0
  %4221 = vmatprep.mubr.f32.mxu0 0.0
  %v4222 = vand.u32 %v2522, 4294901760
  %v4223 = vsub.f32 %v2522, %v4222
  %v4224 = vand.u32 %v4223, 4294901760
  %v4225 = vsub.f32 %v4223, %v4224
  %v4226 = vand.u32 %v4225, 4294901760
  %4227 = vmatmul.mubr.f32.gmra.mxu0 %v4226
  %v4228 = vpop.f32.mrf.mxu0
  %v4229 = vadd.f32 0.0, %v4228
  %v4230 = vpop.f32.mrf.mxu0
  %4231 = vdwg.mxu0
  %4232 = vmatprep.subr.mxu0 0.0
  %v4233 = vand.u32 %v4110, 4294901760
  %v4234 = vsub.f32 %v4110, %v4233
  %v4235 = vand.u32 %v4234, 4294901760
  %v4236 = vsub.f32 %v4234, %v4235
  %v4237 = vand.u32 %v4236, 4294901760
  %4238 = vmatpush1.msra.mxu0 %v4237
  %4239 = vmatprep.subr.mxu0 0.0
  %v4240 = vand.u32 %v4109, 4294901760
  %v4241 = vsub.f32 %v4109, %v4240
  %v4242 = vand.u32 %v4241, 4294901760
  %v4243 = vsub.f32 %v4241, %v4242
  %v4244 = vand.u32 %v4243, 4294901760
  %4245 = vmatpush1.msra.mxu0 %v4244
  %4246 = vmatprep.subr.mxu0 0.0
  %v4247 = vand.u32 %v4108, 4294901760
  %v4248 = vsub.f32 %v4108, %v4247
  %v4249 = vand.u32 %v4248, 4294901760
  %v4250 = vsub.f32 %v4248, %v4249
  %v4251 = vand.u32 %v4250, 4294901760
  %4252 = vmatpush1.msra.mxu0 %v4251
  %4253 = vmatprep.subr.mxu0 0.0
  %v4254 = vand.u32 %v4107, 4294901760
  %v4255 = vsub.f32 %v4107, %v4254
  %v4256 = vand.u32 %v4255, 4294901760
  %v4257 = vsub.f32 %v4255, %v4256
  %v4258 = vand.u32 %v4257, 4294901760
  %4259 = vmatpush1.msra.mxu0 %v4258
  %4260 = vmatprep.subr.mxu0 0.0
  %v4261 = vand.u32 %v4106, 4294901760
  %v4262 = vsub.f32 %v4106, %v4261
  %v4263 = vand.u32 %v4262, 4294901760
  %v4264 = vsub.f32 %v4262, %v4263
  %v4265 = vand.u32 %v4264, 4294901760
  %4266 = vmatpush1.msra.mxu0 %v4265
  %4267 = vmatprep.subr.mxu0 0.0
  %v4268 = vand.u32 %v4105, 4294901760
  %v4269 = vsub.f32 %v4105, %v4268
  %v4270 = vand.u32 %v4269, 4294901760
  %v4271 = vsub.f32 %v4269, %v4270
  %v4272 = vand.u32 %v4271, 4294901760
  %4273 = vmatpush1.msra.mxu0 %v4272
  %4274 = vmatprep.subr.mxu0 0.0
  %v4275 = vand.u32 %v4104, 4294901760
  %v4276 = vsub.f32 %v4104, %v4275
  %v4277 = vand.u32 %v4276, 4294901760
  %v4278 = vsub.f32 %v4276, %v4277
  %v4279 = vand.u32 %v4278, 4294901760
  %4280 = vmatpush1.msra.mxu0 %v4279
  %4281 = vmatprep.subr.mxu0 0.0
  %v4282 = vand.u32 %v4103, 4294901760
  %v4283 = vsub.f32 %v4103, %v4282
  %v4284 = vand.u32 %v4283, 4294901760
  %v4285 = vsub.f32 %v4283, %v4284
  %v4286 = vand.u32 %v4285, 4294901760
  %4287 = vmatpush1.msra.mxu0 %v4286
  %4288 = vmatprep.subr.mxu0 0.0
  %v4289 = vand.u32 %v4102, 4294901760
  %v4290 = vsub.f32 %v4102, %v4289
  %v4291 = vand.u32 %v4290, 4294901760
  %v4292 = vsub.f32 %v4290, %v4291
  %v4293 = vand.u32 %v4292, 4294901760
  %4294 = vmatpush1.msra.mxu0 %v4293
  %4295 = vmatprep.subr.mxu0 0.0
  %v4296 = vand.u32 %v4101, 4294901760
  %v4297 = vsub.f32 %v4101, %v4296
  %v4298 = vand.u32 %v4297, 4294901760
  %v4299 = vsub.f32 %v4297, %v4298
  %v4300 = vand.u32 %v4299, 4294901760
  %4301 = vmatpush1.msra.mxu0 %v4300
  %4302 = vmatprep.subr.mxu0 0.0
  %v4303 = vand.u32 %v4100, 4294901760
  %v4304 = vsub.f32 %v4100, %v4303
  %v4305 = vand.u32 %v4304, 4294901760
  %v4306 = vsub.f32 %v4304, %v4305
  %v4307 = vand.u32 %v4306, 4294901760
  %4308 = vmatpush1.msra.mxu0 %v4307
  %4309 = vmatprep.subr.mxu0 0.0
  %v4310 = vand.u32 %v4099, 4294901760
  %v4311 = vsub.f32 %v4099, %v4310
  %v4312 = vand.u32 %v4311, 4294901760
  %v4313 = vsub.f32 %v4311, %v4312
  %v4314 = vand.u32 %v4313, 4294901760
  %4315 = vmatpush1.msra.mxu0 %v4314
  %4316 = vmatprep.subr.mxu0 0.0
  %v4317 = vand.u32 %v4098, 4294901760
  %v4318 = vsub.f32 %v4098, %v4317
  %v4319 = vand.u32 %v4318, 4294901760
  %v4320 = vsub.f32 %v4318, %v4319
  %v4321 = vand.u32 %v4320, 4294901760
  %4322 = vmatpush1.msra.mxu0 %v4321
  %4323 = vmatprep.subr.mxu0 0.0
  %v4324 = vand.u32 %v4097, 4294901760
  %v4325 = vsub.f32 %v4097, %v4324
  %v4326 = vand.u32 %v4325, 4294901760
  %v4327 = vsub.f32 %v4325, %v4326
  %v4328 = vand.u32 %v4327, 4294901760
  %4329 = vmatpush1.msra.mxu0 %v4328
  %4330 = vmatprep.subr.mxu0 0.0
  %v4331 = vand.u32 %v4096, 4294901760
  %v4332 = vsub.f32 %v4096, %v4331
  %v4333 = vand.u32 %v4332, 4294901760
  %v4334 = vsub.f32 %v4332, %v4333
  %v4335 = vand.u32 %v4334, 4294901760
  %4336 = vmatpush1.msra.mxu0 %v4335
  %4337 = vmatprep.subr.mxu0 0.0
  %v4338 = vand.u32 %v4095, 4294901760
  %v4339 = vsub.f32 %v4095, %v4338
  %v4340 = vand.u32 %v4339, 4294901760
  %v4341 = vsub.f32 %v4339, %v4340
  %v4342 = vand.u32 %v4341, 4294901760
  %4343 = vmatpush1.msra.mxu0 %v4342
  %4344 = vmatprep.subr.mxu0 0.0
  %4345 = vmatpush2.msra.mxu0 0.0
  %4346 = vmatprep.subr.mxu0 0.0
  %4347 = vmatpush2.msra.mxu0 0.0
  %4348 = vmatprep.subr.mxu0 0.0
  %4349 = vmatpush2.msra.mxu0 0.0
  %4350 = vmatprep.subr.mxu0 0.0
  %4351 = vmatpush2.msra.mxu0 0.0
  %4352 = vmatprep.subr.mxu0 0.0
  %4353 = vmatpush2.msra.mxu0 0.0
  %4354 = vmatprep.subr.mxu0 0.0
  %4355 = vmatpush2.msra.mxu0 0.0
  %4356 = vmatprep.subr.mxu0 0.0
  %4357 = vmatpush2.msra.mxu0 0.0
  %4358 = vmatprep.subr.mxu0 0.0
  %4359 = vmatpush2.msra.mxu0 0.0
  %4360 = vmatprep.subr.mxu0 0.0
  %4361 = vmatpush2.msra.mxu0 0.0
  %4362 = vmatprep.subr.mxu0 0.0
  %4363 = vmatpush2.msra.mxu0 0.0
  %4364 = vmatprep.subr.mxu0 0.0
  %4365 = vmatpush2.msra.mxu0 0.0
  %4366 = vmatprep.subr.mxu0 0.0
  %4367 = vmatpush2.msra.mxu0 0.0
  %4368 = vmatprep.subr.mxu0 0.0
  %4369 = vmatpush2.msra.mxu0 0.0
  %4370 = vmatprep.subr.mxu0 0.0
  %4371 = vmatpush2.msra.mxu0 0.0
  %4372 = vmatprep.subr.mxu0 0.0
  %4373 = vmatpush2.msra.mxu0 0.0
  %4374 = vmatprep.subr.mxu0 0.0
  %4375 = vmatpush2.msra.mxu0 0.0
  %4376 = vmatprep.mubr.f32.mxu0 0.0
  %v4377 = vand.u32 %v2519, 4294901760
  %4378 = vmatmul.mubr.f32.gmra.mxu0 %v4377
  %v4379 = vpop.f32.mrf.mxu0
  %v4380 = vadd.f32 %v4199, %v4379
  %v4381 = vpop.f32.mrf.mxu0
  %4382 = vmatprep.mubr.f32.mxu0 0.0
  %v4383 = vand.u32 %v2520, 4294901760
  %4384 = vmatmul.mubr.f32.gmra.mxu0 %v4383
  %v4385 = vpop.f32.mrf.mxu0
  %v4386 = vadd.f32 %v4209, %v4385
  %v4387 = vpop.f32.mrf.mxu0
  %4388 = vmatprep.mubr.f32.mxu0 0.0
  %v4389 = vand.u32 %v2521, 4294901760
  %4390 = vmatmul.mubr.f32.gmra.mxu0 %v4389
  %v4391 = vpop.f32.mrf.mxu0
  %v4392 = vadd.f32 %v4219, %v4391
  %v4393 = vpop.f32.mrf.mxu0
  %4394 = vmatprep.mubr.f32.mxu0 0.0
  %v4395 = vand.u32 %v2522, 4294901760
  %4396 = vmatmul.mubr.f32.gmra.mxu0 %v4395
  %v4397 = vpop.f32.mrf.mxu0
  %v4398 = vadd.f32 %v4229, %v4397
  %v4399 = vpop.f32.mrf.mxu0
  %4400 = vdwg.mxu0
  %4401 = vmatprep.subr.mxu0 0.0
  %v4402 = vand.u32 %v4110, 4294901760
  %v4403 = vsub.f32 %v4110, %v4402
  %4404 = vmatpush1.msra.mxu0 %v4403
  %4405 = vmatprep.subr.mxu0 0.0
  %v4406 = vand.u32 %v4109, 4294901760
  %v4407 = vsub.f32 %v4109, %v4406
  %4408 = vmatpush1.msra.mxu0 %v4407
  %4409 = vmatprep.subr.mxu0 0.0
  %v4410 = vand.u32 %v4108, 4294901760
  %v4411 = vsub.f32 %v4108, %v4410
  %4412 = vmatpush1.msra.mxu0 %v4411
  %4413 = vmatprep.subr.mxu0 0.0
  %v4414 = vand.u32 %v4107, 4294901760
  %v4415 = vsub.f32 %v4107, %v4414
  %4416 = vmatpush1.msra.mxu0 %v4415
  %4417 = vmatprep.subr.mxu0 0.0
  %v4418 = vand.u32 %v4106, 4294901760
  %v4419 = vsub.f32 %v4106, %v4418
  %4420 = vmatpush1.msra.mxu0 %v4419
  %4421 = vmatprep.subr.mxu0 0.0
  %v4422 = vand.u32 %v4105, 4294901760
  %v4423 = vsub.f32 %v4105, %v4422
  %4424 = vmatpush1.msra.mxu0 %v4423
  %4425 = vmatprep.subr.mxu0 0.0
  %v4426 = vand.u32 %v4104, 4294901760
  %v4427 = vsub.f32 %v4104, %v4426
  %4428 = vmatpush1.msra.mxu0 %v4427
  %4429 = vmatprep.subr.mxu0 0.0
  %v4430 = vand.u32 %v4103, 4294901760
  %v4431 = vsub.f32 %v4103, %v4430
  %4432 = vmatpush1.msra.mxu0 %v4431
  %4433 = vmatprep.subr.mxu0 0.0
  %v4434 = vand.u32 %v4102, 4294901760
  %v4435 = vsub.f32 %v4102, %v4434
  %4436 = vmatpush1.msra.mxu0 %v4435
  %4437 = vmatprep.subr.mxu0 0.0
  %v4438 = vand.u32 %v4101, 4294901760
  %v4439 = vsub.f32 %v4101, %v4438
  %4440 = vmatpush1.msra.mxu0 %v4439
  %4441 = vmatprep.subr.mxu0 0.0
  %v4442 = vand.u32 %v4100, 4294901760
  %v4443 = vsub.f32 %v4100, %v4442
  %4444 = vmatpush1.msra.mxu0 %v4443
  %4445 = vmatprep.subr.mxu0 0.0
  %v4446 = vand.u32 %v4099, 4294901760
  %v4447 = vsub.f32 %v4099, %v4446
  %4448 = vmatpush1.msra.mxu0 %v4447
  %4449 = vmatprep.subr.mxu0 0.0
  %v4450 = vand.u32 %v4098, 4294901760
  %v4451 = vsub.f32 %v4098, %v4450
  %4452 = vmatpush1.msra.mxu0 %v4451
  %4453 = vmatprep.subr.mxu0 0.0
  %v4454 = vand.u32 %v4097, 4294901760
  %v4455 = vsub.f32 %v4097, %v4454
  %4456 = vmatpush1.msra.mxu0 %v4455
  %4457 = vmatprep.subr.mxu0 0.0
  %v4458 = vand.u32 %v4096, 4294901760
  %v4459 = vsub.f32 %v4096, %v4458
  %4460 = vmatpush1.msra.mxu0 %v4459
  %4461 = vmatprep.subr.mxu0 0.0
  %v4462 = vand.u32 %v4095, 4294901760
  %v4463 = vsub.f32 %v4095, %v4462
  %4464 = vmatpush1.msra.mxu0 %v4463
  %4465 = vmatprep.subr.mxu0 0.0
  %4466 = vmatpush2.msra.mxu0 0.0
  %4467 = vmatprep.subr.mxu0 0.0
  %4468 = vmatpush2.msra.mxu0 0.0
  %4469 = vmatprep.subr.mxu0 0.0
  %4470 = vmatpush2.msra.mxu0 0.0
  %4471 = vmatprep.subr.mxu0 0.0
  %4472 = vmatpush2.msra.mxu0 0.0
  %4473 = vmatprep.subr.mxu0 0.0
  %4474 = vmatpush2.msra.mxu0 0.0
  %4475 = vmatprep.subr.mxu0 0.0
  %4476 = vmatpush2.msra.mxu0 0.0
  %4477 = vmatprep.subr.mxu0 0.0
  %4478 = vmatpush2.msra.mxu0 0.0
  %4479 = vmatprep.subr.mxu0 0.0
  %4480 = vmatpush2.msra.mxu0 0.0
  %4481 = vmatprep.subr.mxu0 0.0
  %4482 = vmatpush2.msra.mxu0 0.0
  %4483 = vmatprep.subr.mxu0 0.0
  %4484 = vmatpush2.msra.mxu0 0.0
  %4485 = vmatprep.subr.mxu0 0.0
  %4486 = vmatpush2.msra.mxu0 0.0
  %4487 = vmatprep.subr.mxu0 0.0
  %4488 = vmatpush2.msra.mxu0 0.0
  %4489 = vmatprep.subr.mxu0 0.0
  %4490 = vmatpush2.msra.mxu0 0.0
  %4491 = vmatprep.subr.mxu0 0.0
  %4492 = vmatpush2.msra.mxu0 0.0
  %4493 = vmatprep.subr.mxu0 0.0
  %4494 = vmatpush2.msra.mxu0 0.0
  %4495 = vmatprep.subr.mxu0 0.0
  %4496 = vmatpush2.msra.mxu0 0.0
  %4497 = vmatprep.mubr.f32.mxu0 0.0
  %v4498 = vand.u32 %v2519, 4294901760
  %v4499 = vsub.f32 %v2519, %v4498
  %4500 = vmatmul.mubr.f32.gmra.mxu0 %v4499
  %v4501 = vpop.f32.mrf.mxu0
  %v4502 = vadd.f32 %v4380, %v4501
  %v4503 = vpop.f32.mrf.mxu0
  %4504 = vmatprep.mubr.f32.mxu0 0.0
  %v4505 = vand.u32 %v2520, 4294901760
  %v4506 = vsub.f32 %v2520, %v4505
  %4507 = vmatmul.mubr.f32.gmra.mxu0 %v4506
  %v4508 = vpop.f32.mrf.mxu0
  %v4509 = vadd.f32 %v4386, %v4508
  %v4510 = vpop.f32.mrf.mxu0
  %4511 = vmatprep.mubr.f32.mxu0 0.0
  %v4512 = vand.u32 %v2521, 4294901760
  %v4513 = vsub.f32 %v2521, %v4512
  %4514 = vmatmul.mubr.f32.gmra.mxu0 %v4513
  %v4515 = vpop.f32.mrf.mxu0
  %v4516 = vadd.f32 %v4392, %v4515
  %v4517 = vpop.f32.mrf.mxu0
  %4518 = vmatprep.mubr.f32.mxu0 0.0
  %v4519 = vand.u32 %v2522, 4294901760
  %v4520 = vsub.f32 %v2522, %v4519
  %4521 = vmatmul.mubr.f32.gmra.mxu0 %v4520
  %v4522 = vpop.f32.mrf.mxu0
  %v4523 = vadd.f32 %v4398, %v4522
  %v4524 = vpop.f32.mrf.mxu0
  %4525 = vdwg.mxu0
  %4526 = vmatprep.subr.mxu0 0.0
  %v4527 = vand.u32 %v4110, 4294901760
  %4528 = vmatpush1.msra.mxu0 %v4527
  %4529 = vmatprep.subr.mxu0 0.0
  %v4530 = vand.u32 %v4109, 4294901760
  %4531 = vmatpush1.msra.mxu0 %v4530
  %4532 = vmatprep.subr.mxu0 0.0
  %v4533 = vand.u32 %v4108, 4294901760
  %4534 = vmatpush1.msra.mxu0 %v4533
  %4535 = vmatprep.subr.mxu0 0.0
  %v4536 = vand.u32 %v4107, 4294901760
  %4537 = vmatpush1.msra.mxu0 %v4536
  %4538 = vmatprep.subr.mxu0 0.0
  %v4539 = vand.u32 %v4106, 4294901760
  %4540 = vmatpush1.msra.mxu0 %v4539
  %4541 = vmatprep.subr.mxu0 0.0
  %v4542 = vand.u32 %v4105, 4294901760
  %4543 = vmatpush1.msra.mxu0 %v4542
  %4544 = vmatprep.subr.mxu0 0.0
  %v4545 = vand.u32 %v4104, 4294901760
  %4546 = vmatpush1.msra.mxu0 %v4545
  %4547 = vmatprep.subr.mxu0 0.0
  %v4548 = vand.u32 %v4103, 4294901760
  %4549 = vmatpush1.msra.mxu0 %v4548
  %4550 = vmatprep.subr.mxu0 0.0
  %v4551 = vand.u32 %v4102, 4294901760
  %4552 = vmatpush1.msra.mxu0 %v4551
  %4553 = vmatprep.subr.mxu0 0.0
  %v4554 = vand.u32 %v4101, 4294901760
  %4555 = vmatpush1.msra.mxu0 %v4554
  %4556 = vmatprep.subr.mxu0 0.0
  %v4557 = vand.u32 %v4100, 4294901760
  %4558 = vmatpush1.msra.mxu0 %v4557
  %4559 = vmatprep.subr.mxu0 0.0
  %v4560 = vand.u32 %v4099, 4294901760
  %4561 = vmatpush1.msra.mxu0 %v4560
  %4562 = vmatprep.subr.mxu0 0.0
  %v4563 = vand.u32 %v4098, 4294901760
  %4564 = vmatpush1.msra.mxu0 %v4563
  %4565 = vmatprep.subr.mxu0 0.0
  %v4566 = vand.u32 %v4097, 4294901760
  %4567 = vmatpush1.msra.mxu0 %v4566
  %4568 = vmatprep.subr.mxu0 0.0
  %v4569 = vand.u32 %v4096, 4294901760
  %4570 = vmatpush1.msra.mxu0 %v4569
  %4571 = vmatprep.subr.mxu0 0.0
  %v4572 = vand.u32 %v4095, 4294901760
  %4573 = vmatpush1.msra.mxu0 %v4572
  %4574 = vmatprep.subr.mxu0 0.0
  %4575 = vmatpush2.msra.mxu0 0.0
  %4576 = vmatprep.subr.mxu0 0.0
  %4577 = vmatpush2.msra.mxu0 0.0
  %4578 = vmatprep.subr.mxu0 0.0
  %4579 = vmatpush2.msra.mxu0 0.0
  %4580 = vmatprep.subr.mxu0 0.0
  %4581 = vmatpush2.msra.mxu0 0.0
  %4582 = vmatprep.subr.mxu0 0.0
  %4583 = vmatpush2.msra.mxu0 0.0
  %4584 = vmatprep.subr.mxu0 0.0
  %4585 = vmatpush2.msra.mxu0 0.0
  %4586 = vmatprep.subr.mxu0 0.0
  %4587 = vmatpush2.msra.mxu0 0.0
  %4588 = vmatprep.subr.mxu0 0.0
  %4589 = vmatpush2.msra.mxu0 0.0
  %4590 = vmatprep.subr.mxu0 0.0
  %4591 = vmatpush2.msra.mxu0 0.0
  %4592 = vmatprep.subr.mxu0 0.0
  %4593 = vmatpush2.msra.mxu0 0.0
  %4594 = vmatprep.subr.mxu0 0.0
  %4595 = vmatpush2.msra.mxu0 0.0
  %4596 = vmatprep.subr.mxu0 0.0
  %4597 = vmatpush2.msra.mxu0 0.0
  %4598 = vmatprep.subr.mxu0 0.0
  %4599 = vmatpush2.msra.mxu0 0.0
  %4600 = vmatprep.subr.mxu0 0.0
  %4601 = vmatpush2.msra.mxu0 0.0
  %4602 = vmatprep.subr.mxu0 0.0
  %4603 = vmatpush2.msra.mxu0 0.0
  %4604 = vmatprep.subr.mxu0 0.0
  %4605 = vmatpush2.msra.mxu0 0.0
  %4606 = vmatprep.mubr.f32.mxu0 0.0
  %v4607 = vand.u32 %v2519, 4294901760
  %v4608 = vsub.f32 %v2519, %v4607
  %v4609 = vand.u32 %v4608, 4294901760
  %4610 = vmatmul.mubr.f32.gmra.mxu0 %v4609
  %v4611 = vpop.f32.mrf.mxu0
  %v4612 = vadd.f32 %v4502, %v4611
  %v4613 = vpop.f32.mrf.mxu0
  %4614 = vmatprep.mubr.f32.mxu0 0.0
  %v4615 = vand.u32 %v2520, 4294901760
  %v4616 = vsub.f32 %v2520, %v4615
  %v4617 = vand.u32 %v4616, 4294901760
  %4618 = vmatmul.mubr.f32.gmra.mxu0 %v4617
  %v4619 = vpop.f32.mrf.mxu0
  %v4620 = vadd.f32 %v4509, %v4619
  %v4621 = vpop.f32.mrf.mxu0
  %4622 = vmatprep.mubr.f32.mxu0 0.0
  %v4623 = vand.u32 %v2521, 4294901760
  %v4624 = vsub.f32 %v2521, %v4623
  %v4625 = vand.u32 %v4624, 4294901760
  %4626 = vmatmul.mubr.f32.gmra.mxu0 %v4625
  %v4627 = vpop.f32.mrf.mxu0
  %v4628 = vadd.f32 %v4516, %v4627
  %v4629 = vpop.f32.mrf.mxu0
  %4630 = vmatprep.mubr.f32.mxu0 0.0
  %v4631 = vand.u32 %v2522, 4294901760
  %v4632 = vsub.f32 %v2522, %v4631
  %v4633 = vand.u32 %v4632, 4294901760
  %4634 = vmatmul.mubr.f32.gmra.mxu0 %v4633
  %v4635 = vpop.f32.mrf.mxu0
  %v4636 = vadd.f32 %v4523, %v4635
  %v4637 = vpop.f32.mrf.mxu0
  %4638 = vdwg.mxu0
  %4639 = vmatprep.subr.mxu0 0.0
  %v4640 = vand.u32 %v4110, 4294901760
  %v4641 = vsub.f32 %v4110, %v4640
  %v4642 = vand.u32 %v4641, 4294901760
  %4643 = vmatpush1.msra.mxu0 %v4642
  %4644 = vmatprep.subr.mxu0 0.0
  %v4645 = vand.u32 %v4109, 4294901760
  %v4646 = vsub.f32 %v4109, %v4645
  %v4647 = vand.u32 %v4646, 4294901760
  %4648 = vmatpush1.msra.mxu0 %v4647
  %4649 = vmatprep.subr.mxu0 0.0
  %v4650 = vand.u32 %v4108, 4294901760
  %v4651 = vsub.f32 %v4108, %v4650
  %v4652 = vand.u32 %v4651, 4294901760
  %4653 = vmatpush1.msra.mxu0 %v4652
  %4654 = vmatprep.subr.mxu0 0.0
  %v4655 = vand.u32 %v4107, 4294901760
  %v4656 = vsub.f32 %v4107, %v4655
  %v4657 = vand.u32 %v4656, 4294901760
  %4658 = vmatpush1.msra.mxu0 %v4657
  %4659 = vmatprep.subr.mxu0 0.0
  %v4660 = vand.u32 %v4106, 4294901760
  %v4661 = vsub.f32 %v4106, %v4660
  %v4662 = vand.u32 %v4661, 4294901760
  %4663 = vmatpush1.msra.mxu0 %v4662
  %4664 = vmatprep.subr.mxu0 0.0
  %v4665 = vand.u32 %v4105, 4294901760
  %v4666 = vsub.f32 %v4105, %v4665
  %v4667 = vand.u32 %v4666, 4294901760
  %4668 = vmatpush1.msra.mxu0 %v4667
  %4669 = vmatprep.subr.mxu0 0.0
  %v4670 = vand.u32 %v4104, 4294901760
  %v4671 = vsub.f32 %v4104, %v4670
  %v4672 = vand.u32 %v4671, 4294901760
  %4673 = vmatpush1.msra.mxu0 %v4672
  %4674 = vmatprep.subr.mxu0 0.0
  %v4675 = vand.u32 %v4103, 4294901760
  %v4676 = vsub.f32 %v4103, %v4675
  %v4677 = vand.u32 %v4676, 4294901760
  %4678 = vmatpush1.msra.mxu0 %v4677
  %4679 = vmatprep.subr.mxu0 0.0
  %v4680 = vand.u32 %v4102, 4294901760
  %v4681 = vsub.f32 %v4102, %v4680
  %v4682 = vand.u32 %v4681, 4294901760
  %4683 = vmatpush1.msra.mxu0 %v4682
  %4684 = vmatprep.subr.mxu0 0.0
  %v4685 = vand.u32 %v4101, 4294901760
  %v4686 = vsub.f32 %v4101, %v4685
  %v4687 = vand.u32 %v4686, 4294901760
  %4688 = vmatpush1.msra.mxu0 %v4687
  %4689 = vmatprep.subr.mxu0 0.0
  %v4690 = vand.u32 %v4100, 4294901760
  %v4691 = vsub.f32 %v4100, %v4690
  %v4692 = vand.u32 %v4691, 4294901760
  %4693 = vmatpush1.msra.mxu0 %v4692
  %4694 = vmatprep.subr.mxu0 0.0
  %v4695 = vand.u32 %v4099, 4294901760
  %v4696 = vsub.f32 %v4099, %v4695
  %v4697 = vand.u32 %v4696, 4294901760
  %4698 = vmatpush1.msra.mxu0 %v4697
  %4699 = vmatprep.subr.mxu0 0.0
  %v4700 = vand.u32 %v4098, 4294901760
  %v4701 = vsub.f32 %v4098, %v4700
  %v4702 = vand.u32 %v4701, 4294901760
  %4703 = vmatpush1.msra.mxu0 %v4702
  %4704 = vmatprep.subr.mxu0 0.0
  %v4705 = vand.u32 %v4097, 4294901760
  %v4706 = vsub.f32 %v4097, %v4705
  %v4707 = vand.u32 %v4706, 4294901760
  %4708 = vmatpush1.msra.mxu0 %v4707
  %4709 = vmatprep.subr.mxu0 0.0
  %v4710 = vand.u32 %v4096, 4294901760
  %v4711 = vsub.f32 %v4096, %v4710
  %v4712 = vand.u32 %v4711, 4294901760
  %4713 = vmatpush1.msra.mxu0 %v4712
  %4714 = vmatprep.subr.mxu0 0.0
  %v4715 = vand.u32 %v4095, 4294901760
  %v4716 = vsub.f32 %v4095, %v4715
  %v4717 = vand.u32 %v4716, 4294901760
  %4718 = vmatpush1.msra.mxu0 %v4717
  %4719 = vmatprep.subr.mxu0 0.0
  %4720 = vmatpush2.msra.mxu0 0.0
  %4721 = vmatprep.subr.mxu0 0.0
  %4722 = vmatpush2.msra.mxu0 0.0
  %4723 = vmatprep.subr.mxu0 0.0
  %4724 = vmatpush2.msra.mxu0 0.0
  %4725 = vmatprep.subr.mxu0 0.0
  %4726 = vmatpush2.msra.mxu0 0.0
  %4727 = vmatprep.subr.mxu0 0.0
  %4728 = vmatpush2.msra.mxu0 0.0
  %4729 = vmatprep.subr.mxu0 0.0
  %4730 = vmatpush2.msra.mxu0 0.0
  %4731 = vmatprep.subr.mxu0 0.0
  %4732 = vmatpush2.msra.mxu0 0.0
  %4733 = vmatprep.subr.mxu0 0.0
  %4734 = vmatpush2.msra.mxu0 0.0
  %4735 = vmatprep.subr.mxu0 0.0
  %4736 = vmatpush2.msra.mxu0 0.0
  %4737 = vmatprep.subr.mxu0 0.0
  %4738 = vmatpush2.msra.mxu0 0.0
  %4739 = vmatprep.subr.mxu0 0.0
  %4740 = vmatpush2.msra.mxu0 0.0
  %4741 = vmatprep.subr.mxu0 0.0
  %4742 = vmatpush2.msra.mxu0 0.0
  %4743 = vmatprep.subr.mxu0 0.0
  %4744 = vmatpush2.msra.mxu0 0.0
  %4745 = vmatprep.subr.mxu0 0.0
  %4746 = vmatpush2.msra.mxu0 0.0
  %4747 = vmatprep.subr.mxu0 0.0
  %4748 = vmatpush2.msra.mxu0 0.0
  %4749 = vmatprep.subr.mxu0 0.0
  %4750 = vmatpush2.msra.mxu0 0.0
  %4751 = vmatprep.mubr.f32.mxu0 0.0
  %v4752 = vand.u32 %v2519, 4294901760
  %4753 = vmatmul.mubr.f32.gmra.mxu0 %v4752
  %v4754 = vpop.f32.mrf.mxu0
  %v4755 = vadd.f32 %v4612, %v4754
  %v4756 = vpop.f32.mrf.mxu0
  %4757 = vmatprep.mubr.f32.mxu0 0.0
  %v4758 = vand.u32 %v2520, 4294901760
  %4759 = vmatmul.mubr.f32.gmra.mxu0 %v4758
  %v4760 = vpop.f32.mrf.mxu0
  %v4761 = vadd.f32 %v4620, %v4760
  %v4762 = vpop.f32.mrf.mxu0
  %4763 = vmatprep.mubr.f32.mxu0 0.0
  %v4764 = vand.u32 %v2521, 4294901760
  %4765 = vmatmul.mubr.f32.gmra.mxu0 %v4764
  %v4766 = vpop.f32.mrf.mxu0
  %v4767 = vadd.f32 %v4628, %v4766
  %v4768 = vpop.f32.mrf.mxu0
  %4769 = vmatprep.mubr.f32.mxu0 0.0
  %v4770 = vand.u32 %v2522, 4294901760
  %4771 = vmatmul.mubr.f32.gmra.mxu0 %v4770
  %v4772 = vpop.f32.mrf.mxu0
  %v4773 = vadd.f32 %v4636, %v4772
  %v4774 = vpop.f32.mrf.mxu0
  %4775 = vdwg.mxu0
  %4776 = vmatprep.subr.mxu0 0.0
  %v4777 = vand.u32 %v4110, 4294901760
  %4778 = vmatpush1.msra.mxu0 %v4777
  %4779 = vmatprep.subr.mxu0 0.0
  %v4780 = vand.u32 %v4109, 4294901760
  %4781 = vmatpush1.msra.mxu0 %v4780
  %4782 = vmatprep.subr.mxu0 0.0
  %v4783 = vand.u32 %v4108, 4294901760
  %4784 = vmatpush1.msra.mxu0 %v4783
  %4785 = vmatprep.subr.mxu0 0.0
  %v4786 = vand.u32 %v4107, 4294901760
  %4787 = vmatpush1.msra.mxu0 %v4786
  %4788 = vmatprep.subr.mxu0 0.0
  %v4789 = vand.u32 %v4106, 4294901760
  %4790 = vmatpush1.msra.mxu0 %v4789
  %4791 = vmatprep.subr.mxu0 0.0
  %v4792 = vand.u32 %v4105, 4294901760
  %4793 = vmatpush1.msra.mxu0 %v4792
  %4794 = vmatprep.subr.mxu0 0.0
  %v4795 = vand.u32 %v4104, 4294901760
  %4796 = vmatpush1.msra.mxu0 %v4795
  %4797 = vmatprep.subr.mxu0 0.0
  %v4798 = vand.u32 %v4103, 4294901760
  %4799 = vmatpush1.msra.mxu0 %v4798
  %4800 = vmatprep.subr.mxu0 0.0
  %v4801 = vand.u32 %v4102, 4294901760
  %4802 = vmatpush1.msra.mxu0 %v4801
  %4803 = vmatprep.subr.mxu0 0.0
  %v4804 = vand.u32 %v4101, 4294901760
  %4805 = vmatpush1.msra.mxu0 %v4804
  %4806 = vmatprep.subr.mxu0 0.0
  %v4807 = vand.u32 %v4100, 4294901760
  %4808 = vmatpush1.msra.mxu0 %v4807
  %4809 = vmatprep.subr.mxu0 0.0
  %v4810 = vand.u32 %v4099, 4294901760
  %4811 = vmatpush1.msra.mxu0 %v4810
  %4812 = vmatprep.subr.mxu0 0.0
  %v4813 = vand.u32 %v4098, 4294901760
  %4814 = vmatpush1.msra.mxu0 %v4813
  %4815 = vmatprep.subr.mxu0 0.0
  %v4816 = vand.u32 %v4097, 4294901760
  %4817 = vmatpush1.msra.mxu0 %v4816
  %4818 = vmatprep.subr.mxu0 0.0
  %v4819 = vand.u32 %v4096, 4294901760
  %4820 = vmatpush1.msra.mxu0 %v4819
  %4821 = vmatprep.subr.mxu0 0.0
  %v4822 = vand.u32 %v4095, 4294901760
  %4823 = vmatpush1.msra.mxu0 %v4822
  %4824 = vmatprep.subr.mxu0 0.0
  %4825 = vmatpush2.msra.mxu0 0.0
  %4826 = vmatprep.subr.mxu0 0.0
  %4827 = vmatpush2.msra.mxu0 0.0
  %4828 = vmatprep.subr.mxu0 0.0
  %4829 = vmatpush2.msra.mxu0 0.0
  %4830 = vmatprep.subr.mxu0 0.0
  %4831 = vmatpush2.msra.mxu0 0.0
  %4832 = vmatprep.subr.mxu0 0.0
  %4833 = vmatpush2.msra.mxu0 0.0
  %4834 = vmatprep.subr.mxu0 0.0
  %4835 = vmatpush2.msra.mxu0 0.0
  %4836 = vmatprep.subr.mxu0 0.0
  %4837 = vmatpush2.msra.mxu0 0.0
  %4838 = vmatprep.subr.mxu0 0.0
  %4839 = vmatpush2.msra.mxu0 0.0
  %4840 = vmatprep.subr.mxu0 0.0
  %4841 = vmatpush2.msra.mxu0 0.0
  %4842 = vmatprep.subr.mxu0 0.0
  %4843 = vmatpush2.msra.mxu0 0.0
  %4844 = vmatprep.subr.mxu0 0.0
  %4845 = vmatpush2.msra.mxu0 0.0
  %4846 = vmatprep.subr.mxu0 0.0
  %4847 = vmatpush2.msra.mxu0 0.0
  %4848 = vmatprep.subr.mxu0 0.0
  %4849 = vmatpush2.msra.mxu0 0.0
  %4850 = vmatprep.subr.mxu0 0.0
  %4851 = vmatpush2.msra.mxu0 0.0
  %4852 = vmatprep.subr.mxu0 0.0
  %4853 = vmatpush2.msra.mxu0 0.0
  %4854 = vmatprep.subr.mxu0 0.0
  %4855 = vmatpush2.msra.mxu0 0.0
  %4856 = vmatprep.mubr.f32.mxu0 0.0
  %v4857 = vand.u32 %v2519, 4294901760
  %4858 = vmatmul.mubr.f32.gmra.mxu0 %v4857
  %v4859 = vpop.f32.mrf.mxu0
  %v4860 = vadd.f32 %v4755, %v4859
  %v4861 = vpop.f32.mrf.mxu0
  %4862 = vmatprep.mubr.f32.mxu0 0.0
  %v4863 = vand.u32 %v2520, 4294901760
  %4864 = vmatmul.mubr.f32.gmra.mxu0 %v4863
  %v4865 = vpop.f32.mrf.mxu0
  %v4866 = vadd.f32 %v4761, %v4865
  %v4867 = vpop.f32.mrf.mxu0
  %4868 = vmatprep.mubr.f32.mxu0 0.0
  %v4869 = vand.u32 %v2521, 4294901760
  %4870 = vmatmul.mubr.f32.gmra.mxu0 %v4869
  %v4871 = vpop.f32.mrf.mxu0
  %v4872 = vadd.f32 %v4767, %v4871
  %v4873 = vpop.f32.mrf.mxu0
  %4874 = vmatprep.mubr.f32.mxu0 0.0
  %v4875 = vand.u32 %v2522, 4294901760
  %4876 = vmatmul.mubr.f32.gmra.mxu0 %v4875
  %v4877 = vpop.f32.mrf.mxu0
  %v4878 = vadd.f32 %v4773, %v4877
  %v4879 = vpop.f32.mrf.mxu0
  %4880 = vdwg.mxu0
  %v4881 = vadd.f32 %v4074, %v4860
  %v4882 = vadd.f32 %v4080, %v4866
  %v4883 = vadd.f32 %v4086, %v4872
  %v4884 = vadd.f32 %v4092, %v4878
  %v4885 = vlaneseq
  %v4886 = vshrl.u32 %v4885, 7
  %v4887 = vsub.s32 1, %v4886
  %v4888 = vrot.slane %v21, %v4887
  %v4889 = vadd.f32 %v4881, %v4888
  %v4890 = vadd.f32 %v4882, %v4888
  %v4891 = vadd.f32 %v4883, %v4888
  %v4892 = vadd.f32 %v4884, %v4888
  %v4893 = vadd.f32 %v17, %v4889
  %v4894 = vadd.f32 %v18, %v4890
  %v4895 = vadd.f32 %v19, %v4891
  %v4896 = vadd.f32 %v20, %v4892
  %4897 = vst [vmem:[%s4] sm:$0xff] %v4893
  %4898 = vst [vmem:[%s4 + $0x8] sm:$0xff] %v4894
  %4899 = vst [vmem:[%s4 + $0x10] sm:$0xff] %v4895
  %4900 = vst [vmem:[%s4 + $0x18] sm:$0xff] %v4896
  // Predicated region
  $region18: #{residual_block_forward.1} parent=0 // pred_check
    _
  $region19: #{residual_block_forward.1} parent=0 // pred_check_branch
    %4902 = sbr.rel (0) target = $region21
  $region20: #{residual_block_forward.1} parent=0 // pred_region
    _
  $region21: #{residual_block_forward.1} parent=0 // pred_fallthru
    _
  // Predicated region
  $region22: #{residual_block_forward.1} parent=0 // pred_check
    _
  $region23: #{residual_block_forward.1} parent=0 // pred_check_branch
    %4904 = sbr.rel (0) target = $region25
  $region24: #{residual_block_forward.1} parent=0 // pred_region
    _
  $region25: #{residual_block_forward.1} parent=0 // pred_fallthru
    _

</llo_original>
